<compile_context>
chip_gen: v6e
topology: v6e:2x2x1
jax: 0.10.0
libtpu: 0.0.40
codegen_flags: <defaults>
</compile_context>

<pallas_src>
import functools
import math

import jax
import jax.numpy as jnp
from jax import lax
from jax.experimental import pallas as pl
from jax.experimental.pallas import tpu as pltpu


# ----------------------------------------------------------------------------
# Generation-aware VMEM budget + pl.Buffered(1) feature probe
# ----------------------------------------------------------------------------

_VMEM_LIMIT_CACHE = None


def _vmem_limit():
    """~75% of physical VMEM, capped at 100 MiB (=> ~96 MiB v5e/v6e, ~48 MiB v7x)."""
    global _VMEM_LIMIT_CACHE
    if _VMEM_LIMIT_CACHE is None:
        cap = 64 * 1024 * 1024  # conservative fallback (v7x-sized)
        try:
            cap = int(pltpu.get_tpu_info().vmem_capacity_bytes)
        except Exception:
            pass
        _VMEM_LIMIT_CACHE = max(32 * 1024 * 1024,
                                min(100 * 1024 * 1024, (cap * 3) // 4))
    return _VMEM_LIMIT_CACHE


_BUFFERED_OK = None


def _buffered_single_ok():
    """Probe once (eagerly, outside jit) whether pipeline_mode=pl.Buffered(1) works."""
    global _BUFFERED_OK
    if _BUFFERED_OK is None:
        def _probe_kernel(x_ref, o_ref):
            o_ref[...] = x_ref[...] * 2.0
        try:
            spec = pl.BlockSpec((8, 128), lambda i: (0, 0),
                                pipeline_mode=pl.Buffered(1))
            out = pl.pallas_call(
                _probe_kernel,
                out_shape=jax.ShapeDtypeStruct((8, 128), jnp.float32),
                grid=(2,),
                in_specs=[spec],
                out_specs=pl.BlockSpec((8, 128), lambda i: (0, 0)),
            )(jnp.ones((8, 128), jnp.float32))
            jax.block_until_ready(out)
            _BUFFERED_OK = True
        except Exception:
            _BUFFERED_OK = False
    return _BUFFERED_OK


def _const_spec(shape):
    """BlockSpec for a block that never changes across the grid (weights, vectors)."""
    idx = lambda *args: (0,) * len(shape)
    if _buffered_single_ok():
        return pl.BlockSpec(shape, idx, pipeline_mode=pl.Buffered(1))
    return pl.BlockSpec(shape, idx)


def _weight_buffers():
    return 1 if _buffered_single_ok() else 2


# ----------------------------------------------------------------------------
# Small helpers
# ----------------------------------------------------------------------------

def _round_up(x, m):
    return ((x + m - 1) // m) * m


def _pad_rows(x, mp):
    m = x.shape[0]
    if mp == m:
        return x
    pad = [(0, mp - m)] + [(0, 0)] * (x.ndim - 1)
    return jnp.pad(x, pad)


def _pad2(x, mp, np_):
    m, n = x.shape
    if (mp, np_) == (m, n):
        return x
    return jnp.pad(x, ((0, mp - m), (0, np_ - n)))


def _pick_row_tile(M, per_row_bytes, fixed_bytes, cap=512):
    budget = int(_vmem_limit() * 0.7) - fixed_bytes
    t = budget // max(per_row_bytes, 1)
    t = min(cap, t)
    t = min(t, _round_up(M, 16))
    t = max(16, (t // 16) * 16)
    return t


def _ln_rows(x, g, b):
    """nn.LayerNorm(C), eps=1e-5, f32 statistics.  x: (rows, C)."""
    x = x.astype(jnp.float32)
    mean = jnp.mean(x, axis=-1, keepdims=True)
    xc = x - mean
    var = jnp.mean(xc * xc, axis=-1, keepdims=True)
    return xc * lax.rsqrt(var + 1e-5) * g + b


# ----------------------------------------------------------------------------
# Standalone LayerNorm (only used for ln0 of layer 0 and the final ln_out)
# ----------------------------------------------------------------------------

def _ln_kernel(x_ref, g_ref, b_ref, o_ref):
    o_ref[...] = _ln_rows(x_ref[...], g_ref[...], b_ref[...]).astype(o_ref.dtype)


def layernorm(x, gamma, beta, out_dtype=jnp.float32):
    shp = x.shape
    C = shp[-1]
    x2 = x.reshape(-1, C)
    M = x2.shape[0]
    tr = _pick_row_tile(M, 24 * C, 0, cap=1024)
    Mp = _round_up(M, tr)
    out = pl.pallas_call(
        _ln_kernel,
        out_shape=jax.ShapeDtypeStruct((Mp, C), out_dtype),
        grid=(Mp // tr,),
        in_specs=[pl.BlockSpec((tr, C), lambda i: (i, 0)),
                  _const_spec((1, C)),
                  _const_spec((1, C))],
        out_specs=pl.BlockSpec((tr, C), lambda i: (i, 0)),
        compiler_params=pltpu.CompilerParams(
            dimension_semantics=("parallel",),
            vmem_limit_bytes=_vmem_limit()),
    )(_pad_rows(x2, Mp),
      gamma.reshape(1, C).astype(jnp.float32),
      beta.reshape(1, C).astype(jnp.float32))
    return out[:M].reshape(shp[:-1] + (C,))


# ----------------------------------------------------------------------------
# Vocab-head matmul: full-K tile, VMEM-aware row tile, write straight to output
# ----------------------------------------------------------------------------

def _matmul_kernel(x_ref, w_ref, o_ref):
    o_ref[...] = jnp.dot(x_ref[...], w_ref[...],
                         preferred_element_type=jnp.float32)


def matmul(x, w):
    """y = x_padded @ w.  w may have more (zero) rows than x has columns."""
    M, K = x.shape
    K2, N = w.shape
    assert K2 >= K
    xb = x.astype(jnp.bfloat16)
    wb = w.astype(jnp.bfloat16)
    Kp = _round_up(K2, 128)
    Np = _round_up(N, 128)
    limit = _vmem_limit()
    budget = int(limit * 0.7)
    tn = 128
    for cand in (512, 256, 128):
        if Np % cand == 0 and 2 * Kp * cand * 2 <= budget // 2:
            tn = cand
            break
    fixed = 2 * Kp * tn * 2                 # double-buffered weight block
    per_tm = 2 * Kp * 2 + 2 * tn * 4        # x block (bf16) + out block (f32)
    tm = max(16, (budget - fixed) // max(per_tm, 1))
    tm = min(tm, _round_up(M, 16), 4096)
    tm = max(16, (tm // 16) * 16)
    Mp = _round_up(M, tm)
    xb = _pad2(xb, Mp, Kp)
    wb = _pad2(wb, Kp, Np)                   # no-op for the pre-padded head weight
    out = pl.pallas_call(
        _matmul_kernel,
        out_shape=jax.ShapeDtypeStruct((Mp, Np), jnp.float32),
        grid=(Mp // tm, Np // tn),
        in_specs=[pl.BlockSpec((tm, Kp), lambda i, j: (i, 0)),
                  pl.BlockSpec((Kp, tn), lambda i, j: (0, j))],
        out_specs=pl.BlockSpec((tm, tn), lambda i, j: (i, j)),
        compiler_params=pltpu.CompilerParams(
            dimension_semantics=("parallel", "parallel"),
            vmem_limit_bytes=limit),
    )(xb, wb)
    return out[:M, :N]


# ----------------------------------------------------------------------------
# WKV recurrence: channels packed across sublanes/lanes, time loop unrolled
# ----------------------------------------------------------------------------

def _wkv_kernel(w_ref, u_ref, k_ref, v_ref, y_ref, aa_ref, bb_ref, pp_ref):
    # k/v/y blocks: (tt, rr, 128); w/u and state scratch: (rr, 128).
    @pl.when(pl.program_id(1) == 0)
    def _():
        aa_ref[...] = jnp.zeros_like(aa_ref)
        bb_ref[...] = jnp.zeros_like(bb_ref)
        pp_ref[...] = jnp.full_like(pp_ref, -1e38)

    w = w_ref[...]          # already -exp(time_decay), broadcast per (b, c)
    u = u_ref[...]
    tt = k_ref.shape[0]

    def body(t, carry):
        aa, bb, pp = carry
        kt = k_ref[t]
        vt = v_ref[t]
        ww = u + kt
        p = jnp.maximum(pp, ww)
        e1 = jnp.exp(pp - p)
        e2 = jnp.exp(ww - p)
        num = e1 * aa + e2 * vt
        den = e1 * bb + e2
        r0 = pl.reciprocal(den, approx=True)
        r = r0 * (2.0 - den * r0)            # one Newton step -> ~exact division
        y_ref[t] = (num * r).astype(y_ref.dtype)
        ww2 = pp + w
        p2 = jnp.maximum(ww2, kt)
        e1b = jnp.exp(ww2 - p2)
        e2b = jnp.exp(kt - p2)
        return (e1b * aa + e2b * vt, e1b * bb + e2b, p2)

    aa, bb, pp = lax.fori_loop(0, tt, body,
                               (aa_ref[...], bb_ref[...], pp_ref[...]),
                               unroll=8)
    aa_ref[...] = aa
    bb_ref[...] = bb
    pp_ref[...] = pp


def wkv(time_decay, time_first, k, v):
    """RWKV WKV recurrence.  k, v: (T, B, C) f32 -> y: (T, B, C)."""
    T, B, C = k.shape
    N = B * C
    w = -jnp.exp(time_decay.astype(jnp.float32))         # (C,)
    u = time_first.astype(jnp.float32)
    wb = jnp.broadcast_to(w[None, :], (B, C)).reshape(N)
    ub = jnp.broadcast_to(u[None, :], (B, C)).reshape(N)

    R0 = (N + 127) // 128
    if R0 <= 8:
        rr = 8
    elif R0 <= 16:
        rr = 16
    else:
        rr = 32
    R = _round_up(R0, rr)
    Np = R * 128
    out_dtype = jnp.bfloat16 if rr % 16 == 0 else jnp.float32
    out_bytes = 2 if out_dtype == jnp.bfloat16 else 4

    # VMEM-aware time tile: k + v + y blocks, double-buffered.
    per_t = rr * 128 * 2 * (4 + 4 + out_bytes)
    tt = min(256, max(8, (_vmem_limit() // 3) // per_t))
    tt = max(8, (tt // 8) * 8)
    tt = min(tt, _round_up(T, 8))
    Tp = _round_up(T, tt)

    def pack(x):                       # (T, B, C) -> (Tp, R, 128)
        x2 = x.reshape(T, N)
        x2 = jnp.pad(x2, ((0, Tp - T), (0, Np - N)))
        return x2.reshape(Tp, R, 128)

    kp = pack(k)
    vp = pack(v)
    wp = jnp.pad(wb, (0, Np - N)).reshape(R, 128)
    up = jnp.pad(ub, (0, Np - N)).reshape(R, 128)

    # NOTE: padded tail timesteps are processed (outputs are sliced away); the
    # final aa/bb/pp scratch state is *not* valid for streaming reuse.
    y = pl.pallas_call(
        _wkv_kernel,
        out_shape=jax.ShapeDtypeStruct((Tp, R, 128), out_dtype),
        grid=(R // rr, Tp // tt),
        in_specs=[pl.BlockSpec((rr, 128), lambda ir, it: (ir, 0)),
                  pl.BlockSpec((rr, 128), lambda ir, it: (ir, 0)),
                  pl.BlockSpec((tt, rr, 128), lambda ir, it: (it, ir, 0)),
                  pl.BlockSpec((tt, rr, 128), lambda ir, it: (it, ir, 0))],
        out_specs=pl.BlockSpec((tt, rr, 128), lambda ir, it: (it, ir, 0)),
        scratch_shapes=[pltpu.VMEM((rr, 128), jnp.float32),
                        pltpu.VMEM((rr, 128), jnp.float32),
                        pltpu.VMEM((rr, 128), jnp.float32)],
        compiler_params=pltpu.CompilerParams(
            dimension_semantics=("parallel", "arbitrary"),
            vmem_limit_bytes=_vmem_limit()),
    )(wp, up, kp, vp)
    return y.reshape(Tp, Np)[:T, :N].reshape(T, B, C)


# ----------------------------------------------------------------------------
# Fused TimeMix kernels (LayerNorm fused in; t==0 rows of the shift restored
# exactly via a per-row mask, since LN(0-row) == beta but shift(LN(x)) == 0).
# ----------------------------------------------------------------------------

def _tm_proj_kernel(x_ref, xx_ref, m0_ref, g_ref, b_ref,
                    mk_ref, mv_ref, mr_ref,
                    kw_ref, vw_ref, rw_ref, k_ref, v_ref, r_ref):
    g = g_ref[...]
    b = b_ref[...]
    xn = _ln_rows(x_ref[...], g, b)
    xxn = _ln_rows(xx_ref[...], g, b) * m0_ref[...]
    mk, mv, mr = mk_ref[...], mv_ref[...], mr_ref[...]
    xk = (xn * mk + xxn * (1.0 - mk)).astype(jnp.bfloat16)
    xv = (xn * mv + xxn * (1.0 - mv)).astype(jnp.bfloat16)
    xr = (xn * mr + xxn * (1.0 - mr)).astype(jnp.bfloat16)
    k_ref[...] = jnp.dot(xk, kw_ref[...], preferred_element_type=jnp.float32)
    v_ref[...] = jnp.dot(xv, vw_ref[...], preferred_element_type=jnp.float32)
    r_ref[...] = jnp.dot(xr, rw_ref[...],
                         preferred_element_type=jnp.float32).astype(r_ref.dtype)


def tm_proj(x2, xx2, mask, ln_g, ln_b, p):
    """Fused LN + time-mix interpolation + key/value/receptance matmuls."""
    M, C = x2.shape
    kw, vw, rw = p["key_w"], p["value_w"], p["receptance_w"]   # bf16 (C, C)
    fixed = _weight_buffers() * 3 * C * C * 2
    tm = _pick_row_tile(M, 80 * C, fixed)
    Mp = _round_up(M, tm)
    row = pl.BlockSpec((tm, C), lambda i: (i, 0))
    msk = pl.BlockSpec((tm, 1), lambda i: (i, 0))
    vec = _const_spec((1, C))
    wsp = _const_spec((C, C))

    k, v, r = pl.pallas_call(
        _tm_proj_kernel,
        out_shape=(jax.ShapeDtypeStruct((Mp, C), jnp.float32),
                   jax.ShapeDtypeStruct((Mp, C), jnp.float32),
                   jax.ShapeDtypeStruct((Mp, C), jnp.bfloat16)),
        grid=(Mp // tm,),
        in_specs=[row, row, msk, vec, vec, vec, vec, vec, wsp, wsp, wsp],
        out_specs=(row, row, row),
        compiler_params=pltpu.CompilerParams(
            dimension_semantics=("parallel",),
            vmem_limit_bytes=_vmem_limit()),
    )(_pad_rows(x2, Mp), _pad_rows(xx2, Mp), _pad_rows(mask, Mp),
      ln_g.reshape(1, C).astype(jnp.float32),
      ln_b.reshape(1, C).astype(jnp.float32),
      p["time_mix_k"].reshape(1, C), p["time_mix_v"].reshape(1, C),
      p["time_mix_r"].reshape(1, C), kw, vw, rw)
    return k[:M], v[:M], r[:M]


def _tm_out_kernel(r_ref, y_ref, res_ref, ow_ref, o_ref):
    r = r_ref[...].astype(jnp.float32)
    y = y_ref[...].astype(jnp.float32)
    rwkv = (jax.nn.sigmoid(r) * y).astype(jnp.bfloat16)
    o_ref[...] = res_ref[...] + jnp.dot(rwkv, ow_ref[...],
                                        preferred_element_type=jnp.float32)


def tm_out(r2, y2, res2, output_w):
    """residual + (sigmoid(r) * wkv) @ W_out, fused."""
    M, C = r2.shape
    fixed = _weight_buffers() * C * C * 2
    tm = _pick_row_tile(M, 48 * C, fixed)
    Mp = _round_up(M, tm)
    row = pl.BlockSpec((tm, C), lambda i: (i, 0))
    out = pl.pallas_call(
        _tm_out_kernel,
        out_shape=jax.ShapeDtypeStruct((Mp, C), jnp.float32),
        grid=(Mp // tm,),
        in_specs=[row, row, row, _const_spec((C, C))],
        out_specs=row,
        compiler_params=pltpu.CompilerParams(
            dimension_semantics=("parallel",),
            vmem_limit_bytes=_vmem_limit()),
    )(_pad_rows(r2, Mp), _pad_rows(y2, Mp), _pad_rows(res2, Mp), output_w)
    return out[:M]


# ----------------------------------------------------------------------------
# Fused ChannelMix kernel (LN -> mix -> key -> relu^2 -> value -> gate -> +res)
# ----------------------------------------------------------------------------

def _cm_kernel(x_ref, xx_ref, m0_ref, g_ref, b_ref, mk_ref, mr_ref,
               kw_ref, vw_ref, rw_ref, o_ref):
    g = g_ref[...]
    b = b_ref[...]
    x = x_ref[...]                                # raw residual, f32
    xn = _ln_rows(x, g, b)
    xxn = _ln_rows(xx_ref[...], g, b) * m0_ref[...]
    mk, mr = mk_ref[...], mr_ref[...]
    xk = (xn * mk + xxn * (1.0 - mk)).astype(jnp.bfloat16)
    xr = (xn * mr + xxn * (1.0 - mr)).astype(jnp.bfloat16)
    h = jnp.dot(xk, kw_ref[...], preferred_element_type=jnp.float32)
    h = jnp.square(jnp.maximum(h, 0.0)).astype(jnp.bfloat16)   # relu()^2 in VMEM
    kv = jnp.dot(h, vw_ref[...], preferred_element_type=jnp.float32)
    rgate = jax.nn.sigmoid(jnp.dot(xr, rw_ref[...],
                                   preferred_element_type=jnp.float32))
    o_ref[...] = x + rgate * kv


def channel_mix(x2, xx2, mask, ln_g, ln_b, p):
    M, C = x2.shape
    kw = p["key_w"]           # (C, 4C) bf16
    vw = p["value_w"]         # (4C, C) bf16
    rw = p["receptance_w"]    # (C, C)  bf16
    H = kw.shape[1]
    # TODO(synk): for very large C on v7x, tile the 4C hidden dim (accumulate kv
    # over column chunks of key_w / row chunks of value_w) instead of holding
    # the full weights + (tm, 4C) intermediate in VMEM.
    fixed = _weight_buffers() * (C * H + H * C + C * C) * 2
    tm = _pick_row_tile(M, 48 * C + 8 * H, fixed)
    Mp = _round_up(M, tm)
    row = pl.BlockSpec((tm, C), lambda i: (i, 0))
    msk = pl.BlockSpec((tm, 1), lambda i: (i, 0))
    vec = _const_spec((1, C))

    out = pl.pallas_call(
        _cm_kernel,
        out_shape=jax.ShapeDtypeStruct((Mp, C), jnp.float32),
        grid=(Mp // tm,),
        in_specs=[row, row, msk, vec, vec, vec, vec,
                  _const_spec((C, H)), _const_spec((H, C)), _const_spec((C, C))],
        out_specs=row,
        compiler_params=pltpu.CompilerParams(
            dimension_semantics=("parallel",),
            vmem_limit_bytes=_vmem_limit()),
    )(_pad_rows(x2, Mp), _pad_rows(xx2, Mp), _pad_rows(mask, Mp),
      ln_g.reshape(1, C).astype(jnp.float32),
      ln_b.reshape(1, C).astype(jnp.float32),
      p["time_mix_k"].reshape(1, C), p["time_mix_r"].reshape(1, C),
      kw, vw, rw)
    return out[:M]


# ----------------------------------------------------------------------------
# Model glue (hidden state kept in (T, B, C) layout, flattened to (T*B, C))
# ----------------------------------------------------------------------------

def time_shift(x):
    # nn.ZeroPad2d((0, 0, 1, -1)) along T (leading axis here).
    # TODO(synk): the shift is still a separate XLA pad of the raw residual; a
    # halo-style BlockSpec along T would fuse it away entirely.
    return jnp.pad(x, ((1, 0), (0, 0), (0, 0)))[:-1]


def time_mix_fwd(x, ln_g, ln_b, p, t0_mask):
    T, B, C = x.shape
    M = T * B
    xx = time_shift(x)
    k, v, r = tm_proj(x.reshape(M, C), xx.reshape(M, C), t0_mask, ln_g, ln_b, p)
    y = wkv(p["time_decay"], p["time_first"],
            k.reshape(T, B, C), v.reshape(T, B, C))
    out = tm_out(r, y.reshape(M, C), x.reshape(M, C), p["output_w"])
    return out.reshape(T, B, C)


def channel_mix_fwd(x, ln_g, ln_b, p, t0_mask):
    T, B, C = x.shape
    M = T * B
    xx = time_shift(x)
    out = channel_mix(x.reshape(M, C), xx.reshape(M, C), t0_mask, ln_g, ln_b, p)
    return out.reshape(T, B, C)


def block_fwd(x, bp, t0_mask, layer_id):
    if layer_id == 0:
        x = layernorm(x, bp["ln0_g"], bp["ln0_b"])
    # TODO(synk): 'RWKV-ffnPre' model_type (ffnPre on layer 0) not wired up;
    # standard 'RWKV' path only (matches RWKV_HEAD_QK_DIM == 0 config).
    x = time_mix_fwd(x, bp["ln1_g"], bp["ln1_b"], bp["att"], t0_mask)
    x = channel_mix_fwd(x, bp["ln2_g"], bp["ln2_b"], bp["ffn"], t0_mask)
    return x


def rwkv_gpt_forward(idx, params, vocab_size=None):
    B, T = idx.shape
    x = jnp.take(params["emb"], idx, axis=0)           # (B, T, C) gather (glue)
    x = jnp.transpose(x, (1, 0, 2))                    # -> (T, B, C)
    C = x.shape[-1]
    M = T * B
    # rows with t == 0 (first B rows in (T*B) order): shifted-in rows are zero.
    t0_mask = (jnp.arange(M, dtype=jnp.int32) >= B).astype(jnp.float32)
    t0_mask = t0_mask.reshape(M, 1)

    for i, bp in enumerate(params["blocks"]):
        x = block_fwd(x, bp, t0_mask, i)

    xb = layernorm(x, params["ln_out_g"], params["ln_out_b"],
                   out_dtype=jnp.bfloat16)
    V = vocab_size if vocab_size is not None else params["head_w"].shape[1]
    logits = matmul(xb.reshape(M, C), params["head_w"])[:, :V]
    return jnp.transpose(logits.reshape(T, B, V), (1, 0, 2))   # (B, T, V)


# ----------------------------------------------------------------------------
# Deterministic parameter init (shapes follow the PyTorch __init__)
# ----------------------------------------------------------------------------

def _lin_w(key, fan_in, fan_out):
    # stored as (in, out) == PyTorch weight.T, so forward is x @ W; bf16 for MXU.
    w = (jax.random.normal(key, (fan_in, fan_out), jnp.float32)
         * (1.0 / math.sqrt(fan_in)))
    return w.astype(jnp.bfloat16)


def init_params(key, vocab_size, n_layer, n_embd):
    C = n_embd
    keys = jax.random.split(key, 2 + n_layer)
    head_w = _lin_w(keys[1], C, vocab_size)
    # Pre-pad + pre-cast the head weight once (avoids per-call jnp.pad of the
    # big (C, V) weight inside the forward).
    Kp = _round_up(C, 128)
    Vp = _round_up(vocab_size, 512)
    head_w = jnp.pad(head_w, ((0, Kp - C), (0, Vp - vocab_size)))

    params = {
        "emb": jax.random.normal(keys[0], (vocab_size, C), jnp.float32) * 0.02,
        "ln_out_g": jnp.ones((C,), jnp.float32),
        "ln_out_b": jnp.zeros((C,), jnp.float32),
        "head_w": head_w,
        "blocks": [],
    }
    for i in range(n_layer):
        bk = jax.random.split(keys[2 + i], 16)
        att = {
            "time_decay": jax.random.normal(bk[0], (C,), jnp.float32) * 0.5,
            "time_first": jnp.full((C,), math.log(0.3), jnp.float32)
                          + jax.random.normal(bk[1], (C,), jnp.float32) * 0.1,
            "time_mix_k": jax.random.uniform(bk[2], (1, 1, C), jnp.float32),
            "time_mix_v": jax.random.uniform(bk[3], (1, 1, C), jnp.float32),
            "time_mix_r": jax.random.uniform(bk[4], (1, 1, C), jnp.float32),
            "key_w": _lin_w(bk[5], C, C),
            "value_w": _lin_w(bk[6], C, C),
            "receptance_w": _lin_w(bk[7], C, C),
            "output_w": _lin_w(bk[8], C, C),
        }
        ffn = {
            "time_mix_k": jax.random.uniform(bk[9], (1, 1, C), jnp.float32),
            "time_mix_r": jax.random.uniform(bk[10], (1, 1, C), jnp.float32),
            "key_w": _lin_w(bk[11], C, 4 * C),
            "receptance_w": _lin_w(bk[12], C, C),
            "value_w": _lin_w(bk[13], 4 * C, C),
        }
        blk = {
            "ln1_g": jnp.ones((C,), jnp.float32), "ln1_b": jnp.zeros((C,), jnp.float32),
            "ln2_g": jnp.ones((C,), jnp.float32), "ln2_b": jnp.zeros((C,), jnp.float32),
            "att": att, "ffn": ffn,
        }
        if i == 0:
            blk["ln0_g"] = jnp.ones((C,), jnp.float32)
            blk["ln0_b"] = jnp.zeros((C,), jnp.float32)
        params["blocks"].append(blk)
    return params


# ----------------------------------------------------------------------------

if __name__ == "__main__":
    vocab_size = 64
    n_layer = 2
    n_embd = 32
    ctx_len = 16
    B, T = 2, 8
    assert T <= ctx_len

    # Run the feature probe / VMEM query eagerly (outside any jit trace).
    _buffered_single_ok()
    _vmem_limit()

    key = jax.random.PRNGKey(0)
    k_params, k_idx = jax.random.split(key)
    params = init_params(k_params, vocab_size, n_layer, n_embd)
    idx = jax.random.randint(k_idx, (B, T), 0, vocab_size, dtype=jnp.int32)

    fwd = jax.jit(functools.partial(rwkv_gpt_forward, vocab_size=vocab_size))
    logits = fwd(idx, params)
    jax.block_until_ready(logits)

    assert logits.shape == (B, T, vocab_size)
    assert bool(jnp.all(jnp.isfinite(logits)))
    print("KERNEL_OK")
</pallas_src>

<mosaic_0001>
module attributes {stable_mosaic.version = 11 : i64} {
  func.func @_probe_kernel(%arg0: i32, %arg1: memref<8x128xf32, #tpu.memory_space<vmem>>, %arg2: memref<8x128xf32, #tpu.memory_space<vmem>>) attributes {dimension_semantics = [#tpu.dimension_semantics<arbitrary>], iteration_bounds = array<i64: 2>, scalar_prefetch = 0 : i64, scratch_operands = 0 : i64, tpu.core_type = #tpu.core_type<tc>, window_params = [{pipeline_mode = #tpu.pipeline_mode<synchronous>, transform_indices = @transform_0, window_bounds = array<i64: 8, 128>}, {pipeline_mode = #tpu.pipeline_mode<synchronous>, transform_indices = @transform_1, window_bounds = array<i64: 8, 128>}]} {
    %c0 = arith.constant 0 : index
    %c0_0 = arith.constant 0 : index
    %0 = vector.load %arg1[%c0, %c0_0] : memref<8x128xf32, #tpu.memory_space<vmem>>, vector<8x128xf32>
    %cst = arith.constant 2.000000e+00 : f32
    %1 = vector.broadcast %cst : f32 to vector<8x128xf32>
    %2 = arith.mulf %0, %1 : vector<8x128xf32>
    %c0_1 = arith.constant 0 : index
    %c0_2 = arith.constant 0 : index
    %3 = vector.load %arg2[%c0_1, %c0_2] : memref<8x128xf32, #tpu.memory_space<vmem>>, vector<8x128xf32>
    tpu.vector_store %arg2[%c0_1, %c0_2], %2 {strides = array<i32>} : memref<8x128xf32, #tpu.memory_space<vmem>>, vector<8x128xf32>,
    return
  }
  func.func @transform_0(%arg0: i32) -> (i32, i32) {
    %c0_i32 = arith.constant 0 : i32
    %c0_i32_0 = arith.constant 0 : i32
    %c0_i32_1 = arith.constant 0 : i32
    return %c0_i32, %c0_i32_0 : i32, i32
  }
  func.func @transform_1(%arg0: i32) -> (i32, i32) {
    %c0_i32 = arith.constant 0 : i32
    %c0_i32_0 = arith.constant 0 : i32
    %c0_i32_1 = arith.constant 0 : i32
    return %c0_i32, %c0_i32_0 : i32, i32
  }
}

module attributes {stable_mosaic.version = 11 : i64} {
  func.func @_ln_kernel(%arg0: i32, %arg1: memref<16x32xf32, #tpu.memory_space<vmem>>, %arg2: memref<1x32xf32, #tpu.memory_space<vmem>>, %arg3: memref<1x32xf32, #tpu.memory_space<vmem>>, %arg4: memref<16x32xf32, #tpu.memory_space<vmem>>) attributes {dimension_semantics = [#tpu.dimension_semantics<parallel>], iteration_bounds = array<i64: 1>, scalar_prefetch = 0 : i64, scratch_operands = 0 : i64, tpu.core_type = #tpu.core_type<tc>, window_params = [{transform_indices = @transform_0, window_bounds = array<i64: 16, 32>}, {pipeline_mode = #tpu.pipeline_mode<synchronous>, transform_indices = @transform_1, window_bounds = array<i64: 1, 32>}, {pipeline_mode = #tpu.pipeline_mode<synchronous>, transform_indices = @transform_2, window_bounds = array<i64: 1, 32>}, {transform_indices = @transform_3, window_bounds = array<i64: 16, 32>}]} {
    %c0 = arith.constant 0 : index
    %c0_0 = arith.constant 0 : index
    %0 = vector.load %arg1[%c0, %c0_0] : memref<16x32xf32, #tpu.memory_space<vmem>>, vector<16x32xf32>
    %c0_1 = arith.constant 0 : index
    %c0_2 = arith.constant 0 : index
    %1 = vector.load %arg2[%c0_1, %c0_2] : memref<1x32xf32, #tpu.memory_space<vmem>>, vector<1x32xf32>
    %c0_3 = arith.constant 0 : index
    %c0_4 = arith.constant 0 : index
    %2 = vector.load %arg3[%c0_3, %c0_4] : memref<1x32xf32, #tpu.memory_space<vmem>>, vector<1x32xf32>
    %cst = arith.constant dense<0.000000e+00> : vector<16xf32>
    %3 = vector.multi_reduction <add>, %0, %cst [1] : vector<16x32xf32> to vector<16xf32>
    %4 = vector.shape_cast %3 : vector<16xf32> to vector<16x1xf32>
    %cst_5 = arith.constant 3.200000e+01 : f32
    %5 = vector.broadcast %cst_5 : f32 to vector<16x1xf32>
    %6 = arith.divf %4, %5 : vector<16x1xf32>
    %7 = vector.broadcast %6 : vector<16x1xf32> to vector<16x32xf32>
    %8 = arith.subf %0, %7 : vector<16x32xf32>
    %9 = arith.mulf %8, %8 : vector<16x32xf32>
    %cst_6 = arith.constant dense<0.000000e+00> : vector<16xf32>
    %10 = vector.multi_reduction <add>, %9, %cst_6 [1] : vector<16x32xf32> to vector<16xf32>
    %11 = vector.shape_cast %10 : vector<16xf32> to vector<16x1xf32>
    %cst_7 = arith.constant 3.200000e+01 : f32
    %12 = vector.broadcast %cst_7 : f32 to vector<16x1xf32>
    %13 = arith.divf %11, %12 : vector<16x1xf32>
    %cst_8 = arith.constant 9.99999974E-6 : f32
    %14 = vector.broadcast %cst_8 : f32 to vector<16x1xf32>
    %15 = arith.addf %13, %14 : vector<16x1xf32>
    %16 = math.rsqrt %15 : vector<16x1xf32>
    %17 = vector.broadcast %16 : vector<16x1xf32> to vector<16x32xf32>
    %18 = arith.mulf %8, %17 : vector<16x32xf32>
    %19 = vector.broadcast %1 : vector<1x32xf32> to vector<16x32xf32>
    %20 = arith.mulf %18, %19 : vector<16x32xf32>
    %21 = vector.broadcast %2 : vector<1x32xf32> to vector<16x32xf32>
    %22 = arith.addf %20, %21 : vector<16x32xf32>
    %c0_9 = arith.constant 0 : index
    %c0_10 = arith.constant 0 : index
    %23 = vector.load %arg4[%c0_9, %c0_10] : memref<16x32xf32, #tpu.memory_space<vmem>>, vector<16x32xf32>
    tpu.vector_store %arg4[%c0_9, %c0_10], %22 {strides = array<i32>} : memref<16x32xf32, #tpu.memory_space<vmem>>, vector<16x32xf32>,
    return
  }
  func.func @transform_0(%arg0: i32) -> (i32, i32) {
    %c0_i32 = arith.constant 0 : i32
    %c0_i32_0 = arith.constant 0 : i32
    return %arg0, %c0_i32 : i32, i32
  }
  func.func @transform_1(%arg0: i32) -> (i32, i32) {
    %c0_i32 = arith.constant 0 : i32
    %c0_i32_0 = arith.constant 0 : i32
    %c0_i32_1 = arith.constant 0 : i32
    return %c0_i32, %c0_i32_0 : i32, i32
  }
  func.func @transform_2(%arg0: i32) -> (i32, i32) {
    %c0_i32 = arith.constant 0 : i32
    %c0_i32_0 = arith.constant 0 : i32
    %c0_i32_1 = arith.constant 0 : i32
    return %c0_i32, %c0_i32_0 : i32, i32
  }
  func.func @transform_3(%arg0: i32) -> (i32, i32) {
    %c0_i32 = arith.constant 0 : i32
    %c0_i32_0 = arith.constant 0 : i32
    return %arg0, %c0_i32 : i32, i32
  }
}

module attributes {stable_mosaic.version = 11 : i64} {
  func.func @_tm_proj_kernel(%arg0: i32, %arg1: memref<16x32xf32, #tpu.memory_space<vmem>>, %arg2: memref<16x32xf32, #tpu.memory_space<vmem>>, %arg3: memref<16x1xf32, #tpu.memory_space<vmem>>, %arg4: memref<1x32xf32, #tpu.memory_space<vmem>>, %arg5: memref<1x32xf32, #tpu.memory_space<vmem>>, %arg6: memref<1x32xf32, #tpu.memory_space<vmem>>, %arg7: memref<1x32xf32, #tpu.memory_space<vmem>>, %arg8: memref<1x32xf32, #tpu.memory_space<vmem>>, %arg9: memref<32x32xbf16, #tpu.memory_space<vmem>>, %arg10: memref<32x32xbf16, #tpu.memory_space<vmem>>, %arg11: memref<32x32xbf16, #tpu.memory_space<vmem>>, %arg12: memref<16x32xf32, #tpu.memory_space<vmem>>, %arg13: memref<16x32xf32, #tpu.memory_space<vmem>>, %arg14: memref<16x32xbf16, #tpu.memory_space<vmem>>) attributes {dimension_semantics = [#tpu.dimension_semantics<parallel>], iteration_bounds = array<i64: 1>, scalar_prefetch = 0 : i64, scratch_operands = 0 : i64, tpu.core_type = #tpu.core_type<tc>, window_params = [{transform_indices = @transform_0, window_bounds = array<i64: 16, 32>}, {transform_indices = @transform_1, window_bounds = array<i64: 16, 32>}, {transform_indices = @transform_2, window_bounds = array<i64: 16, 1>}, {pipeline_mode = #tpu.pipeline_mode<synchronous>, transform_indices = @transform_3, window_bounds = array<i64: 1, 32>}, {pipeline_mode = #tpu.pipeline_mode<synchronous>, transform_indices = @transform_4, window_bounds = array<i64: 1, 32>}, {pipeline_mode = #tpu.pipeline_mode<synchronous>, transform_indices = @transform_5, window_bounds = array<i64: 1, 32>}, {pipeline_mode = #tpu.pipeline_mode<synchronous>, transform_indices = @transform_6, window_bounds = array<i64: 1, 32>}, {pipeline_mode = #tpu.pipeline_mode<synchronous>, transform_indices = @transform_7, window_bounds = array<i64: 1, 32>}, {pipeline_mode = #tpu.pipeline_mode<synchronous>, transform_indices = @transform_8, window_bounds = array<i64: 32, 32>}, {pipeline_mode = #tpu.pipeline_mode<synchronous>, transform_indices = @transform_9, window_bounds = array<i64: 32, 32>}, {pipeline_mode = #tpu.pipeline_mode<synchronous>, transform_indices = @transform_10, window_bounds = array<i64: 32, 32>}, {transform_indices = @transform_11, window_bounds = array<i64: 16, 32>}, {transform_indices = @transform_12, window_bounds = array<i64: 16, 32>}, {transform_indices = @transform_13, window_bounds = array<i64: 16, 32>}]} {
    %c0 = arith.constant 0 : index
    %c0_0 = arith.constant 0 : index
    %0 = vector.load %arg4[%c0, %c0_0] : memref<1x32xf32, #tpu.memory_space<vmem>>, vector<1x32xf32>
    %c0_1 = arith.constant 0 : index
    %c0_2 = arith.constant 0 : index
    %1 = vector.load %arg5[%c0_1, %c0_2] : memref<1x32xf32, #tpu.memory_space<vmem>>, vector<1x32xf32>
    %c0_3 = arith.constant 0 : index
    %c0_4 = arith.constant 0 : index
    %2 = vector.load %arg1[%c0_3, %c0_4] : memref<16x32xf32, #tpu.memory_space<vmem>>, vector<16x32xf32>
    %cst = arith.constant dense<0.000000e+00> : vector<16xf32>
    %3 = vector.multi_reduction <add>, %2, %cst [1] : vector<16x32xf32> to vector<16xf32>
    %4 = vector.shape_cast %3 : vector<16xf32> to vector<16x1xf32>
    %cst_5 = arith.constant 3.200000e+01 : f32
    %5 = vector.broadcast %cst_5 : f32 to vector<16x1xf32>
    %6 = arith.divf %4, %5 : vector<16x1xf32>
    %7 = vector.broadcast %6 : vector<16x1xf32> to vector<16x32xf32>
    %8 = arith.subf %2, %7 : vector<16x32xf32>
    %9 = arith.mulf %8, %8 : vector<16x32xf32>
    %cst_6 = arith.constant dense<0.000000e+00> : vector<16xf32>
    %10 = vector.multi_reduction <add>, %9, %cst_6 [1] : vector<16x32xf32> to vector<16xf32>
    %11 = vector.shape_cast %10 : vector<16xf32> to vector<16x1xf32>
    %cst_7 = arith.constant 3.200000e+01 : f32
    %12 = vector.broadcast %cst_7 : f32 to vector<16x1xf32>
    %13 = arith.divf %11, %12 : vector<16x1xf32>
    %cst_8 = arith.constant 9.99999974E-6 : f32
    %14 = vector.broadcast %cst_8 : f32 to vector<16x1xf32>
    %15 = arith.addf %13, %14 : vector<16x1xf32>
    %16 = math.rsqrt %15 : vector<16x1xf32>
    %17 = vector.broadcast %16 : vector<16x1xf32> to vector<16x32xf32>
    %18 = arith.mulf %8, %17 : vector<16x32xf32>
    %19 = vector.broadcast %0 : vector<1x32xf32> to vector<16x32xf32>
    %20 = arith.mulf %18, %19 : vector<16x32xf32>
    %21 = vector.broadcast %1 : vector<1x32xf32> to vector<16x32xf32>
    %22 = arith.addf %20, %21 : vector<16x32xf32>
    %c0_9 = arith.constant 0 : index
    %c0_10 = arith.constant 0 : index
    %23 = vector.load %arg2[%c0_9, %c0_10] : memref<16x32xf32, #tpu.memory_space<vmem>>, vector<16x32xf32>
    %cst_11 = arith.constant dense<0.000000e+00> : vector<16xf32>
    %24 = vector.multi_reduction <add>, %23, %cst_11 [1] : vector<16x32xf32> to vector<16xf32>
    %25 = vector.shape_cast %24 : vector<16xf32> to vector<16x1xf32>
    %cst_12 = arith.constant 3.200000e+01 : f32
    %26 = vector.broadcast %cst_12 : f32 to vector<16x1xf32>
    %27 = arith.divf %25, %26 : vector<16x1xf32>
    %28 = vector.broadcast %27 : vector<16x1xf32> to vector<16x32xf32>
    %29 = arith.subf %23, %28 : vector<16x32xf32>
    %30 = arith.mulf %29, %29 : vector<16x32xf32>
    %cst_13 = arith.constant dense<0.000000e+00> : vector<16xf32>
    %31 = vector.multi_reduction <add>, %30, %cst_13 [1] : vector<16x32xf32> to vector<16xf32>
    %32 = vector.shape_cast %31 : vector<16xf32> to vector<16x1xf32>
    %cst_14 = arith.constant 3.200000e+01 : f32
    %33 = vector.broadcast %cst_14 : f32 to vector<16x1xf32>
    %34 = arith.divf %32, %33 : vector<16x1xf32>
    %cst_15 = arith.constant 9.99999974E-6 : f32
    %35 = vector.broadcast %cst_15 : f32 to vector<16x1xf32>
    %36 = arith.addf %34, %35 : vector<16x1xf32>
    %37 = math.rsqrt %36 : vector<16x1xf32>
    %38 = vector.broadcast %37 : vector<16x1xf32> to vector<16x32xf32>
    %39 = arith.mulf %29, %38 : vector<16x32xf32>
    %40 = vector.broadcast %0 : vector<1x32xf32> to vector<16x32xf32>
    %41 = arith.mulf %39, %40 : vector<16x32xf32>
    %42 = vector.broadcast %1 : vector<1x32xf32> to vector<16x32xf32>
    %43 = arith.addf %41, %42 : vector<16x32xf32>
    %c0_16 = arith.constant 0 : index
    %c0_17 = arith.constant 0 : index
    %44 = vector.load %arg3[%c0_16, %c0_17] : memref<16x1xf32, #tpu.memory_space<vmem>>, vector<16x1xf32>
    %45 = vector.broadcast %44 : vector<16x1xf32> to vector<16x32xf32>
    %46 = arith.mulf %43, %45 : vector<16x32xf32>
    %c0_18 = arith.constant 0 : index
    %c0_19 = arith.constant 0 : index
    %47 = vector.load %arg6[%c0_18, %c0_19] : memref<1x32xf32, #tpu.memory_space<vmem>>, vector<1x32xf32>
    %c0_20 = arith.constant 0 : index
    %c0_21 = arith.constant 0 : index
    %48 = vector.load %arg7[%c0_20, %c0_21] : memref<1x32xf32, #tpu.memory_space<vmem>>, vector<1x32xf32>
    %c0_22 = arith.constant 0 : index
    %c0_23 = arith.constant 0 : index
    %49 = vector.load %arg8[%c0_22, %c0_23] : memref<1x32xf32, #tpu.memory_space<vmem>>, vector<1x32xf32>
    %50 = vector.broadcast %47 : vector<1x32xf32> to vector<16x32xf32>
    %51 = arith.mulf %22, %50 : vector<16x32xf32>
    %cst_24 = arith.constant 1.000000e+00 : f32
    %52 = vector.broadcast %cst_24 : f32 to vector<1x32xf32>
    %53 = arith.subf %52, %47 : vector<1x32xf32>
    %54 = vector.broadcast %53 : vector<1x32xf32> to vector<16x32xf32>
    %55 = arith.mulf %46, %54 : vector<16x32xf32>
    %56 = arith.addf %51, %55 : vector<16x32xf32>
    %57 = arith.truncf %56 : vector<16x32xf32> to vector<16x32xbf16>
    %58 = vector.broadcast %48 : vector<1x32xf32> to vector<16x32xf32>
    %59 = arith.mulf %22, %58 : vector<16x32xf32>
    %cst_25 = arith.constant 1.000000e+00 : f32
    %60 = vector.broadcast %cst_25 : f32 to vector<1x32xf32>
    %61 = arith.subf %60, %48 : vector<1x32xf32>
    %62 = vector.broadcast %61 : vector<1x32xf32> to vector<16x32xf32>
    %63 = arith.mulf %46, %62 : vector<16x32xf32>
    %64 = arith.addf %59, %63 : vector<16x32xf32>
    %65 = arith.truncf %64 : vector<16x32xf32> to vector<16x32xbf16>
    %66 = vector.broadcast %49 : vector<1x32xf32> to vector<16x32xf32>
    %67 = arith.mulf %22, %66 : vector<16x32xf32>
    %cst_26 = arith.constant 1.000000e+00 : f32
    %68 = vector.broadcast %cst_26 : f32 to vector<1x32xf32>
    %69 = arith.subf %68, %49 : vector<1x32xf32>
    %70 = vector.broadcast %69 : vector<1x32xf32> to vector<16x32xf32>
    %71 = arith.mulf %46, %70 : vector<16x32xf32>
    %72 = arith.addf %67, %71 : vector<16x32xf32>
    %73 = arith.truncf %72 : vector<16x32xf32> to vector<16x32xbf16>
    %c0_27 = arith.constant 0 : index
    %c0_28 = arith.constant 0 : index
    %74 = vector.load %arg9[%c0_27, %c0_28] : memref<32x32xbf16, #tpu.memory_space<vmem>>, vector<32x32xbf16>
    %cst_29 = arith.constant dense<0.000000e+00> : vector<16x32xf32>
    %75 = tpu.matmul %57, %74, %cst_29 {dimension_numbers = #tpu.dot_dimension_numbers<[1], [0], [0], [1], [0, 0, 1, 1], [], []>} : vector<16x32xbf16>, vector<32x32xbf16>, vector<16x32xf32> -> vector<16x32xf32>
    %c0_30 = arith.constant 0 : index
    %c0_31 = arith.constant 0 : index
    %76 = vector.load %arg12[%c0_30, %c0_31] : memref<16x32xf32, #tpu.memory_space<vmem>>, vector<16x32xf32>
    tpu.vector_store %arg12[%c0_30, %c0_31], %75 {strides = array<i32>} : memref<16x32xf32, #tpu.memory_space<vmem>>, vector<16x32xf32>,
    %c0_32 = arith.constant 0 : index
    %c0_33 = arith.constant 0 : index
    %77 = vector.load %arg10[%c0_32, %c0_33] : memref<32x32xbf16, #tpu.memory_space<vmem>>, vector<32x32xbf16>
    %cst_34 = arith.constant dense<0.000000e+00> : vector<16x32xf32>
    %78 = tpu.matmul %65, %77, %cst_34 {dimension_numbers = #tpu.dot_dimension_numbers<[1], [0], [0], [1], [0, 0, 1, 1], [], []>} : vector<16x32xbf16>, vector<32x32xbf16>, vector<16x32xf32> -> vector<16x32xf32>
    %c0_35 = arith.constant 0 : index
    %c0_36 = arith.constant 0 : index
    %79 = vector.load %arg13[%c0_35, %c0_36] : memref<16x32xf32, #tpu.memory_space<vmem>>, vector<16x32xf32>
    tpu.vector_store %arg13[%c0_35, %c0_36], %78 {strides = array<i32>} : memref<16x32xf32, #tpu.memory_space<vmem>>, vector<16x32xf32>,
    %c0_37 = arith.constant 0 : index
    %c0_38 = arith.constant 0 : index
    %80 = vector.load %arg11[%c0_37, %c0_38] : memref<32x32xbf16, #tpu.memory_space<vmem>>, vector<32x32xbf16>
    %cst_39 = arith.constant dense<0.000000e+00> : vector<16x32xf32>
    %81 = tpu.matmul %73, %80, %cst_39 {dimension_numbers = #tpu.dot_dimension_numbers<[1], [0], [0], [1], [0, 0, 1, 1], [], []>} : vector<16x32xbf16>, vector<32x32xbf16>, vector<16x32xf32> -> vector<16x32xf32>
    %82 = arith.truncf %81 : vector<16x32xf32> to vector<16x32xbf16>
    %c0_40 = arith.constant 0 : index
    %c0_41 = arith.constant 0 : index
    %83 = vector.load %arg14[%c0_40, %c0_41] : memref<16x32xbf16, #tpu.memory_space<vmem>>, vector<16x32xbf16>
    tpu.vector_store %arg14[%c0_40, %c0_41], %82 {strides = array<i32>} : memref<16x32xbf16, #tpu.memory_space<vmem>>, vector<16x32xbf16>,
    return
  }
  func.func @transform_0(%arg0: i32) -> (i32, i32) {
    %c0_i32 = arith.constant 0 : i32
    %c0_i32_0 = arith.constant 0 : i32
    return %arg0, %c0_i32 : i32, i32
  }
  func.func @transform_1(%arg0: i32) -> (i32, i32) {
    %c0_i32 = arith.constant 0 : i32
    %c0_i32_0 = arith.constant 0 : i32
    return %arg0, %c0_i32 : i32, i32
  }
  func.func @transform_2(%arg0: i32) -> (i32, i32) {
    %c0_i32 = arith.constant 0 : i32
    %c0_i32_0 = arith.constant 0 : i32
    return %arg0, %c0_i32 : i32, i32
  }
  func.func @transform_3(%arg0: i32) -> (i32, i32) {
    %c0_i32 = arith.constant 0 : i32
    %c0_i32_0 = arith.constant 0 : i32
    %c0_i32_1 = arith.constant 0 : i32
    return %c0_i32, %c0_i32_0 : i32, i32
  }
  func.func @transform_4(%arg0: i32) -> (i32, i32) {
    %c0_i32 = arith.constant 0 : i32
    %c0_i32_0 = arith.constant 0 : i32
    %c0_i32_1 = arith.constant 0 : i32
    return %c0_i32, %c0_i32_0 : i32, i32
  }
  func.func @transform_5(%arg0: i32) -> (i32, i32) {
    %c0_i32 = arith.constant 0 : i32
    %c0_i32_0 = arith.constant 0 : i32
    %c0_i32_1 = arith.constant 0 : i32
    return %c0_i32, %c0_i32_0 : i32, i32
  }
  func.func @transform_6(%arg0: i32) -> (i32, i32) {
    %c0_i32 = arith.constant 0 : i32
    %c0_i32_0 = arith.constant 0 : i32
    %c0_i32_1 = arith.constant 0 : i32
    return %c0_i32, %c0_i32_0 : i32, i32
  }
  func.func @transform_7(%arg0: i32) -> (i32, i32) {
    %c0_i32 = arith.constant 0 : i32
    %c0_i32_0 = arith.constant 0 : i32
    %c0_i32_1 = arith.constant 0 : i32
    return %c0_i32, %c0_i32_0 : i32, i32
  }
  func.func @transform_8(%arg0: i32) -> (i32, i32) {
    %c0_i32 = arith.constant 0 : i32
    %c0_i32_0 = arith.constant 0 : i32
    %c0_i32_1 = arith.constant 0 : i32
    return %c0_i32, %c0_i32_0 : i32, i32
  }
  func.func @transform_9(%arg0: i32) -> (i32, i32) {
    %c0_i32 = arith.constant 0 : i32
    %c0_i32_0 = arith.constant 0 : i32
    %c0_i32_1 = arith.constant 0 : i32
    return %c0_i32, %c0_i32_0 : i32, i32
  }
  func.func @transform_10(%arg0: i32) -> (i32, i32) {
    %c0_i32 = arith.constant 0 : i32
    %c0_i32_0 = arith.constant 0 : i32
    %c0_i32_1 = arith.constant 0 : i32
    return %c0_i32, %c0_i32_0 : i32, i32
  }
  func.func @transform_11(%arg0: i32) -> (i32, i32) {
    %c0_i32 = arith.constant 0 : i32
    %c0_i32_0 = arith.constant 0 : i32
    return %arg0, %c0_i32 : i32, i32
  }
  func.func @transform_12(%arg0: i32) -> (i32, i32) {
    %c0_i32 = arith.constant 0 : i32
    %c0_i32_0 = arith.constant 0 : i32
    return %arg0, %c0_i32 : i32, i32
  }
  func.func @transform_13(%arg0: i32) -> (i32, i32) {
    %c0_i32 = arith.constant 0 : i32
    %c0_i32_0 = arith.constant 0 : i32
    return %arg0, %c0_i32 : i32, i32
  }
}

module attributes {stable_mosaic.version = 11 : i64} {
  func.func @_wkv_kernel(%arg0: i32, %arg1: i32, %arg2: memref<8x128xf32, #tpu.memory_space<vmem>>, %arg3: memref<8x128xf32, #tpu.memory_space<vmem>>, %arg4: memref<8x8x128xf32, #tpu.memory_space<vmem>>, %arg5: memref<8x8x128xf32, #tpu.memory_space<vmem>>, %arg6: memref<8x8x128xf32, #tpu.memory_space<vmem>>, %arg7: memref<8x128xf32, #tpu.memory_space<vmem>>, %arg8: memref<8x128xf32, #tpu.memory_space<vmem>>, %arg9: memref<8x128xf32, #tpu.memory_space<vmem>>) attributes {dimension_semantics = [#tpu.dimension_semantics<parallel>, #tpu.dimension_semantics<arbitrary>], iteration_bounds = array<i64: 1, 1>, scalar_prefetch = 0 : i64, scratch_operands = 3 : i64, tpu.core_type = #tpu.core_type<tc>, window_params = [{transform_indices = @transform_0, window_bounds = array<i64: 8, 128>}, {transform_indices = @transform_1, window_bounds = array<i64: 8, 128>}, {transform_indices = @transform_2, window_bounds = array<i64: 8, 8, 128>}, {transform_indices = @transform_3, window_bounds = array<i64: 8, 8, 128>}, {transform_indices = @transform_4, window_bounds = array<i64: 8, 8, 128>}]} {
    %c0_i32 = arith.constant 0 : i32
    %0 = arith.cmpi eq, %arg1, %c0_i32 : i32
    %1 = arith.extui %0 : i1 to i32
    %c0_i32_0 = arith.constant 0 : i32
    %2 = arith.cmpi ne, %1, %c0_i32_0 : i32
    scf.if %2 {
      %cst_72 = arith.constant 0.000000e+00 : f32
      %315 = vector.broadcast %cst_72 : f32 to vector<8x128xf32>
      %c0_73 = arith.constant 0 : index
      %c0_74 = arith.constant 0 : index
      %316 = vector.load %arg7[%c0_73, %c0_74] : memref<8x128xf32, #tpu.memory_space<vmem>>, vector<8x128xf32>
      tpu.vector_store %arg7[%c0_73, %c0_74], %315 {strides = array<i32>} : memref<8x128xf32, #tpu.memory_space<vmem>>, vector<8x128xf32>,
      %cst_75 = arith.constant 0.000000e+00 : f32
      %317 = vector.broadcast %cst_75 : f32 to vector<8x128xf32>
      %c0_76 = arith.constant 0 : index
      %c0_77 = arith.constant 0 : index
      %318 = vector.load %arg8[%c0_76, %c0_77] : memref<8x128xf32, #tpu.memory_space<vmem>>, vector<8x128xf32>
      tpu.vector_store %arg8[%c0_76, %c0_77], %317 {strides = array<i32>} : memref<8x128xf32, #tpu.memory_space<vmem>>, vector<8x128xf32>,
      %cst_78 = arith.constant -9.99999968E+37 : f32
      %319 = vector.broadcast %cst_78 : f32 to vector<8x128xf32>
      %c0_79 = arith.constant 0 : index
      %c0_80 = arith.constant 0 : index
      %320 = vector.load %arg9[%c0_79, %c0_80] : memref<8x128xf32, #tpu.memory_space<vmem>>, vector<8x128xf32>
      tpu.vector_store %arg9[%c0_79, %c0_80], %319 {strides = array<i32>} : memref<8x128xf32, #tpu.memory_space<vmem>>, vector<8x128xf32>,
    } else {
    }
    %c0 = arith.constant 0 : index
    %c0_1 = arith.constant 0 : index
    %3 = vector.load %arg2[%c0, %c0_1] : memref<8x128xf32, #tpu.memory_space<vmem>>, vector<8x128xf32>
    %c0_2 = arith.constant 0 : index
    %c0_3 = arith.constant 0 : index
    %4 = vector.load %arg3[%c0_2, %c0_3] : memref<8x128xf32, #tpu.memory_space<vmem>>, vector<8x128xf32>
    %c0_4 = arith.constant 0 : index
    %c0_5 = arith.constant 0 : index
    %5 = vector.load %arg7[%c0_4, %c0_5] : memref<8x128xf32, #tpu.memory_space<vmem>>, vector<8x128xf32>
    %c0_6 = arith.constant 0 : index
    %c0_7 = arith.constant 0 : index
    %6 = vector.load %arg8[%c0_6, %c0_7] : memref<8x128xf32, #tpu.memory_space<vmem>>, vector<8x128xf32>
    %c0_8 = arith.constant 0 : index
    %c0_9 = arith.constant 0 : index
    %7 = vector.load %arg9[%c0_8, %c0_9] : memref<8x128xf32, #tpu.memory_space<vmem>>, vector<8x128xf32>
    %c0_i32_10 = arith.constant 0 : i32
    %8 = arith.index_cast %c0_i32_10 : i32 to index
    %c0_11 = arith.constant 0 : index
    %c0_12 = arith.constant 0 : index
    %9 = vector.load %arg4[%8, %c0_11, %c0_12] : memref<8x8x128xf32, #tpu.memory_space<vmem>>, vector<1x8x128xf32>
    %10 = vector.shape_cast %9 : vector<1x8x128xf32> to vector<8x128xf32>
    %11 = arith.index_cast %c0_i32_10 : i32 to index
    %c0_13 = arith.constant 0 : index
    %c0_14 = arith.constant 0 : index
    %12 = vector.load %arg5[%11, %c0_13, %c0_14] : memref<8x8x128xf32, #tpu.memory_space<vmem>>, vector<1x8x128xf32>
    %13 = vector.shape_cast %12 : vector<1x8x128xf32> to vector<8x128xf32>
    %14 = arith.addf %4, %10 : vector<8x128xf32>
    %15 = arith.maximumf %7, %14 : vector<8x128xf32>
    %16 = arith.subf %7, %15 : vector<8x128xf32>
    %17 = math.exp %16 : vector<8x128xf32>
    %18 = arith.subf %14, %15 : vector<8x128xf32>
    %19 = math.exp %18 : vector<8x128xf32>
    %20 = arith.mulf %17, %5 : vector<8x128xf32>
    %21 = arith.mulf %19, %13 : vector<8x128xf32>
    %22 = arith.addf %20, %21 : vector<8x128xf32>
    %23 = arith.mulf %17, %6 : vector<8x128xf32>
    %24 = arith.addf %23, %19 : vector<8x128xf32>
    %25 = tpu.reciprocal %24 {approx = true} : vector<8x128xf32> -> vector<8x128xf32>
    %26 = arith.mulf %24, %25 : vector<8x128xf32>
    %cst = arith.constant 2.000000e+00 : f32
    %27 = vector.broadcast %cst : f32 to vector<8x128xf32>
    %28 = arith.subf %27, %26 : vector<8x128xf32>
    %29 = arith.mulf %25, %28 : vector<8x128xf32>
    %30 = arith.mulf %22, %29 : vector<8x128xf32>
    %31 = arith.index_cast %c0_i32_10 : i32 to index
    %c0_15 = arith.constant 0 : index
    %c0_16 = arith.constant 0 : index
    %32 = vector.load %arg6[%31, %c0_15, %c0_16] : memref<8x8x128xf32, #tpu.memory_space<vmem>>, vector<1x8x128xf32>
    %33 = vector.shape_cast %32 : vector<1x8x128xf32> to vector<8x128xf32>
    %34 = vector.shape_cast %30 : vector<8x128xf32> to vector<1x8x128xf32>
    tpu.vector_store %arg6[%31, %c0_15, %c0_16], %34 {strides = array<i32>} : memref<8x8x128xf32, #tpu.memory_space<vmem>>, vector<1x8x128xf32>,
    %35 = arith.addf %7, %3 : vector<8x128xf32>
    %36 = arith.maximumf %35, %10 : vector<8x128xf32>
    %37 = arith.subf %35, %36 : vector<8x128xf32>
    %38 = math.exp %37 : vector<8x128xf32>
    %39 = arith.subf %10, %36 : vector<8x128xf32>
    %40 = math.exp %39 : vector<8x128xf32>
    %41 = arith.mulf %38, %5 : vector<8x128xf32>
    %42 = arith.mulf %40, %13 : vector<8x128xf32>
    %43 = arith.addf %41, %42 : vector<8x128xf32>
    %44 = arith.mulf %38, %6 : vector<8x128xf32>
    %45 = arith.addf %44, %40 : vector<8x128xf32>
    %c1_i32 = arith.constant 1 : i32
    %46 = arith.index_cast %c1_i32 : i32 to index
    %c0_17 = arith.constant 0 : index
    %c0_18 = arith.constant 0 : index
    %47 = vector.load %arg4[%46, %c0_17, %c0_18] : memref<8x8x128xf32, #tpu.memory_space<vmem>>, vector<1x8x128xf32>
    %48 = vector.shape_cast %47 : vector<1x8x128xf32> to vector<8x128xf32>
    %49 = arith.index_cast %c1_i32 : i32 to index
    %c0_19 = arith.constant 0 : index
    %c0_20 = arith.constant 0 : index
    %50 = vector.load %arg5[%49, %c0_19, %c0_20] : memref<8x8x128xf32, #tpu.memory_space<vmem>>, vector<1x8x128xf32>
    %51 = vector.shape_cast %50 : vector<1x8x128xf32> to vector<8x128xf32>
    %52 = arith.addf %4, %48 : vector<8x128xf32>
    %53 = arith.maximumf %36, %52 : vector<8x128xf32>
    %54 = arith.subf %36, %53 : vector<8x128xf32>
    %55 = math.exp %54 : vector<8x128xf32>
    %56 = arith.subf %52, %53 : vector<8x128xf32>
    %57 = math.exp %56 : vector<8x128xf32>
    %58 = arith.mulf %55, %43 : vector<8x128xf32>
    %59 = arith.mulf %57, %51 : vector<8x128xf32>
    %60 = arith.addf %58, %59 : vector<8x128xf32>
    %61 = arith.mulf %55, %45 : vector<8x128xf32>
    %62 = arith.addf %61, %57 : vector<8x128xf32>
    %63 = tpu.reciprocal %62 {approx = true} : vector<8x128xf32> -> vector<8x128xf32>
    %64 = arith.mulf %62, %63 : vector<8x128xf32>
    %cst_21 = arith.constant 2.000000e+00 : f32
    %65 = vector.broadcast %cst_21 : f32 to vector<8x128xf32>
    %66 = arith.subf %65, %64 : vector<8x128xf32>
    %67 = arith.mulf %63, %66 : vector<8x128xf32>
    %68 = arith.mulf %60, %67 : vector<8x128xf32>
    %69 = arith.index_cast %c1_i32 : i32 to index
    %c0_22 = arith.constant 0 : index
    %c0_23 = arith.constant 0 : index
    %70 = vector.load %arg6[%69, %c0_22, %c0_23] : memref<8x8x128xf32, #tpu.memory_space<vmem>>, vector<1x8x128xf32>
    %71 = vector.shape_cast %70 : vector<1x8x128xf32> to vector<8x128xf32>
    %72 = vector.shape_cast %68 : vector<8x128xf32> to vector<1x8x128xf32>
    tpu.vector_store %arg6[%69, %c0_22, %c0_23], %72 {strides = array<i32>} : memref<8x8x128xf32, #tpu.memory_space<vmem>>, vector<1x8x128xf32>,
    %73 = arith.addf %36, %3 : vector<8x128xf32>
    %74 = arith.maximumf %73, %48 : vector<8x128xf32>
    %75 = arith.subf %73, %74 : vector<8x128xf32>
    %76 = math.exp %75 : vector<8x128xf32>
    %77 = arith.subf %48, %74 : vector<8x128xf32>
    %78 = math.exp %77 : vector<8x128xf32>
    %79 = arith.mulf %76, %43 : vector<8x128xf32>
    %80 = arith.mulf %78, %51 : vector<8x128xf32>
    %81 = arith.addf %79, %80 : vector<8x128xf32>
    %82 = arith.mulf %76, %45 : vector<8x128xf32>
    %83 = arith.addf %82, %78 : vector<8x128xf32>
    %c2_i32 = arith.constant 2 : i32
    %84 = arith.index_cast %c2_i32 : i32 to index
    %c0_24 = arith.constant 0 : index
    %c0_25 = arith.constant 0 : index
    %85 = vector.load %arg4[%84, %c0_24, %c0_25] : memref<8x8x128xf32, #tpu.memory_space<vmem>>, vector<1x8x128xf32>
    %86 = vector.shape_cast %85 : vector<1x8x128xf32> to vector<8x128xf32>
    %87 = arith.index_cast %c2_i32 : i32 to index
    %c0_26 = arith.constant 0 : index
    %c0_27 = arith.constant 0 : index
    %88 = vector.load %arg5[%87, %c0_26, %c0_27] : memref<8x8x128xf32, #tpu.memory_space<vmem>>, vector<1x8x128xf32>
    %89 = vector.shape_cast %88 : vector<1x8x128xf32> to vector<8x128xf32>
    %90 = arith.addf %4, %86 : vector<8x128xf32>
    %91 = arith.maximumf %74, %90 : vector<8x128xf32>
    %92 = arith.subf %74, %91 : vector<8x128xf32>
    %93 = math.exp %92 : vector<8x128xf32>
    %94 = arith.subf %90, %91 : vector<8x128xf32>
    %95 = math.exp %94 : vector<8x128xf32>
    %96 = arith.mulf %93, %81 : vector<8x128xf32>
    %97 = arith.mulf %95, %89 : vector<8x128xf32>
    %98 = arith.addf %96, %97 : vector<8x128xf32>
    %99 = arith.mulf %93, %83 : vector<8x128xf32>
    %100 = arith.addf %99, %95 : vector<8x128xf32>
    %101 = tpu.reciprocal %100 {approx = true} : vector<8x128xf32> -> vector<8x128xf32>
    %102 = arith.mulf %100, %101 : vector<8x128xf32>
    %cst_28 = arith.constant 2.000000e+00 : f32
    %103 = vector.broadcast %cst_28 : f32 to vector<8x128xf32>
    %104 = arith.subf %103, %102 : vector<8x128xf32>
    %105 = arith.mulf %101, %104 : vector<8x128xf32>
    %106 = arith.mulf %98, %105 : vector<8x128xf32>
    %107 = arith.index_cast %c2_i32 : i32 to index
    %c0_29 = arith.constant 0 : index
    %c0_30 = arith.constant 0 : index
    %108 = vector.load %arg6[%107, %c0_29, %c0_30] : memref<8x8x128xf32, #tpu.memory_space<vmem>>, vector<1x8x128xf32>
    %109 = vector.shape_cast %108 : vector<1x8x128xf32> to vector<8x128xf32>
    %110 = vector.shape_cast %106 : vector<8x128xf32> to vector<1x8x128xf32>
    tpu.vector_store %arg6[%107, %c0_29, %c0_30], %110 {strides = array<i32>} : memref<8x8x128xf32, #tpu.memory_space<vmem>>, vector<1x8x128xf32>,
    %111 = arith.addf %74, %3 : vector<8x128xf32>
    %112 = arith.maximumf %111, %86 : vector<8x128xf32>
    %113 = arith.subf %111, %112 : vector<8x128xf32>
    %114 = math.exp %113 : vector<8x128xf32>
    %115 = arith.subf %86, %112 : vector<8x128xf32>
    %116 = math.exp %115 : vector<8x128xf32>
    %117 = arith.mulf %114, %81 : vector<8x128xf32>
    %118 = arith.mulf %116, %89 : vector<8x128xf32>
    %119 = arith.addf %117, %118 : vector<8x128xf32>
    %120 = arith.mulf %114, %83 : vector<8x128xf32>
    %121 = arith.addf %120, %116 : vector<8x128xf32>
    %c3_i32 = arith.constant 3 : i32
    %122 = arith.index_cast %c3_i32 : i32 to index
    %c0_31 = arith.constant 0 : index
    %c0_32 = arith.constant 0 : index
    %123 = vector.load %arg4[%122, %c0_31, %c0_32] : memref<8x8x128xf32, #tpu.memory_space<vmem>>, vector<1x8x128xf32>
    %124 = vector.shape_cast %123 : vector<1x8x128xf32> to vector<8x128xf32>
    %125 = arith.index_cast %c3_i32 : i32 to index
    %c0_33 = arith.constant 0 : index
    %c0_34 = arith.constant 0 : index
    %126 = vector.load %arg5[%125, %c0_33, %c0_34] : memref<8x8x128xf32, #tpu.memory_space<vmem>>, vector<1x8x128xf32>
    %127 = vector.shape_cast %126 : vector<1x8x128xf32> to vector<8x128xf32>
    %128 = arith.addf %4, %124 : vector<8x128xf32>
    %129 = arith.maximumf %112, %128 : vector<8x128xf32>
    %130 = arith.subf %112, %129 : vector<8x128xf32>
    %131 = math.exp %130 : vector<8x128xf32>
    %132 = arith.subf %128, %129 : vector<8x128xf32>
    %133 = math.exp %132 : vector<8x128xf32>
    %134 = arith.mulf %131, %119 : vector<8x128xf32>
    %135 = arith.mulf %133, %127 : vector<8x128xf32>
    %136 = arith.addf %134, %135 : vector<8x128xf32>
    %137 = arith.mulf %131, %121 : vector<8x128xf32>
    %138 = arith.addf %137, %133 : vector<8x128xf32>
    %139 = tpu.reciprocal %138 {approx = true} : vector<8x128xf32> -> vector<8x128xf32>
    %140 = arith.mulf %138, %139 : vector<8x128xf32>
    %cst_35 = arith.constant 2.000000e+00 : f32
    %141 = vector.broadcast %cst_35 : f32 to vector<8x128xf32>
    %142 = arith.subf %141, %140 : vector<8x128xf32>
    %143 = arith.mulf %139, %142 : vector<8x128xf32>
    %144 = arith.mulf %136, %143 : vector<8x128xf32>
    %145 = arith.index_cast %c3_i32 : i32 to index
    %c0_36 = arith.constant 0 : index
    %c0_37 = arith.constant 0 : index
    %146 = vector.load %arg6[%145, %c0_36, %c0_37] : memref<8x8x128xf32, #tpu.memory_space<vmem>>, vector<1x8x128xf32>
    %147 = vector.shape_cast %146 : vector<1x8x128xf32> to vector<8x128xf32>
    %148 = vector.shape_cast %144 : vector<8x128xf32> to vector<1x8x128xf32>
    tpu.vector_store %arg6[%145, %c0_36, %c0_37], %148 {strides = array<i32>} : memref<8x8x128xf32, #tpu.memory_space<vmem>>, vector<1x8x128xf32>,
    %149 = arith.addf %112, %3 : vector<8x128xf32>
    %150 = arith.maximumf %149, %124 : vector<8x128xf32>
    %151 = arith.subf %149, %150 : vector<8x128xf32>
    %152 = math.exp %151 : vector<8x128xf32>
    %153 = arith.subf %124, %150 : vector<8x128xf32>
    %154 = math.exp %153 : vector<8x128xf32>
    %155 = arith.mulf %152, %119 : vector<8x128xf32>
    %156 = arith.mulf %154, %127 : vector<8x128xf32>
    %157 = arith.addf %155, %156 : vector<8x128xf32>
    %158 = arith.mulf %152, %121 : vector<8x128xf32>
    %159 = arith.addf %158, %154 : vector<8x128xf32>
    %c4_i32 = arith.constant 4 : i32
    %160 = arith.index_cast %c4_i32 : i32 to index
    %c0_38 = arith.constant 0 : index
    %c0_39 = arith.constant 0 : index
    %161 = vector.load %arg4[%160, %c0_38, %c0_39] : memref<8x8x128xf32, #tpu.memory_space<vmem>>, vector<1x8x128xf32>
    %162 = vector.shape_cast %161 : vector<1x8x128xf32> to vector<8x128xf32>
    %163 = arith.index_cast %c4_i32 : i32 to index
    %c0_40 = arith.constant 0 : index
    %c0_41 = arith.constant 0 : index
    %164 = vector.load %arg5[%163, %c0_40, %c0_41] : memref<8x8x128xf32, #tpu.memory_space<vmem>>, vector<1x8x128xf32>
    %165 = vector.shape_cast %164 : vector<1x8x128xf32> to vector<8x128xf32>
    %166 = arith.addf %4, %162 : vector<8x128xf32>
    %167 = arith.maximumf %150, %166 : vector<8x128xf32>
    %168 = arith.subf %150, %167 : vector<8x128xf32>
    %169 = math.exp %168 : vector<8x128xf32>
    %170 = arith.subf %166, %167 : vector<8x128xf32>
    %171 = math.exp %170 : vector<8x128xf32>
    %172 = arith.mulf %169, %157 : vector<8x128xf32>
    %173 = arith.mulf %171, %165 : vector<8x128xf32>
    %174 = arith.addf %172, %173 : vector<8x128xf32>
    %175 = arith.mulf %169, %159 : vector<8x128xf32>
    %176 = arith.addf %175, %171 : vector<8x128xf32>
    %177 = tpu.reciprocal %176 {approx = true} : vector<8x128xf32> -> vector<8x128xf32>
    %178 = arith.mulf %176, %177 : vector<8x128xf32>
    %cst_42 = arith.constant 2.000000e+00 : f32
    %179 = vector.broadcast %cst_42 : f32 to vector<8x128xf32>
    %180 = arith.subf %179, %178 : vector<8x128xf32>
    %181 = arith.mulf %177, %180 : vector<8x128xf32>
    %182 = arith.mulf %174, %181 : vector<8x128xf32>
    %183 = arith.index_cast %c4_i32 : i32 to index
    %c0_43 = arith.constant 0 : index
    %c0_44 = arith.constant 0 : index
    %184 = vector.load %arg6[%183, %c0_43, %c0_44] : memref<8x8x128xf32, #tpu.memory_space<vmem>>, vector<1x8x128xf32>
    %185 = vector.shape_cast %184 : vector<1x8x128xf32> to vector<8x128xf32>
    %186 = vector.shape_cast %182 : vector<8x128xf32> to vector<1x8x128xf32>
    tpu.vector_store %arg6[%183, %c0_43, %c0_44], %186 {strides = array<i32>} : memref<8x8x128xf32, #tpu.memory_space<vmem>>, vector<1x8x128xf32>,
    %187 = arith.addf %150, %3 : vector<8x128xf32>
    %188 = arith.maximumf %187, %162 : vector<8x128xf32>
    %189 = arith.subf %187, %188 : vector<8x128xf32>
    %190 = math.exp %189 : vector<8x128xf32>
    %191 = arith.subf %162, %188 : vector<8x128xf32>
    %192 = math.exp %191 : vector<8x128xf32>
    %193 = arith.mulf %190, %157 : vector<8x128xf32>
    %194 = arith.mulf %192, %165 : vector<8x128xf32>
    %195 = arith.addf %193, %194 : vector<8x128xf32>
    %196 = arith.mulf %190, %159 : vector<8x128xf32>
    %197 = arith.addf %196, %192 : vector<8x128xf32>
    %c5_i32 = arith.constant 5 : i32
    %198 = arith.index_cast %c5_i32 : i32 to index
    %c0_45 = arith.constant 0 : index
    %c0_46 = arith.constant 0 : index
    %199 = vector.load %arg4[%198, %c0_45, %c0_46] : memref<8x8x128xf32, #tpu.memory_space<vmem>>, vector<1x8x128xf32>
    %200 = vector.shape_cast %199 : vector<1x8x128xf32> to vector<8x128xf32>
    %201 = arith.index_cast %c5_i32 : i32 to index
    %c0_47 = arith.constant 0 : index
    %c0_48 = arith.constant 0 : index
    %202 = vector.load %arg5[%201, %c0_47, %c0_48] : memref<8x8x128xf32, #tpu.memory_space<vmem>>, vector<1x8x128xf32>
    %203 = vector.shape_cast %202 : vector<1x8x128xf32> to vector<8x128xf32>
    %204 = arith.addf %4, %200 : vector<8x128xf32>
    %205 = arith.maximumf %188, %204 : vector<8x128xf32>
    %206 = arith.subf %188, %205 : vector<8x128xf32>
    %207 = math.exp %206 : vector<8x128xf32>
    %208 = arith.subf %204, %205 : vector<8x128xf32>
    %209 = math.exp %208 : vector<8x128xf32>
    %210 = arith.mulf %207, %195 : vector<8x128xf32>
    %211 = arith.mulf %209, %203 : vector<8x128xf32>
    %212 = arith.addf %210, %211 : vector<8x128xf32>
    %213 = arith.mulf %207, %197 : vector<8x128xf32>
    %214 = arith.addf %213, %209 : vector<8x128xf32>
    %215 = tpu.reciprocal %214 {approx = true} : vector<8x128xf32> -> vector<8x128xf32>
    %216 = arith.mulf %214, %215 : vector<8x128xf32>
    %cst_49 = arith.constant 2.000000e+00 : f32
    %217 = vector.broadcast %cst_49 : f32 to vector<8x128xf32>
    %218 = arith.subf %217, %216 : vector<8x128xf32>
    %219 = arith.mulf %215, %218 : vector<8x128xf32>
    %220 = arith.mulf %212, %219 : vector<8x128xf32>
    %221 = arith.index_cast %c5_i32 : i32 to index
    %c0_50 = arith.constant 0 : index
    %c0_51 = arith.constant 0 : index
    %222 = vector.load %arg6[%221, %c0_50, %c0_51] : memref<8x8x128xf32, #tpu.memory_space<vmem>>, vector<1x8x128xf32>
    %223 = vector.shape_cast %222 : vector<1x8x128xf32> to vector<8x128xf32>
    %224 = vector.shape_cast %220 : vector<8x128xf32> to vector<1x8x128xf32>
    tpu.vector_store %arg6[%221, %c0_50, %c0_51], %224 {strides = array<i32>} : memref<8x8x128xf32, #tpu.memory_space<vmem>>, vector<1x8x128xf32>,
    %225 = arith.addf %188, %3 : vector<8x128xf32>
    %226 = arith.maximumf %225, %200 : vector<8x128xf32>
    %227 = arith.subf %225, %226 : vector<8x128xf32>
    %228 = math.exp %227 : vector<8x128xf32>
    %229 = arith.subf %200, %226 : vector<8x128xf32>
    %230 = math.exp %229 : vector<8x128xf32>
    %231 = arith.mulf %228, %195 : vector<8x128xf32>
    %232 = arith.mulf %230, %203 : vector<8x128xf32>
    %233 = arith.addf %231, %232 : vector<8x128xf32>
    %234 = arith.mulf %228, %197 : vector<8x128xf32>
    %235 = arith.addf %234, %230 : vector<8x128xf32>
    %c6_i32 = arith.constant 6 : i32
    %236 = arith.index_cast %c6_i32 : i32 to index
    %c0_52 = arith.constant 0 : index
    %c0_53 = arith.constant 0 : index
    %237 = vector.load %arg4[%236, %c0_52, %c0_53] : memref<8x8x128xf32, #tpu.memory_space<vmem>>, vector<1x8x128xf32>
    %238 = vector.shape_cast %237 : vector<1x8x128xf32> to vector<8x128xf32>
    %239 = arith.index_cast %c6_i32 : i32 to index
    %c0_54 = arith.constant 0 : index
    %c0_55 = arith.constant 0 : index
    %240 = vector.load %arg5[%239, %c0_54, %c0_55] : memref<8x8x128xf32, #tpu.memory_space<vmem>>, vector<1x8x128xf32>
    %241 = vector.shape_cast %240 : vector<1x8x128xf32> to vector<8x128xf32>
    %242 = arith.addf %4, %238 : vector<8x128xf32>
    %243 = arith.maximumf %226, %242 : vector<8x128xf32>
    %244 = arith.subf %226, %243 : vector<8x128xf32>
    %245 = math.exp %244 : vector<8x128xf32>
    %246 = arith.subf %242, %243 : vector<8x128xf32>
    %247 = math.exp %246 : vector<8x128xf32>
    %248 = arith.mulf %245, %233 : vector<8x128xf32>
    %249 = arith.mulf %247, %241 : vector<8x128xf32>
    %250 = arith.addf %248, %249 : vector<8x128xf32>
    %251 = arith.mulf %245, %235 : vector<8x128xf32>
    %252 = arith.addf %251, %247 : vector<8x128xf32>
    %253 = tpu.reciprocal %252 {approx = true} : vector<8x128xf32> -> vector<8x128xf32>
    %254 = arith.mulf %252, %253 : vector<8x128xf32>
    %cst_56 = arith.constant 2.000000e+00 : f32
    %255 = vector.broadcast %cst_56 : f32 to vector<8x128xf32>
    %256 = arith.subf %255, %254 : vector<8x128xf32>
    %257 = arith.mulf %253, %256 : vector<8x128xf32>
    %258 = arith.mulf %250, %257 : vector<8x128xf32>
    %259 = arith.index_cast %c6_i32 : i32 to index
    %c0_57 = arith.constant 0 : index
    %c0_58 = arith.constant 0 : index
    %260 = vector.load %arg6[%259, %c0_57, %c0_58] : memref<8x8x128xf32, #tpu.memory_space<vmem>>, vector<1x8x128xf32>
    %261 = vector.shape_cast %260 : vector<1x8x128xf32> to vector<8x128xf32>
    %262 = vector.shape_cast %258 : vector<8x128xf32> to vector<1x8x128xf32>
    tpu.vector_store %arg6[%259, %c0_57, %c0_58], %262 {strides = array<i32>} : memref<8x8x128xf32, #tpu.memory_space<vmem>>, vector<1x8x128xf32>,
    %263 = arith.addf %226, %3 : vector<8x128xf32>
    %264 = arith.maximumf %263, %238 : vector<8x128xf32>
    %265 = arith.subf %263, %264 : vector<8x128xf32>
    %266 = math.exp %265 : vector<8x128xf32>
    %267 = arith.subf %238, %264 : vector<8x128xf32>
    %268 = math.exp %267 : vector<8x128xf32>
    %269 = arith.mulf %266, %233 : vector<8x128xf32>
    %270 = arith.mulf %268, %241 : vector<8x128xf32>
    %271 = arith.addf %269, %270 : vector<8x128xf32>
    %272 = arith.mulf %266, %235 : vector<8x128xf32>
    %273 = arith.addf %272, %268 : vector<8x128xf32>
    %c7_i32 = arith.constant 7 : i32
    %274 = arith.index_cast %c7_i32 : i32 to index
    %c0_59 = arith.constant 0 : index
    %c0_60 = arith.constant 0 : index
    %275 = vector.load %arg4[%274, %c0_59, %c0_60] : memref<8x8x128xf32, #tpu.memory_space<vmem>>, vector<1x8x128xf32>
    %276 = vector.shape_cast %275 : vector<1x8x128xf32> to vector<8x128xf32>
    %277 = arith.index_cast %c7_i32 : i32 to index
    %c0_61 = arith.constant 0 : index
    %c0_62 = arith.constant 0 : index
    %278 = vector.load %arg5[%277, %c0_61, %c0_62] : memref<8x8x128xf32, #tpu.memory_space<vmem>>, vector<1x8x128xf32>
    %279 = vector.shape_cast %278 : vector<1x8x128xf32> to vector<8x128xf32>
    %280 = arith.addf %4, %276 : vector<8x128xf32>
    %281 = arith.maximumf %264, %280 : vector<8x128xf32>
    %282 = arith.subf %264, %281 : vector<8x128xf32>
    %283 = math.exp %282 : vector<8x128xf32>
    %284 = arith.subf %280, %281 : vector<8x128xf32>
    %285 = math.exp %284 : vector<8x128xf32>
    %286 = arith.mulf %283, %271 : vector<8x128xf32>
    %287 = arith.mulf %285, %279 : vector<8x128xf32>
    %288 = arith.addf %286, %287 : vector<8x128xf32>
    %289 = arith.mulf %283, %273 : vector<8x128xf32>
    %290 = arith.addf %289, %285 : vector<8x128xf32>
    %291 = tpu.reciprocal %290 {approx = true} : vector<8x128xf32> -> vector<8x128xf32>
    %292 = arith.mulf %290, %291 : vector<8x128xf32>
    %cst_63 = arith.constant 2.000000e+00 : f32
    %293 = vector.broadcast %cst_63 : f32 to vector<8x128xf32>
    %294 = arith.subf %293, %292 : vector<8x128xf32>
    %295 = arith.mulf %291, %294 : vector<8x128xf32>
    %296 = arith.mulf %288, %295 : vector<8x128xf32>
    %297 = arith.index_cast %c7_i32 : i32 to index
    %c0_64 = arith.constant 0 : index
    %c0_65 = arith.constant 0 : index
    %298 = vector.load %arg6[%297, %c0_64, %c0_65] : memref<8x8x128xf32, #tpu.memory_space<vmem>>, vector<1x8x128xf32>
    %299 = vector.shape_cast %298 : vector<1x8x128xf32> to vector<8x128xf32>
    %300 = vector.shape_cast %296 : vector<8x128xf32> to vector<1x8x128xf32>
    tpu.vector_store %arg6[%297, %c0_64, %c0_65], %300 {strides = array<i32>} : memref<8x8x128xf32, #tpu.memory_space<vmem>>, vector<1x8x128xf32>,
    %301 = arith.addf %264, %3 : vector<8x128xf32>
    %302 = arith.maximumf %301, %276 : vector<8x128xf32>
    %303 = arith.subf %301, %302 : vector<8x128xf32>
    %304 = math.exp %303 : vector<8x128xf32>
    %305 = arith.subf %276, %302 : vector<8x128xf32>
    %306 = math.exp %305 : vector<8x128xf32>
    %307 = arith.mulf %304, %271 : vector<8x128xf32>
    %308 = arith.mulf %306, %279 : vector<8x128xf32>
    %309 = arith.addf %307, %308 : vector<8x128xf32>
    %310 = arith.mulf %304, %273 : vector<8x128xf32>
    %311 = arith.addf %310, %306 : vector<8x128xf32>
    %c8_i32 = arith.constant 8 : i32
    %c0_66 = arith.constant 0 : index
    %c0_67 = arith.constant 0 : index
    %312 = vector.load %arg7[%c0_66, %c0_67] : memref<8x128xf32, #tpu.memory_space<vmem>>, vector<8x128xf32>
    tpu.vector_store %arg7[%c0_66, %c0_67], %309 {strides = array<i32>} : memref<8x128xf32, #tpu.memory_space<vmem>>, vector<8x128xf32>,
    %c0_68 = arith.constant 0 : index
    %c0_69 = arith.constant 0 : index
    %313 = vector.load %arg8[%c0_68, %c0_69] : memref<8x128xf32, #tpu.memory_space<vmem>>, vector<8x128xf32>
    tpu.vector_store %arg8[%c0_68, %c0_69], %311 {strides = array<i32>} : memref<8x128xf32, #tpu.memory_space<vmem>>, vector<8x128xf32>,
    %c0_70 = arith.constant 0 : index
    %c0_71 = arith.constant 0 : index
    %314 = vector.load %arg9[%c0_70, %c0_71] : memref<8x128xf32, #tpu.memory_space<vmem>>, vector<8x128xf32>
    tpu.vector_store %arg9[%c0_70, %c0_71], %302 {strides = array<i32>} : memref<8x128xf32, #tpu.memory_space<vmem>>, vector<8x128xf32>,
    return
  }
  func.func @transform_0(%arg0: i32, %arg1: i32) -> (i32, i32) {
    %c0_i32 = arith.constant 0 : i32
    %c0_i32_0 = arith.constant 0 : i32
    return %arg0, %c0_i32 : i32, i32
  }
  func.func @transform_1(%arg0: i32, %arg1: i32) -> (i32, i32) {
    %c0_i32 = arith.constant 0 : i32
    %c0_i32_0 = arith.constant 0 : i32
    return %arg0, %c0_i32 : i32, i32
  }
  func.func @transform_2(%arg0: i32, %arg1: i32) -> (i32, i32, i32) {
    %c0_i32 = arith.constant 0 : i32
    %c0_i32_0 = arith.constant 0 : i32
    return %arg1, %arg0, %c0_i32 : i32, i32, i32
  }
  func.func @transform_3(%arg0: i32, %arg1: i32) -> (i32, i32, i32) {
    %c0_i32 = arith.constant 0 : i32
    %c0_i32_0 = arith.constant 0 : i32
    return %arg1, %arg0, %c0_i32 : i32, i32, i32
  }
  func.func @transform_4(%arg0: i32, %arg1: i32) -> (i32, i32, i32) {
    %c0_i32 = arith.constant 0 : i32
    %c0_i32_0 = arith.constant 0 : i32
    return %arg1, %arg0, %c0_i32 : i32, i32, i32
  }
}

module attributes {stable_mosaic.version = 11 : i64} {
  func.func @_tm_out_kernel(%arg0: i32, %arg1: memref<16x32xbf16, #tpu.memory_space<vmem>>, %arg2: memref<16x32xf32, #tpu.memory_space<vmem>>, %arg3: memref<16x32xf32, #tpu.memory_space<vmem>>, %arg4: memref<32x32xbf16, #tpu.memory_space<vmem>>, %arg5: memref<16x32xf32, #tpu.memory_space<vmem>>) attributes {dimension_semantics = [#tpu.dimension_semantics<parallel>], iteration_bounds = array<i64: 1>, scalar_prefetch = 0 : i64, scratch_operands = 0 : i64, tpu.core_type = #tpu.core_type<tc>, window_params = [{transform_indices = @transform_0, window_bounds = array<i64: 16, 32>}, {transform_indices = @transform_1, window_bounds = array<i64: 16, 32>}, {transform_indices = @transform_2, window_bounds = array<i64: 16, 32>}, {pipeline_mode = #tpu.pipeline_mode<synchronous>, transform_indices = @transform_3, window_bounds = array<i64: 32, 32>}, {transform_indices = @transform_4, window_bounds = array<i64: 16, 32>}]} {
    %c0 = arith.constant 0 : index
    %c0_0 = arith.constant 0 : index
    %0 = vector.load %arg1[%c0, %c0_0] : memref<16x32xbf16, #tpu.memory_space<vmem>>, vector<16x32xbf16>
    %1 = arith.extf %0 : vector<16x32xbf16> to vector<16x32xf32>
    %c0_1 = arith.constant 0 : index
    %c0_2 = arith.constant 0 : index
    %2 = vector.load %arg2[%c0_1, %c0_2] : memref<16x32xf32, #tpu.memory_space<vmem>>, vector<16x32xf32>
    %3 = arith.negf %1 : vector<16x32xf32>
    %4 = math.exp %3 : vector<16x32xf32>
    %cst = arith.constant 1.000000e+00 : f32
    %5 = vector.broadcast %cst : f32 to vector<16x32xf32>
    %6 = arith.addf %5, %4 : vector<16x32xf32>
    %7 = arith.divf %5, %6 : vector<16x32xf32>
    %8 = arith.mulf %7, %2 : vector<16x32xf32>
    %9 = arith.truncf %8 : vector<16x32xf32> to vector<16x32xbf16>
    %c0_3 = arith.constant 0 : index
    %c0_4 = arith.constant 0 : index
    %10 = vector.load %arg3[%c0_3, %c0_4] : memref<16x32xf32, #tpu.memory_space<vmem>>, vector<16x32xf32>
    %c0_5 = arith.constant 0 : index
    %c0_6 = arith.constant 0 : index
    %11 = vector.load %arg4[%c0_5, %c0_6] : memref<32x32xbf16, #tpu.memory_space<vmem>>, vector<32x32xbf16>
    %cst_7 = arith.constant dense<0.000000e+00> : vector<16x32xf32>
    %12 = tpu.matmul %9, %11, %cst_7 {dimension_numbers = #tpu.dot_dimension_numbers<[1], [0], [0], [1], [0, 0, 1, 1], [], []>} : vector<16x32xbf16>, vector<32x32xbf16>, vector<16x32xf32> -> vector<16x32xf32>
    %13 = arith.addf %10, %12 : vector<16x32xf32>
    %c0_8 = arith.constant 0 : index
    %c0_9 = arith.constant 0 : index
    %14 = vector.load %arg5[%c0_8, %c0_9] : memref<16x32xf32, #tpu.memory_space<vmem>>, vector<16x32xf32>
    tpu.vector_store %arg5[%c0_8, %c0_9], %13 {strides = array<i32>} : memref<16x32xf32, #tpu.memory_space<vmem>>, vector<16x32xf32>,
    return
  }
  func.func @transform_0(%arg0: i32) -> (i32, i32) {
    %c0_i32 = arith.constant 0 : i32
    %c0_i32_0 = arith.constant 0 : i32
    return %arg0, %c0_i32 : i32, i32
  }
  func.func @transform_1(%arg0: i32) -> (i32, i32) {
    %c0_i32 = arith.constant 0 : i32
    %c0_i32_0 = arith.constant 0 : i32
    return %arg0, %c0_i32 : i32, i32
  }
  func.func @transform_2(%arg0: i32) -> (i32, i32) {
    %c0_i32 = arith.constant 0 : i32
    %c0_i32_0 = arith.constant 0 : i32
    return %arg0, %c0_i32 : i32, i32
  }
  func.func @transform_3(%arg0: i32) -> (i32, i32) {
    %c0_i32 = arith.constant 0 : i32
    %c0_i32_0 = arith.constant 0 : i32
    %c0_i32_1 = arith.constant 0 : i32
    return %c0_i32, %c0_i32_0 : i32, i32
  }
  func.func @transform_4(%arg0: i32) -> (i32, i32) {
    %c0_i32 = arith.constant 0 : i32
    %c0_i32_0 = arith.constant 0 : i32
    return %arg0, %c0_i32 : i32, i32
  }
}

module attributes {stable_mosaic.version = 11 : i64} {
  func.func @_cm_kernel(%arg0: i32, %arg1: memref<16x32xf32, #tpu.memory_space<vmem>>, %arg2: memref<16x32xf32, #tpu.memory_space<vmem>>, %arg3: memref<16x1xf32, #tpu.memory_space<vmem>>, %arg4: memref<1x32xf32, #tpu.memory_space<vmem>>, %arg5: memref<1x32xf32, #tpu.memory_space<vmem>>, %arg6: memref<1x32xf32, #tpu.memory_space<vmem>>, %arg7: memref<1x32xf32, #tpu.memory_space<vmem>>, %arg8: memref<32x128xbf16, #tpu.memory_space<vmem>>, %arg9: memref<128x32xbf16, #tpu.memory_space<vmem>>, %arg10: memref<32x32xbf16, #tpu.memory_space<vmem>>, %arg11: memref<16x32xf32, #tpu.memory_space<vmem>>) attributes {dimension_semantics = [#tpu.dimension_semantics<parallel>], iteration_bounds = array<i64: 1>, scalar_prefetch = 0 : i64, scratch_operands = 0 : i64, tpu.core_type = #tpu.core_type<tc>, window_params = [{transform_indices = @transform_0, window_bounds = array<i64: 16, 32>}, {transform_indices = @transform_1, window_bounds = array<i64: 16, 32>}, {transform_indices = @transform_2, window_bounds = array<i64: 16, 1>}, {pipeline_mode = #tpu.pipeline_mode<synchronous>, transform_indices = @transform_3, window_bounds = array<i64: 1, 32>}, {pipeline_mode = #tpu.pipeline_mode<synchronous>, transform_indices = @transform_4, window_bounds = array<i64: 1, 32>}, {pipeline_mode = #tpu.pipeline_mode<synchronous>, transform_indices = @transform_5, window_bounds = array<i64: 1, 32>}, {pipeline_mode = #tpu.pipeline_mode<synchronous>, transform_indices = @transform_6, window_bounds = array<i64: 1, 32>}, {pipeline_mode = #tpu.pipeline_mode<synchronous>, transform_indices = @transform_7, window_bounds = array<i64: 32, 128>}, {pipeline_mode = #tpu.pipeline_mode<synchronous>, transform_indices = @transform_8, window_bounds = array<i64: 128, 32>}, {pipeline_mode = #tpu.pipeline_mode<synchronous>, transform_indices = @transform_9, window_bounds = array<i64: 32, 32>}, {transform_indices = @transform_10, window_bounds = array<i64: 16, 32>}]} {
    %c0 = arith.constant 0 : index
    %c0_0 = arith.constant 0 : index
    %0 = vector.load %arg4[%c0, %c0_0] : memref<1x32xf32, #tpu.memory_space<vmem>>, vector<1x32xf32>
    %c0_1 = arith.constant 0 : index
    %c0_2 = arith.constant 0 : index
    %1 = vector.load %arg5[%c0_1, %c0_2] : memref<1x32xf32, #tpu.memory_space<vmem>>, vector<1x32xf32>
    %c0_3 = arith.constant 0 : index
    %c0_4 = arith.constant 0 : index
    %2 = vector.load %arg1[%c0_3, %c0_4] : memref<16x32xf32, #tpu.memory_space<vmem>>, vector<16x32xf32>
    %cst = arith.constant dense<0.000000e+00> : vector<16xf32>
    %3 = vector.multi_reduction <add>, %2, %cst [1] : vector<16x32xf32> to vector<16xf32>
    %4 = vector.shape_cast %3 : vector<16xf32> to vector<16x1xf32>
    %cst_5 = arith.constant 3.200000e+01 : f32
    %5 = vector.broadcast %cst_5 : f32 to vector<16x1xf32>
    %6 = arith.divf %4, %5 : vector<16x1xf32>
    %7 = vector.broadcast %6 : vector<16x1xf32> to vector<16x32xf32>
    %8 = arith.subf %2, %7 : vector<16x32xf32>
    %9 = arith.mulf %8, %8 : vector<16x32xf32>
    %cst_6 = arith.constant dense<0.000000e+00> : vector<16xf32>
    %10 = vector.multi_reduction <add>, %9, %cst_6 [1] : vector<16x32xf32> to vector<16xf32>
    %11 = vector.shape_cast %10 : vector<16xf32> to vector<16x1xf32>
    %cst_7 = arith.constant 3.200000e+01 : f32
    %12 = vector.broadcast %cst_7 : f32 to vector<16x1xf32>
    %13 = arith.divf %11, %12 : vector<16x1xf32>
    %cst_8 = arith.constant 9.99999974E-6 : f32
    %14 = vector.broadcast %cst_8 : f32 to vector<16x1xf32>
    %15 = arith.addf %13, %14 : vector<16x1xf32>
    %16 = math.rsqrt %15 : vector<16x1xf32>
    %17 = vector.broadcast %16 : vector<16x1xf32> to vector<16x32xf32>
    %18 = arith.mulf %8, %17 : vector<16x32xf32>
    %19 = vector.broadcast %0 : vector<1x32xf32> to vector<16x32xf32>
    %20 = arith.mulf %18, %19 : vector<16x32xf32>
    %21 = vector.broadcast %1 : vector<1x32xf32> to vector<16x32xf32>
    %22 = arith.addf %20, %21 : vector<16x32xf32>
    %c0_9 = arith.constant 0 : index
    %c0_10 = arith.constant 0 : index
    %23 = vector.load %arg2[%c0_9, %c0_10] : memref<16x32xf32, #tpu.memory_space<vmem>>, vector<16x32xf32>
    %cst_11 = arith.constant dense<0.000000e+00> : vector<16xf32>
    %24 = vector.multi_reduction <add>, %23, %cst_11 [1] : vector<16x32xf32> to vector<16xf32>
    %25 = vector.shape_cast %24 : vector<16xf32> to vector<16x1xf32>
    %cst_12 = arith.constant 3.200000e+01 : f32
    %26 = vector.broadcast %cst_12 : f32 to vector<16x1xf32>
    %27 = arith.divf %25, %26 : vector<16x1xf32>
    %28 = vector.broadcast %27 : vector<16x1xf32> to vector<16x32xf32>
    %29 = arith.subf %23, %28 : vector<16x32xf32>
    %30 = arith.mulf %29, %29 : vector<16x32xf32>
    %cst_13 = arith.constant dense<0.000000e+00> : vector<16xf32>
    %31 = vector.multi_reduction <add>, %30, %cst_13 [1] : vector<16x32xf32> to vector<16xf32>
    %32 = vector.shape_cast %31 : vector<16xf32> to vector<16x1xf32>
    %cst_14 = arith.constant 3.200000e+01 : f32
    %33 = vector.broadcast %cst_14 : f32 to vector<16x1xf32>
    %34 = arith.divf %32, %33 : vector<16x1xf32>
    %cst_15 = arith.constant 9.99999974E-6 : f32
    %35 = vector.broadcast %cst_15 : f32 to vector<16x1xf32>
    %36 = arith.addf %34, %35 : vector<16x1xf32>
    %37 = math.rsqrt %36 : vector<16x1xf32>
    %38 = vector.broadcast %37 : vector<16x1xf32> to vector<16x32xf32>
    %39 = arith.mulf %29, %38 : vector<16x32xf32>
    %40 = vector.broadcast %0 : vector<1x32xf32> to vector<16x32xf32>
    %41 = arith.mulf %39, %40 : vector<16x32xf32>
    %42 = vector.broadcast %1 : vector<1x32xf32> to vector<16x32xf32>
    %43 = arith.addf %41, %42 : vector<16x32xf32>
    %c0_16 = arith.constant 0 : index
    %c0_17 = arith.constant 0 : index
    %44 = vector.load %arg3[%c0_16, %c0_17] : memref<16x1xf32, #tpu.memory_space<vmem>>, vector<16x1xf32>
    %45 = vector.broadcast %44 : vector<16x1xf32> to vector<16x32xf32>
    %46 = arith.mulf %43, %45 : vector<16x32xf32>
    %c0_18 = arith.constant 0 : index
    %c0_19 = arith.constant 0 : index
    %47 = vector.load %arg6[%c0_18, %c0_19] : memref<1x32xf32, #tpu.memory_space<vmem>>, vector<1x32xf32>
    %c0_20 = arith.constant 0 : index
    %c0_21 = arith.constant 0 : index
    %48 = vector.load %arg7[%c0_20, %c0_21] : memref<1x32xf32, #tpu.memory_space<vmem>>, vector<1x32xf32>
    %49 = vector.broadcast %47 : vector<1x32xf32> to vector<16x32xf32>
    %50 = arith.mulf %22, %49 : vector<16x32xf32>
    %cst_22 = arith.constant 1.000000e+00 : f32
    %51 = vector.broadcast %cst_22 : f32 to vector<1x32xf32>
    %52 = arith.subf %51, %47 : vector<1x32xf32>
    %53 = vector.broadcast %52 : vector<1x32xf32> to vector<16x32xf32>
    %54 = arith.mulf %46, %53 : vector<16x32xf32>
    %55 = arith.addf %50, %54 : vector<16x32xf32>
    %56 = arith.truncf %55 : vector<16x32xf32> to vector<16x32xbf16>
    %57 = vector.broadcast %48 : vector<1x32xf32> to vector<16x32xf32>
    %58 = arith.mulf %22, %57 : vector<16x32xf32>
    %cst_23 = arith.constant 1.000000e+00 : f32
    %59 = vector.broadcast %cst_23 : f32 to vector<1x32xf32>
    %60 = arith.subf %59, %48 : vector<1x32xf32>
    %61 = vector.broadcast %60 : vector<1x32xf32> to vector<16x32xf32>
    %62 = arith.mulf %46, %61 : vector<16x32xf32>
    %63 = arith.addf %58, %62 : vector<16x32xf32>
    %64 = arith.truncf %63 : vector<16x32xf32> to vector<16x32xbf16>
    %c0_24 = arith.constant 0 : index
    %c0_25 = arith.constant 0 : index
    %65 = vector.load %arg8[%c0_24, %c0_25] : memref<32x128xbf16, #tpu.memory_space<vmem>>, vector<32x128xbf16>
    %cst_26 = arith.constant dense<0.000000e+00> : vector<16x128xf32>
    %66 = tpu.matmul %56, %65, %cst_26 {dimension_numbers = #tpu.dot_dimension_numbers<[1], [0], [0], [1], [0, 0, 1, 1], [], []>} : vector<16x32xbf16>, vector<32x128xbf16>, vector<16x128xf32> -> vector<16x128xf32>
    %cst_27 = arith.constant 0.000000e+00 : f32
    %67 = vector.broadcast %cst_27 : f32 to vector<16x128xf32>
    %68 = arith.maximumf %66, %67 : vector<16x128xf32>
    %69 = arith.mulf %68, %68 : vector<16x128xf32>
    %70 = arith.truncf %69 : vector<16x128xf32> to vector<16x128xbf16>
    %c0_28 = arith.constant 0 : index
    %c0_29 = arith.constant 0 : index
    %71 = vector.load %arg9[%c0_28, %c0_29] : memref<128x32xbf16, #tpu.memory_space<vmem>>, vector<128x32xbf16>
    %cst_30 = arith.constant dense<0.000000e+00> : vector<16x32xf32>
    %72 = tpu.matmul %70, %71, %cst_30 {dimension_numbers = #tpu.dot_dimension_numbers<[1], [0], [0], [1], [0, 0, 1, 1], [], []>} : vector<16x128xbf16>, vector<128x32xbf16>, vector<16x32xf32> -> vector<16x32xf32>
    %c0_31 = arith.constant 0 : index
    %c0_32 = arith.constant 0 : index
    %73 = vector.load %arg10[%c0_31, %c0_32] : memref<32x32xbf16, #tpu.memory_space<vmem>>, vector<32x32xbf16>
    %cst_33 = arith.constant dense<0.000000e+00> : vector<16x32xf32>
    %74 = tpu.matmul %64, %73, %cst_33 {dimension_numbers = #tpu.dot_dimension_numbers<[1], [0], [0], [1], [0, 0, 1, 1], [], []>} : vector<16x32xbf16>, vector<32x32xbf16>, vector<16x32xf32> -> vector<16x32xf32>
    %75 = arith.negf %74 : vector<16x32xf32>
    %76 = math.exp %75 : vector<16x32xf32>
    %cst_34 = arith.constant 1.000000e+00 : f32
    %77 = vector.broadcast %cst_34 : f32 to vector<16x32xf32>
    %78 = arith.addf %77, %76 : vector<16x32xf32>
    %79 = arith.divf %77, %78 : vector<16x32xf32>
    %80 = arith.mulf %79, %72 : vector<16x32xf32>
    %81 = arith.addf %2, %80 : vector<16x32xf32>
    %c0_35 = arith.constant 0 : index
    %c0_36 = arith.constant 0 : index
    %82 = vector.load %arg11[%c0_35, %c0_36] : memref<16x32xf32, #tpu.memory_space<vmem>>, vector<16x32xf32>
    tpu.vector_store %arg11[%c0_35, %c0_36], %81 {strides = array<i32>} : memref<16x32xf32, #tpu.memory_space<vmem>>, vector<16x32xf32>,
    return
  }
  func.func @transform_0(%arg0: i32) -> (i32, i32) {
    %c0_i32 = arith.constant 0 : i32
    %c0_i32_0 = arith.constant 0 : i32
    return %arg0, %c0_i32 : i32, i32
  }
  func.func @transform_1(%arg0: i32) -> (i32, i32) {
    %c0_i32 = arith.constant 0 : i32
    %c0_i32_0 = arith.constant 0 : i32
    return %arg0, %c0_i32 : i32, i32
  }
  func.func @transform_2(%arg0: i32) -> (i32, i32) {
    %c0_i32 = arith.constant 0 : i32
    %c0_i32_0 = arith.constant 0 : i32
    return %arg0, %c0_i32 : i32, i32
  }
  func.func @transform_3(%arg0: i32) -> (i32, i32) {
    %c0_i32 = arith.constant 0 : i32
    %c0_i32_0 = arith.constant 0 : i32
    %c0_i32_1 = arith.constant 0 : i32
    return %c0_i32, %c0_i32_0 : i32, i32
  }
  func.func @transform_4(%arg0: i32) -> (i32, i32) {
    %c0_i32 = arith.constant 0 : i32
    %c0_i32_0 = arith.constant 0 : i32
    %c0_i32_1 = arith.constant 0 : i32
    return %c0_i32, %c0_i32_0 : i32, i32
  }
  func.func @transform_5(%arg0: i32) -> (i32, i32) {
    %c0_i32 = arith.constant 0 : i32
    %c0_i32_0 = arith.constant 0 : i32
    %c0_i32_1 = arith.constant 0 : i32
    return %c0_i32, %c0_i32_0 : i32, i32
  }
  func.func @transform_6(%arg0: i32) -> (i32, i32) {
    %c0_i32 = arith.constant 0 : i32
    %c0_i32_0 = arith.constant 0 : i32
    %c0_i32_1 = arith.constant 0 : i32
    return %c0_i32, %c0_i32_0 : i32, i32
  }
  func.func @transform_7(%arg0: i32) -> (i32, i32) {
    %c0_i32 = arith.constant 0 : i32
    %c0_i32_0 = arith.constant 0 : i32
    %c0_i32_1 = arith.constant 0 : i32
    return %c0_i32, %c0_i32_0 : i32, i32
  }
  func.func @transform_8(%arg0: i32) -> (i32, i32) {
    %c0_i32 = arith.constant 0 : i32
    %c0_i32_0 = arith.constant 0 : i32
    %c0_i32_1 = arith.constant 0 : i32
    return %c0_i32, %c0_i32_0 : i32, i32
  }
  func.func @transform_9(%arg0: i32) -> (i32, i32) {
    %c0_i32 = arith.constant 0 : i32
    %c0_i32_0 = arith.constant 0 : i32
    %c0_i32_1 = arith.constant 0 : i32
    return %c0_i32, %c0_i32_0 : i32, i32
  }
  func.func @transform_10(%arg0: i32) -> (i32, i32) {
    %c0_i32 = arith.constant 0 : i32
    %c0_i32_0 = arith.constant 0 : i32
    return %arg0, %c0_i32 : i32, i32
  }
}

module attributes {stable_mosaic.version = 11 : i64} {
  func.func @_ln_kernel(%arg0: i32, %arg1: memref<16x32xf32, #tpu.memory_space<vmem>>, %arg2: memref<1x32xf32, #tpu.memory_space<vmem>>, %arg3: memref<1x32xf32, #tpu.memory_space<vmem>>, %arg4: memref<16x32xbf16, #tpu.memory_space<vmem>>) attributes {dimension_semantics = [#tpu.dimension_semantics<parallel>], iteration_bounds = array<i64: 1>, scalar_prefetch = 0 : i64, scratch_operands = 0 : i64, tpu.core_type = #tpu.core_type<tc>, window_params = [{transform_indices = @transform_0, window_bounds = array<i64: 16, 32>}, {pipeline_mode = #tpu.pipeline_mode<synchronous>, transform_indices = @transform_1, window_bounds = array<i64: 1, 32>}, {pipeline_mode = #tpu.pipeline_mode<synchronous>, transform_indices = @transform_2, window_bounds = array<i64: 1, 32>}, {transform_indices = @transform_3, window_bounds = array<i64: 16, 32>}]} {
    %c0 = arith.constant 0 : index
    %c0_0 = arith.constant 0 : index
    %0 = vector.load %arg1[%c0, %c0_0] : memref<16x32xf32, #tpu.memory_space<vmem>>, vector<16x32xf32>
    %c0_1 = arith.constant 0 : index
    %c0_2 = arith.constant 0 : index
    %1 = vector.load %arg2[%c0_1, %c0_2] : memref<1x32xf32, #tpu.memory_space<vmem>>, vector<1x32xf32>
    %c0_3 = arith.constant 0 : index
    %c0_4 = arith.constant 0 : index
    %2 = vector.load %arg3[%c0_3, %c0_4] : memref<1x32xf32, #tpu.memory_space<vmem>>, vector<1x32xf32>
    %cst = arith.constant dense<0.000000e+00> : vector<16xf32>
    %3 = vector.multi_reduction <add>, %0, %cst [1] : vector<16x32xf32> to vector<16xf32>
    %4 = vector.shape_cast %3 : vector<16xf32> to vector<16x1xf32>
    %cst_5 = arith.constant 3.200000e+01 : f32
    %5 = vector.broadcast %cst_5 : f32 to vector<16x1xf32>
    %6 = arith.divf %4, %5 : vector<16x1xf32>
    %7 = vector.broadcast %6 : vector<16x1xf32> to vector<16x32xf32>
    %8 = arith.subf %0, %7 : vector<16x32xf32>
    %9 = arith.mulf %8, %8 : vector<16x32xf32>
    %cst_6 = arith.constant dense<0.000000e+00> : vector<16xf32>
    %10 = vector.multi_reduction <add>, %9, %cst_6 [1] : vector<16x32xf32> to vector<16xf32>
    %11 = vector.shape_cast %10 : vector<16xf32> to vector<16x1xf32>
    %cst_7 = arith.constant 3.200000e+01 : f32
    %12 = vector.broadcast %cst_7 : f32 to vector<16x1xf32>
    %13 = arith.divf %11, %12 : vector<16x1xf32>
    %cst_8 = arith.constant 9.99999974E-6 : f32
    %14 = vector.broadcast %cst_8 : f32 to vector<16x1xf32>
    %15 = arith.addf %13, %14 : vector<16x1xf32>
    %16 = math.rsqrt %15 : vector<16x1xf32>
    %17 = vector.broadcast %16 : vector<16x1xf32> to vector<16x32xf32>
    %18 = arith.mulf %8, %17 : vector<16x32xf32>
    %19 = vector.broadcast %1 : vector<1x32xf32> to vector<16x32xf32>
    %20 = arith.mulf %18, %19 : vector<16x32xf32>
    %21 = vector.broadcast %2 : vector<1x32xf32> to vector<16x32xf32>
    %22 = arith.addf %20, %21 : vector<16x32xf32>
    %23 = arith.truncf %22 : vector<16x32xf32> to vector<16x32xbf16>
    %c0_9 = arith.constant 0 : index
    %c0_10 = arith.constant 0 : index
    %24 = vector.load %arg4[%c0_9, %c0_10] : memref<16x32xbf16, #tpu.memory_space<vmem>>, vector<16x32xbf16>
    tpu.vector_store %arg4[%c0_9, %c0_10], %23 {strides = array<i32>} : memref<16x32xbf16, #tpu.memory_space<vmem>>, vector<16x32xbf16>,
    return
  }
  func.func @transform_0(%arg0: i32) -> (i32, i32) {
    %c0_i32 = arith.constant 0 : i32
    %c0_i32_0 = arith.constant 0 : i32
    return %arg0, %c0_i32 : i32, i32
  }
  func.func @transform_1(%arg0: i32) -> (i32, i32) {
    %c0_i32 = arith.constant 0 : i32
    %c0_i32_0 = arith.constant 0 : i32
    %c0_i32_1 = arith.constant 0 : i32
    return %c0_i32, %c0_i32_0 : i32, i32
  }
  func.func @transform_2(%arg0: i32) -> (i32, i32) {
    %c0_i32 = arith.constant 0 : i32
    %c0_i32_0 = arith.constant 0 : i32
    %c0_i32_1 = arith.constant 0 : i32
    return %c0_i32, %c0_i32_0 : i32, i32
  }
  func.func @transform_3(%arg0: i32) -> (i32, i32) {
    %c0_i32 = arith.constant 0 : i32
    %c0_i32_0 = arith.constant 0 : i32
    return %arg0, %c0_i32 : i32, i32
  }
}

module attributes {stable_mosaic.version = 11 : i64} {
  func.func @_matmul_kernel(%arg0: i32, %arg1: i32, %arg2: memref<16x128xbf16, #tpu.memory_space<vmem>>, %arg3: memref<128x512xbf16, #tpu.memory_space<vmem>>, %arg4: memref<16x512xf32, #tpu.memory_space<vmem>>) attributes {dimension_semantics = [#tpu.dimension_semantics<parallel>, #tpu.dimension_semantics<parallel>], iteration_bounds = array<i64: 1, 1>, scalar_prefetch = 0 : i64, scratch_operands = 0 : i64, tpu.core_type = #tpu.core_type<tc>, window_params = [{transform_indices = @transform_0, window_bounds = array<i64: 16, 128>}, {transform_indices = @transform_1, window_bounds = array<i64: 128, 512>}, {transform_indices = @transform_2, window_bounds = array<i64: 16, 512>}]} {
    %c0 = arith.constant 0 : index
    %c0_0 = arith.constant 0 : index
    %0 = vector.load %arg2[%c0, %c0_0] : memref<16x128xbf16, #tpu.memory_space<vmem>>, vector<16x128xbf16>
    %c0_1 = arith.constant 0 : index
    %c0_2 = arith.constant 0 : index
    %1 = vector.load %arg3[%c0_1, %c0_2] : memref<128x512xbf16, #tpu.memory_space<vmem>>, vector<128x512xbf16>
    %cst = arith.constant dense<0.000000e+00> : vector<16x512xf32>
    %2 = tpu.matmul %0, %1, %cst {dimension_numbers = #tpu.dot_dimension_numbers<[1], [0], [0], [1], [0, 0, 1, 1], [], []>} : vector<16x128xbf16>, vector<128x512xbf16>, vector<16x512xf32> -> vector<16x512xf32>
    %c0_3 = arith.constant 0 : index
    %c0_4 = arith.constant 0 : index
    %3 = vector.load %arg4[%c0_3, %c0_4] : memref<16x512xf32, #tpu.memory_space<vmem>>, vector<16x512xf32>
    tpu.vector_store %arg4[%c0_3, %c0_4], %2 {strides = array<i32>} : memref<16x512xf32, #tpu.memory_space<vmem>>, vector<16x512xf32>,
    return
  }
  func.func @transform_0(%arg0: i32, %arg1: i32) -> (i32, i32) {
    %c0_i32 = arith.constant 0 : i32
    %c0_i32_0 = arith.constant 0 : i32
    return %arg0, %c0_i32 : i32, i32
  }
  func.func @transform_1(%arg0: i32, %arg1: i32) -> (i32, i32) {
    %c0_i32 = arith.constant 0 : i32
    %c0_i32_0 = arith.constant 0 : i32
    return %c0_i32, %arg1 : i32, i32
  }
  func.func @transform_2(%arg0: i32, %arg1: i32) -> (i32, i32) {
    %c0_i32 = arith.constant 0 : i32
    return %arg0, %arg1 : i32, i32
  }
}

</mosaic_0001>

<llo_original>
// kernel: tpu_custom_call.1
$region0: #{tpu_custom_call.1}
  #allocation0 [shape = 'u32[]', space=smem, size = 0x4, offset = 0x4, fixed_abs, tag = 'smem constant byte address 0x4 - core index']
  #allocation1 [shape = 'u32[144,128]{1,0:T(1,128)}', space=vmem, size = 0x12000, scoped, tag = 'internal scratch']
  %s0 = inlined_call_operand.hbm [shape: f32[8,128], index: 0, kind: input, shape index: {}]
  %s1 = inlined_call_operand.hbm [shape: f32[8,128], index: 1, kind: output, shape index: {}]
  %s2 = sld [smem:[#allocation0]]
  $region41: #{tpu_custom_call.1} parent=0
    _
  %s4 = ssub.s32 1, %s2
  %s5 = scalar_select 0, %s4, %s2
  $region1: #{tpu_custom_call.1} parent=0
    #allocation2 [shape = 'u8[4096]{0}', space=vmem, size = 0x1000, scoped, tag = 'input window, operand 0, single buffered']
    #allocation3 [shape = 's32[2]{0}', space=sflag, size = 0x8, scoped, tag = 'scoped memory for tpu_custom_call.1']
    #allocation4 [shape = 's32[2]{0}', space=sflag, size = 0x8, scoped, tag = 'scoped memory for tpu_custom_call.1']
    #allocation5 [shape = 'u8[4096]{0}', space=vmem, size = 0x1000, scoped, tag = 'output window, operand 0, single buffered']
    %6 = vsyncpa [#allocation3], 0
    %7 = vsyncpa [#allocation4], 0
    loop: start=0, step=1, limit=4
    $region2: #{tpu_custom_call.1} parent=1 // loop_pre_header
      _
    $region3: #{tpu_custom_call.1} parent=1 // loop_header
      %s9 = sphi 0, %s13
      %p10 = scmp.ge.s32.totalorder %s9, 4
      %s17 = sphi 0, %s17
      %s19 = sphi 0, %s17
      %s20 = sphi 0, %s19
      %s34 = sphi 0, %s20
      %s38 = sphi 0, %s38
      %s40 = sphi 0, %s38
      %s41 = sphi 0, %s40
      %s55 = sphi 0, %s41
    $region4: #{tpu_custom_call.1} parent=1 // loop_header_branch
      %12 = sbr.rel (%p10) target = $region8
    $region5: #{tpu_custom_call.1} parent=1 // loop_body
      %s14 = ssub.s32 %s9, 1
      %s15 = ssub.s32 %s9, 2
      %s16 = sadd.s32 %s9, 1
      %s18 = sadd.s32 %s17, 1
      %p21 = scmp.eq.s32.totalorder %s9, 1
      %p22 = scmp.ne.s32.totalorder %s17, %s19
      %p23 = scmp.eq.s32.totalorder %s9, 0
      %p24 = por %p22, %p23
      %p25 = scmp.ne.s32.totalorder %s17, %s19
      %p26 = scmp.eq.s32.totalorder %s14, 1
      %p27 = por %p25, %p26
      %p28 = scmp.ne.s32.totalorder %s19, %s20
      %p29 = scmp.eq.s32.totalorder %s14, 0
      %p30 = por %p28, %p29
      %p31 = scmp.ne.s32.totalorder %s19, %s20
      %p32 = scmp.eq.s32.totalorder %s15, 1
      %p33 = por %p31, %p32
      %p35 = scmp.ne.s32.totalorder %s20, %s34
      %p36 = scmp.eq.s32.totalorder %s15, 0
      %p37 = por %p35, %p36
      %s39 = sadd.s32 %s38, 1
      %p42 = scmp.eq.s32.totalorder %s9, 1
      %p43 = scmp.ne.s32.totalorder %s38, %s40
      %p44 = scmp.eq.s32.totalorder %s9, 0
      %p45 = por %p43, %p44
      %p46 = scmp.ne.s32.totalorder %s38, %s40
      %p47 = scmp.eq.s32.totalorder %s14, 1
      %p48 = por %p46, %p47
      %p49 = scmp.ne.s32.totalorder %s40, %s41
      %p50 = scmp.eq.s32.totalorder %s14, 0
      %p51 = por %p49, %p50
      %p52 = scmp.ne.s32.totalorder %s40, %s41
      %p53 = scmp.eq.s32.totalorder %s15, 1
      %p54 = por %p52, %p53
      %p56 = scmp.ne.s32.totalorder %s41, %s55
      %p57 = scmp.eq.s32.totalorder %s15, 0
      %p58 = por %p56, %p57
      %p59 = scmp.le.s32.totalorder 1, %s9
      %p60 = scmp.lt.s32.totalorder %s9, 3
      %p61 = pnand %p59, %p60
      %p62 = pneg %p61
      // Predicated region
      $region9: #{tpu_custom_call.1} parent=5 // pred_check
        _
      $region10: #{tpu_custom_call.1} parent=5 // pred_check_branch
        %64 = sbr.rel (%p61) target = $region12
      $region11: #{tpu_custom_call.1} parent=5 // pred_region
        %s65 = ssub.s32 %s9, 1
        // Predicated region
        $region13: #{tpu_custom_call.1} parent=11 // pred_check
          %p66 = pneg %p30
        $region14: #{tpu_custom_call.1} parent=11 // pred_check_branch
          %68 = sbr.rel (%p66) target = $region16
        $region15: #{tpu_custom_call.1} parent=11 // pred_region
          %s70 = ssub.s32 128, 128
          %71 = vsyncadd [#allocation3], %s70
          %s73 = sshll.u32 [#allocation2], 4
          %s74 = int_to_ptr.vmem [resolvable:$true] %s73
          %76 = dma.hbm_to_vmem [thread:$0]  %s0, 128, %s74, [#allocation3]
        $region16: #{tpu_custom_call.1} parent=11 // pred_fallthru
          _
      $region12: #{tpu_custom_call.1} parent=5 // pred_fallthru
        _
      %p77 = scmp.lt.s32.totalorder %s9, 2
      // Predicated region
      $region17: #{tpu_custom_call.1} parent=5 // pred_check
        %p78 = pneg %p77
      $region18: #{tpu_custom_call.1} parent=5 // pred_check_branch
        %80 = sbr.rel (%p78) target = $region20
      $region19: #{tpu_custom_call.1} parent=5 // pred_region
        _
      $region20: #{tpu_custom_call.1} parent=5 // pred_fallthru
        _
      %p81 = scmp.le.s32.totalorder 1, %s9
      %p82 = scmp.lt.s32.totalorder %s9, 3
      %p83 = pnand %p81, %p82
      %p84 = pneg %p83
      // Predicated region
      $region21: #{tpu_custom_call.1} parent=5 // pred_check
        _
      $region22: #{tpu_custom_call.1} parent=5 // pred_check_branch
        %86 = sbr.rel (%p83) target = $region24
      $region23: #{tpu_custom_call.1} parent=5 // pred_region
        %s87 = ssub.s32 %s9, 1
        // Predicated region
        $region25: #{tpu_custom_call.1} parent=23 // pred_check
          %p88 = pneg %p30
        $region26: #{tpu_custom_call.1} parent=23 // pred_check_branch
          %90 = sbr.rel (%p88) target = $region28
        $region27: #{tpu_custom_call.1} parent=23 // pred_region
          %91 = dma.done [#allocation3], 128
        $region28: #{tpu_custom_call.1} parent=23 // pred_fallthru
          _
        %p92 = pneg %p30
        %p93 = pneg %p27
        %p94 = pneg %p51
        %p95 = pneg %p48
        %v96 = vld [vmem:[#allocation2] sm:$0xff]
        %v97 = vmul.f32 %v96, 2.0
        %98 = vst [vmem:[#allocation5] sm:$0xff] %v97
        // Predicated region
        $region29: #{tpu_custom_call.1} parent=23 // pred_check
          %p99 = pneg %p48
        $region30: #{tpu_custom_call.1} parent=23 // pred_check_branch
          %101 = sbr.rel (%p99) target = $region32
        $region31: #{tpu_custom_call.1} parent=23 // pred_region
          %s103 = ssub.s32 128, 128
          %104 = vsyncadd [#allocation4], %s103
          %s106 = sshll.u32 [#allocation5], 4
          %s107 = int_to_ptr.vmem [resolvable:$true] %s106
          %109 = dma.vmem_to_hbm [thread:$0]  %s107, 128, %s1, [#allocation4]
        $region32: #{tpu_custom_call.1} parent=23 // pred_fallthru
          _
        // Predicated region
        $region33: #{tpu_custom_call.1} parent=23 // pred_check
          %p110 = pneg %p48
        $region34: #{tpu_custom_call.1} parent=23 // pred_check_branch
          %112 = sbr.rel (%p110) target = $region36
        $region35: #{tpu_custom_call.1} parent=23 // pred_region
          %113 = dma.done [#allocation4], 128
        $region36: #{tpu_custom_call.1} parent=23 // pred_fallthru
          _
      $region24: #{tpu_custom_call.1} parent=5 // pred_fallthru
        _
      %p114 = scmp.le.s32.totalorder 2, %s9
      // Predicated region
      $region37: #{tpu_custom_call.1} parent=5 // pred_check
        %p115 = pneg %p114
      $region38: #{tpu_custom_call.1} parent=5 // pred_check_branch
        %117 = sbr.rel (%p115) target = $region40
      $region39: #{tpu_custom_call.1} parent=5 // pred_region
        %s118 = ssub.s32 %s9, 2
      $region40: #{tpu_custom_call.1} parent=5 // pred_fallthru
        _
    $region6: #{tpu_custom_call.1} parent=1 // loop_footer
      %s13 = sadd.s32 1, %s9
    $region7: #{tpu_custom_call.1} parent=1 // loop_footer_branch
      %8 = sbr.rel target = $region3
    $region8: #{tpu_custom_call.1} parent=1 // loop_exit
      _
    %119 = vsyncpa [#allocation3], 1
    %s120 = scalar_lea.sflag [#allocation3], 1
    %121 = vsyncpa %s120, 1
    %122 = vsyncpa [#allocation4], 1
    %s123 = scalar_lea.sflag [#allocation4], 1
    %124 = vsyncpa %s123, 1

// kernel: rwkv_gpt_forward.11
$region0: #{rwkv_gpt_forward.11}
  #allocation0 [shape = 'u32[]', space=smem, size = 0x4, offset = 0x4, fixed_abs, tag = 'smem constant byte address 0x4 - core index']
  #allocation1 [shape = 'u32[144,128]{1,0:T(1,128)}', space=vmem, size = 0x12000, scoped, tag = 'internal scratch']
  %s0 = inlined_call_operand.vmem [shape: f32[16,32], index: 0, kind: input, shape index: {}]
  %s1 = inlined_call_operand.vmem [shape: f32[1,32], index: 1, kind: input, shape index: {}]
  %s2 = inlined_call_operand.vmem [shape: f32[1,32], index: 2, kind: input, shape index: {}]
  %s3 = inlined_call_operand.vmem [shape: f32[16,32], index: 3, kind: output, shape index: {}]
  %s4 = sld [smem:[#allocation0]]
  $region22: #{rwkv_gpt_forward.11} parent=0
    _
  %s6 = ssub.s32 1, %s4
  %s7 = scalar_select 0, %s6, %s4
  // Predicated region
  $region2: #{rwkv_gpt_forward.11} parent=0 // pred_check
    _
  $region3: #{rwkv_gpt_forward.11} parent=0 // pred_check_branch
    %9 = sbr.rel (0) target = $region5
  $region4: #{rwkv_gpt_forward.11} parent=0 // pred_region
    _
  $region5: #{rwkv_gpt_forward.11} parent=0 // pred_fallthru
    _
  // Predicated region
  $region6: #{rwkv_gpt_forward.11} parent=0 // pred_check
    _
  $region7: #{rwkv_gpt_forward.11} parent=0 // pred_check_branch
    %11 = sbr.rel (0) target = $region9
  $region8: #{rwkv_gpt_forward.11} parent=0 // pred_region
    _
  $region9: #{rwkv_gpt_forward.11} parent=0 // pred_fallthru
    _
  // Predicated region
  $region10: #{rwkv_gpt_forward.11} parent=0 // pred_check
    _
  $region11: #{rwkv_gpt_forward.11} parent=0 // pred_check_branch
    %13 = sbr.rel (0) target = $region13
  $region12: #{rwkv_gpt_forward.11} parent=0 // pred_region
    _
  $region13: #{rwkv_gpt_forward.11} parent=0 // pred_fallthru
    _
  %v14 = vld [vmem:[%s0] sm:$0xff]
  %v15 = vld [vmem:[%s0 + $0x8] sm:$0xff]
  %v16 = vld [vmem:[%s1] sm:$0x1]
  %v17 = vld [vmem:[%s2] sm:$0x1]
  %vm18 = vcmask 261120
  %v19 = vsel %vm18, %v14, 0.0
  %20 = vadd.xlane.f32.xlu0 %v19
  %v21 = vpop.xlane.xlu0 %20
  %v22 = vsel %vm18, %v15, 0.0
  %23 = vadd.xlane.f32.xlu0 %v22
  %v24 = vpop.xlane.xlu0 %23
  %v25 = vrcp.pop 32.0
  %v26 = vmul.f32 %v21, %v25
  %v27 = vmul.f32 %v24, %v25
  %v28 = vsub.f32 %v14, %v26
  %v29 = vsub.f32 %v15, %v27
  %v30 = vmul.f32 %v28, %v28
  %v31 = vmul.f32 %v29, %v29
  %v32 = vsel %vm18, %v30, 0.0
  %33 = vadd.xlane.f32.xlu0 %v32
  %v34 = vpop.xlane.xlu0 %33
  %v35 = vsel %vm18, %v31, 0.0
  %36 = vadd.xlane.f32.xlu0 %v35
  %v37 = vpop.xlane.xlu0 %36
  %v38 = vmul.f32 %v34, %v25
  %v39 = vmul.f32 %v37, %v25
  %v40 = vadd.f32 %v38, 1e-05
  %v41 = vadd.f32 %v39, 1e-05
  %v42 = vrsqrt.pop %v40
  %v43 = vrsqrt.pop %v41
  %v44 = vmul.f32 %v28, %v42
  %v45 = vmul.f32 %v29, %v43
  %v47 = vlaneseq
  %v48 = vshrl.u32 %v47, 7
  %v49 = vsub.s32 0, %v48
  %v50 = vrot.slane %v16, %v49
  %v52 = vmul.f32 %v44, %v50
  %v53 = vmul.f32 %v45, %v50
  %v55 = vlaneseq
  %v56 = vshrl.u32 %v55, 7
  %v57 = vsub.s32 0, %v56
  %v58 = vrot.slane %v17, %v57
  %v60 = vadd.f32 %v52, %v58
  %v61 = vadd.f32 %v53, %v58
  %62 = vst.msk [vmem:[%s3] sm:$0xff] %vm18, %v60
  %63 = vst.msk [vmem:[%s3 + $0x8] sm:$0xff] %vm18, %v61
  // Predicated region
  $region14: #{rwkv_gpt_forward.11} parent=0 // pred_check
    _
  $region15: #{rwkv_gpt_forward.11} parent=0 // pred_check_branch
    %65 = sbr.rel (0) target = $region17
  $region16: #{rwkv_gpt_forward.11} parent=0 // pred_region
    _
  $region17: #{rwkv_gpt_forward.11} parent=0 // pred_fallthru
    _
  // Predicated region
  $region18: #{rwkv_gpt_forward.11} parent=0 // pred_check
    _
  $region19: #{rwkv_gpt_forward.11} parent=0 // pred_check_branch
    %67 = sbr.rel (0) target = $region21
  $region20: #{rwkv_gpt_forward.11} parent=0 // pred_region
    _
  $region21: #{rwkv_gpt_forward.11} parent=0 // pred_fallthru
    _

// kernel: rwkv_gpt_forward.12
$region0: #{rwkv_gpt_forward.12}
  #allocation0 [shape = 'u32[]', space=smem, size = 0x4, offset = 0x4, fixed_abs, tag = 'smem constant byte address 0x4 - core index']
  #allocation1 [shape = 'u32[144,128]{1,0:T(1,128)}', space=vmem, size = 0x12000, scoped, tag = 'internal scratch']
  %s0 = inlined_call_operand.vmem [shape: f32[16,32], index: 0, kind: input, shape index: {}]
  %s1 = inlined_call_operand.vmem [shape: f32[16,32], index: 1, kind: input, shape index: {}]
  %s2 = inlined_call_operand.vmem [shape: f32[16,1], index: 2, kind: input, shape index: {}]
  %s3 = inlined_call_operand.vmem [shape: f32[1,32], index: 3, kind: input, shape index: {}]
  %s4 = inlined_call_operand.vmem [shape: f32[1,32], index: 4, kind: input, shape index: {}]
  %s5 = inlined_call_operand.vmem [shape: f32[1,32], index: 5, kind: input, shape index: {}]
  %s6 = inlined_call_operand.vmem [shape: f32[1,32], index: 6, kind: input, shape index: {}]
  %s7 = inlined_call_operand.vmem [shape: f32[1,32], index: 7, kind: input, shape index: {}]
  %s8 = inlined_call_operand.vmem [shape: bf16[32,32], index: 8, kind: input, shape index: {}]
  %s9 = inlined_call_operand.vmem [shape: bf16[32,32], index: 9, kind: input, shape index: {}]
  %s10 = inlined_call_operand.vmem [shape: bf16[32,32], index: 10, kind: input, shape index: {}]
  %s11 = inlined_call_operand.vmem [shape: f32[16,32], index: 11, kind: output, shape index: {0}]
  %s12 = inlined_call_operand.vmem [shape: f32[16,32], index: 12, kind: output, shape index: {1}]
  %s13 = inlined_call_operand.vmem [shape: bf16[16,32], index: 13, kind: output, shape index: {2}]
  %14 = xla_tuple %s11, %s12, %s13
  %s15 = sld [smem:[#allocation0]]
  $region70: #{rwkv_gpt_forward.12} parent=0
    _
  %s17 = ssub.s32 1, %s15
  %s18 = scalar_select 0, %s17, %s15
  // Predicated region
  $region2: #{rwkv_gpt_forward.12} parent=0 // pred_check
    _
  $region3: #{rwkv_gpt_forward.12} parent=0 // pred_check_branch
    %20 = sbr.rel (0) target = $region5
  $region4: #{rwkv_gpt_forward.12} parent=0 // pred_region
    _
  $region5: #{rwkv_gpt_forward.12} parent=0 // pred_fallthru
    _
  // Predicated region
  $region6: #{rwkv_gpt_forward.12} parent=0 // pred_check
    _
  $region7: #{rwkv_gpt_forward.12} parent=0 // pred_check_branch
    %22 = sbr.rel (0) target = $region9
  $region8: #{rwkv_gpt_forward.12} parent=0 // pred_region
    _
  $region9: #{rwkv_gpt_forward.12} parent=0 // pred_fallthru
    _
  // Predicated region
  $region10: #{rwkv_gpt_forward.12} parent=0 // pred_check
    _
  $region11: #{rwkv_gpt_forward.12} parent=0 // pred_check_branch
    %24 = sbr.rel (0) target = $region13
  $region12: #{rwkv_gpt_forward.12} parent=0 // pred_region
    _
  $region13: #{rwkv_gpt_forward.12} parent=0 // pred_fallthru
    _
  // Predicated region
  $region14: #{rwkv_gpt_forward.12} parent=0 // pred_check
    _
  $region15: #{rwkv_gpt_forward.12} parent=0 // pred_check_branch
    %26 = sbr.rel (0) target = $region17
  $region16: #{rwkv_gpt_forward.12} parent=0 // pred_region
    _
  $region17: #{rwkv_gpt_forward.12} parent=0 // pred_fallthru
    _
  // Predicated region
  $region18: #{rwkv_gpt_forward.12} parent=0 // pred_check
    _
  $region19: #{rwkv_gpt_forward.12} parent=0 // pred_check_branch
    %28 = sbr.rel (0) target = $region21
  $region20: #{rwkv_gpt_forward.12} parent=0 // pred_region
    _
  $region21: #{rwkv_gpt_forward.12} parent=0 // pred_fallthru
    _
  // Predicated region
  $region22: #{rwkv_gpt_forward.12} parent=0 // pred_check
    _
  $region23: #{rwkv_gpt_forward.12} parent=0 // pred_check_branch
    %30 = sbr.rel (0) target = $region25
  $region24: #{rwkv_gpt_forward.12} parent=0 // pred_region
    _
  $region25: #{rwkv_gpt_forward.12} parent=0 // pred_fallthru
    _
  // Predicated region
  $region26: #{rwkv_gpt_forward.12} parent=0 // pred_check
    _
  $region27: #{rwkv_gpt_forward.12} parent=0 // pred_check_branch
    %32 = sbr.rel (0) target = $region29
  $region28: #{rwkv_gpt_forward.12} parent=0 // pred_region
    _
  $region29: #{rwkv_gpt_forward.12} parent=0 // pred_fallthru
    _
  // Predicated region
  $region30: #{rwkv_gpt_forward.12} parent=0 // pred_check
    _
  $region31: #{rwkv_gpt_forward.12} parent=0 // pred_check_branch
    %34 = sbr.rel (0) target = $region33
  $region32: #{rwkv_gpt_forward.12} parent=0 // pred_region
    _
  $region33: #{rwkv_gpt_forward.12} parent=0 // pred_fallthru
    _
  // Predicated region
  $region34: #{rwkv_gpt_forward.12} parent=0 // pred_check
    _
  $region35: #{rwkv_gpt_forward.12} parent=0 // pred_check_branch
    %36 = sbr.rel (0) target = $region37
  $region36: #{rwkv_gpt_forward.12} parent=0 // pred_region
    _
  $region37: #{rwkv_gpt_forward.12} parent=0 // pred_fallthru
    _
  // Predicated region
  $region38: #{rwkv_gpt_forward.12} parent=0 // pred_check
    _
  $region39: #{rwkv_gpt_forward.12} parent=0 // pred_check_branch
    %38 = sbr.rel (0) target = $region41
  $region40: #{rwkv_gpt_forward.12} parent=0 // pred_region
    _
  $region41: #{rwkv_gpt_forward.12} parent=0 // pred_fallthru
    _
  // Predicated region
  $region42: #{rwkv_gpt_forward.12} parent=0 // pred_check
    _
  $region43: #{rwkv_gpt_forward.12} parent=0 // pred_check_branch
    %40 = sbr.rel (0) target = $region45
  $region44: #{rwkv_gpt_forward.12} parent=0 // pred_region
    _
  $region45: #{rwkv_gpt_forward.12} parent=0 // pred_fallthru
    _
  %v42 = vld [vmem:[%s3] sm:$0x1]
  %v43 = vld [vmem:[%s4] sm:$0x1]
  %v44 = vld [vmem:[%s0] sm:$0xff]
  %v45 = vld [vmem:[%s0 + $0x8] sm:$0xff]
  %vm46 = vcmask 261120
  %v47 = vsel %vm46, %v44, 0.0
  %48 = vadd.xlane.f32.xlu0 %v47
  %v49 = vpop.xlane.xlu0 %48
  %v50 = vsel %vm46, %v45, 0.0
  %51 = vadd.xlane.f32.xlu0 %v50
  %v52 = vpop.xlane.xlu0 %51
  %v53 = vrcp.pop 32.0
  %v54 = vmul.f32 %v49, %v53
  %v55 = vmul.f32 %v52, %v53
  %v56 = vsub.f32 %v44, %v54
  %v57 = vsub.f32 %v45, %v55
  %v58 = vmul.f32 %v56, %v56
  %v59 = vmul.f32 %v57, %v57
  %v60 = vsel %vm46, %v58, 0.0
  %61 = vadd.xlane.f32.xlu0 %v60
  %v62 = vpop.xlane.xlu0 %61
  %v63 = vsel %vm46, %v59, 0.0
  %64 = vadd.xlane.f32.xlu0 %v63
  %v65 = vpop.xlane.xlu0 %64
  %v66 = vmul.f32 %v62, %v53
  %v67 = vmul.f32 %v65, %v53
  %v68 = vadd.f32 %v66, 1e-05
  %v69 = vadd.f32 %v67, 1e-05
  %v70 = vrsqrt.pop %v68
  %v71 = vrsqrt.pop %v69
  %v72 = vmul.f32 %v56, %v70
  %v73 = vmul.f32 %v57, %v71
  %v75 = vlaneseq
  %v76 = vshrl.u32 %v75, 7
  %v77 = vsub.s32 0, %v76
  %v78 = vrot.slane %v42, %v77
  %v80 = vmul.f32 %v72, %v78
  %v81 = vmul.f32 %v73, %v78
  %v83 = vlaneseq
  %v84 = vshrl.u32 %v83, 7
  %v85 = vsub.s32 0, %v84
  %v86 = vrot.slane %v43, %v85
  %v88 = vadd.f32 %v80, %v86
  %v89 = vadd.f32 %v81, %v86
  %v90 = vld [vmem:[%s1] sm:$0xff]
  %v91 = vld [vmem:[%s1 + $0x8] sm:$0xff]
  %v92 = vsel %vm46, %v90, 0.0
  %93 = vadd.xlane.f32.xlu0 %v92
  %v94 = vpop.xlane.xlu0 %93
  %v95 = vsel %vm46, %v91, 0.0
  %96 = vadd.xlane.f32.xlu0 %v95
  %v97 = vpop.xlane.xlu0 %96
  %v98 = vmul.f32 %v94, %v53
  %v99 = vmul.f32 %v97, %v53
  %v100 = vsub.f32 %v90, %v98
  %v101 = vsub.f32 %v91, %v99
  %v102 = vmul.f32 %v100, %v100
  %v103 = vmul.f32 %v101, %v101
  %v104 = vsel %vm46, %v102, 0.0
  %105 = vadd.xlane.f32.xlu0 %v104
  %v106 = vpop.xlane.xlu0 %105
  %v107 = vsel %vm46, %v103, 0.0
  %108 = vadd.xlane.f32.xlu0 %v107
  %v109 = vpop.xlane.xlu0 %108
  %v110 = vmul.f32 %v106, %v53
  %v111 = vmul.f32 %v109, %v53
  %v112 = vadd.f32 %v110, 1e-05
  %v113 = vadd.f32 %v111, 1e-05
  %v114 = vrsqrt.pop %v112
  %v115 = vrsqrt.pop %v113
  %v116 = vmul.f32 %v100, %v114
  %v117 = vmul.f32 %v101, %v115
  %v118 = vmul.f32 %v116, %v78
  %v119 = vmul.f32 %v117, %v78
  %v120 = vadd.f32 %v118, %v86
  %v121 = vadd.f32 %v119, %v86
  %v122 = vld [vmem:[%s2] sm:$0xff]
  %v123 = vld [vmem:[%s2 + $0x8] sm:$0xff]
  %125 = vset.pattern.permute.xlu0 0
  %126 = vperm.xlu0 %125, %v122
  %v127 = vpop.permute.xlu0 %126
  %130 = vset.pattern.permute.xlu0 0
  %131 = vperm.xlu0 %130, %v123
  %v132 = vpop.permute.xlu0 %131
  %v134 = vmul.f32 %v120, %v127
  %v135 = vmul.f32 %v121, %v132
  %v136 = vld [vmem:[%s5] sm:$0x1]
  %v137 = vld [vmem:[%s6] sm:$0x1]
  %v138 = vld [vmem:[%s7] sm:$0x1]
  %v140 = vlaneseq
  %v141 = vshrl.u32 %v140, 7
  %v142 = vsub.s32 0, %v141
  %v143 = vrot.slane %v136, %v142
  %v145 = vmul.f32 %v88, %v143
  %v146 = vmul.f32 %v89, %v143
  %v147 = vsub.f32 1.0, %v136
  %v149 = vlaneseq
  %v150 = vshrl.u32 %v149, 7
  %v151 = vsub.s32 0, %v150
  %v152 = vrot.slane %v147, %v151
  %v154 = vmul.f32 %v134, %v152
  %v155 = vmul.f32 %v135, %v152
  %v156 = vadd.f32 %v145, %v154
  %v157 = vadd.f32 %v146, %v155
  %v158 = vpack.c.bf16 %v157, %v156
  %v160 = vlaneseq
  %v161 = vshrl.u32 %v160, 7
  %v162 = vsub.s32 0, %v161
  %v163 = vrot.slane %v137, %v162
  %v165 = vmul.f32 %v88, %v163
  %v166 = vmul.f32 %v89, %v163
  %v167 = vsub.f32 1.0, %v137
  %v169 = vlaneseq
  %v170 = vshrl.u32 %v169, 7
  %v171 = vsub.s32 0, %v170
  %v172 = vrot.slane %v167, %v171
  %v174 = vmul.f32 %v134, %v172
  %v175 = vmul.f32 %v135, %v172
  %v176 = vadd.f32 %v165, %v174
  %v177 = vadd.f32 %v166, %v175
  %v178 = vpack.c.bf16 %v177, %v176
  %v180 = vlaneseq
  %v181 = vshrl.u32 %v180, 7
  %v182 = vsub.s32 0, %v181
  %v183 = vrot.slane %v138, %v182
  %v185 = vmul.f32 %v88, %v183
  %v186 = vmul.f32 %v89, %v183
  %v187 = vsub.f32 1.0, %v138
  %v189 = vlaneseq
  %v190 = vshrl.u32 %v189, 7
  %v191 = vsub.s32 0, %v190
  %v192 = vrot.slane %v187, %v191
  %v194 = vmul.f32 %v134, %v192
  %v195 = vmul.f32 %v135, %v192
  %v196 = vadd.f32 %v185, %v194
  %v197 = vadd.f32 %v186, %v195
  %v198 = vpack.c.bf16 %v197, %v196
  %v199 = vld [vmem:[%s8] sm:$0xf]
  %v200 = vld [vmem:[%s8 + $0x4] sm:$0xf]
  %v201 = vld [vmem:[%s8 + $0x8] sm:$0xf]
  %v202 = vld [vmem:[%s8 + $0xc] sm:$0xf]
  %v207 = vunpack.c.l.b16 %v199
  %v208 = vunpack.c.l.b16 %v200
  %v209 = vunpack.c.l.b16 %v201
  %v210 = vunpack.c.l.b16 %v202
  %v211 = vpack.c.b16 %v208, %v207
  %v212 = vpack.c.b16 %v210, %v209
  %v216 = vsel %vm46, %v158, 0
  %218 = vmatprep.subr.bf16.mxu0 0
  %219 = vmatpush1.bf16.msra.mxu0 0
  %220 = vmatprep.subr.bf16.mxu0 0
  %221 = vmatpush1.bf16.msra.mxu0 0
  %222 = vmatprep.subr.bf16.mxu0 0
  %223 = vmatpush1.bf16.msra.mxu0 0
  %224 = vmatprep.subr.bf16.mxu0 0
  %225 = vmatpush1.bf16.msra.mxu0 0
  %226 = vmatprep.subr.bf16.mxu0 0
  %227 = vmatpush1.bf16.msra.mxu0 0
  %228 = vmatprep.subr.bf16.mxu0 0
  %229 = vmatpush1.bf16.msra.mxu0 0
  %230 = vmatprep.subr.bf16.mxu0 0
  %231 = vmatpush1.bf16.msra.mxu0 %v212
  %232 = vmatprep.subr.bf16.mxu0 0
  %233 = vmatpush1.bf16.msra.mxu0 %v211
  %234 = vmatprep.subr.bf16.mxu0 0
  %235 = vmatpush2.bf16.msra.mxu0 0
  %236 = vmatprep.subr.bf16.mxu0 0
  %237 = vmatpush2.bf16.msra.mxu0 0
  %238 = vmatprep.subr.bf16.mxu0 0
  %239 = vmatpush2.bf16.msra.mxu0 0
  %240 = vmatprep.subr.bf16.mxu0 0
  %241 = vmatpush2.bf16.msra.mxu0 0
  %242 = vmatprep.subr.bf16.mxu0 0
  %243 = vmatpush2.bf16.msra.mxu0 0
  %244 = vmatprep.subr.bf16.mxu0 0
  %245 = vmatpush2.bf16.msra.mxu0 0
  %246 = vmatprep.subr.bf16.mxu0 0
  %247 = vmatpush2.bf16.msra.mxu0 0
  %248 = vmatprep.subr.bf16.mxu0 0
  %249 = vmatpush2.bf16.msra.mxu0 0
  %250 = vmatprep.mubr.bf16.mxu0 0
  %251 = vmatmul.mubr.bf16.gmra.mxu0 %v216
  %v252 = vpop.f32.mrf.mxu0
  %v253 = vadd.f32 0.0, %v252
  %v254 = vpop.f32.mrf.mxu0
  %v255 = vpop.f32.mrf.mxu0
  %v256 = vadd.f32 0.0, %v255
  %v257 = vpop.f32.mrf.mxu0
  %258 = vdwg.mxu0
  %259 = vst.msk [vmem:[%s11] sm:$0xff] %vm46, %v253
  %260 = vst.msk [vmem:[%s11 + $0x8] sm:$0xff] %vm46, %v256
  %v261 = vld [vmem:[%s9] sm:$0xf]
  %v262 = vld [vmem:[%s9 + $0x4] sm:$0xf]
  %v263 = vld [vmem:[%s9 + $0x8] sm:$0xf]
  %v264 = vld [vmem:[%s9 + $0xc] sm:$0xf]
  %v269 = vunpack.c.l.b16 %v261
  %v270 = vunpack.c.l.b16 %v262
  %v271 = vunpack.c.l.b16 %v263
  %v272 = vunpack.c.l.b16 %v264
  %v273 = vpack.c.b16 %v270, %v269
  %v274 = vpack.c.b16 %v272, %v271
  %v278 = vsel %vm46, %v178, 0
  %280 = vmatprep.subr.bf16.mxu0 0
  %281 = vmatpush1.bf16.msra.mxu0 0
  %282 = vmatprep.subr.bf16.mxu0 0
  %283 = vmatpush1.bf16.msra.mxu0 0
  %284 = vmatprep.subr.bf16.mxu0 0
  %285 = vmatpush1.bf16.msra.mxu0 0
  %286 = vmatprep.subr.bf16.mxu0 0
  %287 = vmatpush1.bf16.msra.mxu0 0
  %288 = vmatprep.subr.bf16.mxu0 0
  %289 = vmatpush1.bf16.msra.mxu0 0
  %290 = vmatprep.subr.bf16.mxu0 0
  %291 = vmatpush1.bf16.msra.mxu0 0
  %292 = vmatprep.subr.bf16.mxu0 0
  %293 = vmatpush1.bf16.msra.mxu0 %v274
  %294 = vmatprep.subr.bf16.mxu0 0
  %295 = vmatpush1.bf16.msra.mxu0 %v273
  %296 = vmatprep.subr.bf16.mxu0 0
  %297 = vmatpush2.bf16.msra.mxu0 0
  %298 = vmatprep.subr.bf16.mxu0 0
  %299 = vmatpush2.bf16.msra.mxu0 0
  %300 = vmatprep.subr.bf16.mxu0 0
  %301 = vmatpush2.bf16.msra.mxu0 0
  %302 = vmatprep.subr.bf16.mxu0 0
  %303 = vmatpush2.bf16.msra.mxu0 0
  %304 = vmatprep.subr.bf16.mxu0 0
  %305 = vmatpush2.bf16.msra.mxu0 0
  %306 = vmatprep.subr.bf16.mxu0 0
  %307 = vmatpush2.bf16.msra.mxu0 0
  %308 = vmatprep.subr.bf16.mxu0 0
  %309 = vmatpush2.bf16.msra.mxu0 0
  %310 = vmatprep.subr.bf16.mxu0 0
  %311 = vmatpush2.bf16.msra.mxu0 0
  %312 = vmatprep.mubr.bf16.mxu0 0
  %313 = vmatmul.mubr.bf16.gmra.mxu0 %v278
  %v314 = vpop.f32.mrf.mxu0
  %v315 = vadd.f32 0.0, %v314
  %v316 = vpop.f32.mrf.mxu0
  %v317 = vpop.f32.mrf.mxu0
  %v318 = vadd.f32 0.0, %v317
  %v319 = vpop.f32.mrf.mxu0
  %320 = vdwg.mxu0
  %321 = vst.msk [vmem:[%s12] sm:$0xff] %vm46, %v315
  %322 = vst.msk [vmem:[%s12 + $0x8] sm:$0xff] %vm46, %v318
  %v323 = vld [vmem:[%s10] sm:$0xf]
  %v324 = vld [vmem:[%s10 + $0x4] sm:$0xf]
  %v325 = vld [vmem:[%s10 + $0x8] sm:$0xf]
  %v326 = vld [vmem:[%s10 + $0xc] sm:$0xf]
  %v331 = vunpack.c.l.b16 %v323
  %v332 = vunpack.c.l.b16 %v324
  %v333 = vunpack.c.l.b16 %v325
  %v334 = vunpack.c.l.b16 %v326
  %v335 = vpack.c.b16 %v332, %v331
  %v336 = vpack.c.b16 %v334, %v333
  %v340 = vsel %vm46, %v198, 0
  %342 = vmatprep.subr.bf16.mxu0 0
  %343 = vmatpush1.bf16.msra.mxu0 0
  %344 = vmatprep.subr.bf16.mxu0 0
  %345 = vmatpush1.bf16.msra.mxu0 0
  %346 = vmatprep.subr.bf16.mxu0 0
  %347 = vmatpush1.bf16.msra.mxu0 0
  %348 = vmatprep.subr.bf16.mxu0 0
  %349 = vmatpush1.bf16.msra.mxu0 0
  %350 = vmatprep.subr.bf16.mxu0 0
  %351 = vmatpush1.bf16.msra.mxu0 0
  %352 = vmatprep.subr.bf16.mxu0 0
  %353 = vmatpush1.bf16.msra.mxu0 0
  %354 = vmatprep.subr.bf16.mxu0 0
  %355 = vmatpush1.bf16.msra.mxu0 %v336
  %356 = vmatprep.subr.bf16.mxu0 0
  %357 = vmatpush1.bf16.msra.mxu0 %v335
  %358 = vmatprep.subr.bf16.mxu0 0
  %359 = vmatpush2.bf16.msra.mxu0 0
  %360 = vmatprep.subr.bf16.mxu0 0
  %361 = vmatpush2.bf16.msra.mxu0 0
  %362 = vmatprep.subr.bf16.mxu0 0
  %363 = vmatpush2.bf16.msra.mxu0 0
  %364 = vmatprep.subr.bf16.mxu0 0
  %365 = vmatpush2.bf16.msra.mxu0 0
  %366 = vmatprep.subr.bf16.mxu0 0
  %367 = vmatpush2.bf16.msra.mxu0 0
  %368 = vmatprep.subr.bf16.mxu0 0
  %369 = vmatpush2.bf16.msra.mxu0 0
  %370 = vmatprep.subr.bf16.mxu0 0
  %371 = vmatpush2.bf16.msra.mxu0 0
  %372 = vmatprep.subr.bf16.mxu0 0
  %373 = vmatpush2.bf16.msra.mxu0 0
  %374 = vmatprep.mubr.bf16.mxu0 0
  %375 = vmatmul.mubr.bf16.gmra.mxu0 %v340
  %v376 = vpop.f32.mrf.mxu0
  %v377 = vadd.f32 0.0, %v376
  %v378 = vpop.f32.mrf.mxu0
  %v379 = vpop.f32.mrf.mxu0
  %v380 = vadd.f32 0.0, %v379
  %v381 = vpop.f32.mrf.mxu0
  %382 = vdwg.mxu0
  %v383 = vpack.c.bf16 %v380, %v377
  %v385 = vunpack.c.l.b16 %v383
  %v386 = vunpack.c.h.b16 %v383
  %v387 = vpack.c.b16 %v385, %v385
  %v388 = vpack.c.b16 %v386, %v386
  %vm391 = vcmask 257024
  %392 = vst.msk [vmem:[%s13] sm:$0xf] %vm391, %v387
  %393 = vst.msk [vmem:[%s13 + $0x4] sm:$0xf] %vm391, %v388
  // Predicated region
  $region46: #{rwkv_gpt_forward.12} parent=0 // pred_check
    _
  $region47: #{rwkv_gpt_forward.12} parent=0 // pred_check_branch
    %395 = sbr.rel (0) target = $region49
  $region48: #{rwkv_gpt_forward.12} parent=0 // pred_region
    _
  $region49: #{rwkv_gpt_forward.12} parent=0 // pred_fallthru
    _
  // Predicated region
  $region50: #{rwkv_gpt_forward.12} parent=0 // pred_check
    _
  $region51: #{rwkv_gpt_forward.12} parent=0 // pred_check_branch
    %397 = sbr.rel (0) target = $region53
  $region52: #{rwkv_gpt_forward.12} parent=0 // pred_region
    _
  $region53: #{rwkv_gpt_forward.12} parent=0 // pred_fallthru
    _
  // Predicated region
  $region54: #{rwkv_gpt_forward.12} parent=0 // pred_check
    _
  $region55: #{rwkv_gpt_forward.12} parent=0 // pred_check_branch
    %399 = sbr.rel (0) target = $region57
  $region56: #{rwkv_gpt_forward.12} parent=0 // pred_region
    _
  $region57: #{rwkv_gpt_forward.12} parent=0 // pred_fallthru
    _
  // Predicated region
  $region58: #{rwkv_gpt_forward.12} parent=0 // pred_check
    _
  $region59: #{rwkv_gpt_forward.12} parent=0 // pred_check_branch
    %401 = sbr.rel (0) target = $region61
  $region60: #{rwkv_gpt_forward.12} parent=0 // pred_region
    _
  $region61: #{rwkv_gpt_forward.12} parent=0 // pred_fallthru
    _
  // Predicated region
  $region62: #{rwkv_gpt_forward.12} parent=0 // pred_check
    _
  $region63: #{rwkv_gpt_forward.12} parent=0 // pred_check_branch
    %403 = sbr.rel (0) target = $region65
  $region64: #{rwkv_gpt_forward.12} parent=0 // pred_region
    _
  $region65: #{rwkv_gpt_forward.12} parent=0 // pred_fallthru
    _
  // Predicated region
  $region66: #{rwkv_gpt_forward.12} parent=0 // pred_check
    _
  $region67: #{rwkv_gpt_forward.12} parent=0 // pred_check_branch
    %405 = sbr.rel (0) target = $region69
  $region68: #{rwkv_gpt_forward.12} parent=0 // pred_region
    _
  $region69: #{rwkv_gpt_forward.12} parent=0 // pred_fallthru
    _

// kernel: rwkv_gpt_forward.14
$region0: #{rwkv_gpt_forward.14}
  #allocation0 [shape = 'u32[]', space=smem, size = 0x4, offset = 0x4, fixed_abs, tag = 'smem constant byte address 0x4 - core index']
  #allocation1 [shape = 'u32[144,128]{1,0:T(1,128)}', space=vmem, size = 0x12000, scoped, tag = 'internal scratch']
  %s0 = inlined_call_operand.vmem [shape: bf16[16,32], index: 0, kind: input, shape index: {}]
  %s1 = inlined_call_operand.vmem [shape: f32[16,32], index: 1, kind: input, shape index: {}]
  %s2 = inlined_call_operand.vmem [shape: f32[16,32], index: 2, kind: input, shape index: {}]
  %s3 = inlined_call_operand.vmem [shape: bf16[32,32], index: 3, kind: input, shape index: {}]
  %s4 = inlined_call_operand.vmem [shape: f32[16,32], index: 4, kind: output, shape index: {}]
  %s5 = sld [smem:[#allocation0]]
  $region26: #{rwkv_gpt_forward.14} parent=0
    _
  %s7 = ssub.s32 1, %s5
  %s8 = scalar_select 0, %s7, %s5
  // Predicated region
  $region2: #{rwkv_gpt_forward.14} parent=0 // pred_check
    _
  $region3: #{rwkv_gpt_forward.14} parent=0 // pred_check_branch
    %10 = sbr.rel (0) target = $region5
  $region4: #{rwkv_gpt_forward.14} parent=0 // pred_region
    _
  $region5: #{rwkv_gpt_forward.14} parent=0 // pred_fallthru
    _
  // Predicated region
  $region6: #{rwkv_gpt_forward.14} parent=0 // pred_check
    _
  $region7: #{rwkv_gpt_forward.14} parent=0 // pred_check_branch
    %12 = sbr.rel (0) target = $region9
  $region8: #{rwkv_gpt_forward.14} parent=0 // pred_region
    _
  $region9: #{rwkv_gpt_forward.14} parent=0 // pred_fallthru
    _
  // Predicated region
  $region10: #{rwkv_gpt_forward.14} parent=0 // pred_check
    _
  $region11: #{rwkv_gpt_forward.14} parent=0 // pred_check_branch
    %14 = sbr.rel (0) target = $region13
  $region12: #{rwkv_gpt_forward.14} parent=0 // pred_region
    _
  $region13: #{rwkv_gpt_forward.14} parent=0 // pred_fallthru
    _
  // Predicated region
  $region14: #{rwkv_gpt_forward.14} parent=0 // pred_check
    _
  $region15: #{rwkv_gpt_forward.14} parent=0 // pred_check_branch
    %16 = sbr.rel (0) target = $region17
  $region16: #{rwkv_gpt_forward.14} parent=0 // pred_region
    _
  $region17: #{rwkv_gpt_forward.14} parent=0 // pred_fallthru
    _
  %v18 = vld [vmem:[%s0] sm:$0xf]
  %v19 = vld [vmem:[%s0 + $0x4] sm:$0xf]
  %v20 = vunpack.c.l.bf16 %v18
  %v21 = vunpack.c.l.bf16 %v19
  %v22 = vld [vmem:[%s1] sm:$0xff]
  %v23 = vld [vmem:[%s1 + $0x8] sm:$0xff]
  %v24 = vxor.u32 %v20, 2147483648
  %v25 = vxor.u32 %v21, 2147483648
  %v26 = vmul.f32 %v24, 1.442695
  %v27 = vpow.pop %v26
  %v28 = vmul.f32 %v25, 1.442695
  %v29 = vpow.pop %v28
  %v30 = vadd.f32 %v27, 1.0
  %v31 = vadd.f32 %v29, 1.0
  %v32 = vrcp.pop %v30
  %v33 = vmul.f32 1.0, %v32
  %v34 = vrcp.pop %v31
  %v35 = vmul.f32 1.0, %v34
  %v36 = vmul.f32 %v33, %v22
  %v37 = vmul.f32 %v35, %v23
  %v38 = vpack.c.bf16 %v37, %v36
  %v39 = vld [vmem:[%s2] sm:$0xff]
  %v40 = vld [vmem:[%s2 + $0x8] sm:$0xff]
  %v41 = vld [vmem:[%s3] sm:$0xf]
  %v42 = vld [vmem:[%s3 + $0x4] sm:$0xf]
  %v43 = vld [vmem:[%s3 + $0x8] sm:$0xf]
  %v44 = vld [vmem:[%s3 + $0xc] sm:$0xf]
  %v49 = vunpack.c.l.b16 %v41
  %v50 = vunpack.c.l.b16 %v42
  %v51 = vunpack.c.l.b16 %v43
  %v52 = vunpack.c.l.b16 %v44
  %v53 = vpack.c.b16 %v50, %v49
  %v54 = vpack.c.b16 %v52, %v51
  %vm57 = vcmask 261120
  %v59 = vsel %vm57, %v38, 0
  %61 = vmatprep.subr.bf16.mxu0 0
  %62 = vmatpush1.bf16.msra.mxu0 0
  %63 = vmatprep.subr.bf16.mxu0 0
  %64 = vmatpush1.bf16.msra.mxu0 0
  %65 = vmatprep.subr.bf16.mxu0 0
  %66 = vmatpush1.bf16.msra.mxu0 0
  %67 = vmatprep.subr.bf16.mxu0 0
  %68 = vmatpush1.bf16.msra.mxu0 0
  %69 = vmatprep.subr.bf16.mxu0 0
  %70 = vmatpush1.bf16.msra.mxu0 0
  %71 = vmatprep.subr.bf16.mxu0 0
  %72 = vmatpush1.bf16.msra.mxu0 0
  %73 = vmatprep.subr.bf16.mxu0 0
  %74 = vmatpush1.bf16.msra.mxu0 %v54
  %75 = vmatprep.subr.bf16.mxu0 0
  %76 = vmatpush1.bf16.msra.mxu0 %v53
  %77 = vmatprep.subr.bf16.mxu0 0
  %78 = vmatpush2.bf16.msra.mxu0 0
  %79 = vmatprep.subr.bf16.mxu0 0
  %80 = vmatpush2.bf16.msra.mxu0 0
  %81 = vmatprep.subr.bf16.mxu0 0
  %82 = vmatpush2.bf16.msra.mxu0 0
  %83 = vmatprep.subr.bf16.mxu0 0
  %84 = vmatpush2.bf16.msra.mxu0 0
  %85 = vmatprep.subr.bf16.mxu0 0
  %86 = vmatpush2.bf16.msra.mxu0 0
  %87 = vmatprep.subr.bf16.mxu0 0
  %88 = vmatpush2.bf16.msra.mxu0 0
  %89 = vmatprep.subr.bf16.mxu0 0
  %90 = vmatpush2.bf16.msra.mxu0 0
  %91 = vmatprep.subr.bf16.mxu0 0
  %92 = vmatpush2.bf16.msra.mxu0 0
  %93 = vmatprep.mubr.bf16.mxu0 0
  %94 = vmatmul.mubr.bf16.gmra.mxu0 %v59
  %v95 = vpop.f32.mrf.mxu0
  %v96 = vadd.f32 0.0, %v95
  %v97 = vpop.f32.mrf.mxu0
  %v98 = vpop.f32.mrf.mxu0
  %v99 = vadd.f32 0.0, %v98
  %v100 = vpop.f32.mrf.mxu0
  %101 = vdwg.mxu0
  %v102 = vadd.f32 %v39, %v96
  %v103 = vadd.f32 %v40, %v99
  %104 = vst.msk [vmem:[%s4] sm:$0xff] %vm57, %v102
  %105 = vst.msk [vmem:[%s4 + $0x8] sm:$0xff] %vm57, %v103
  // Predicated region
  $region18: #{rwkv_gpt_forward.14} parent=0 // pred_check
    _
  $region19: #{rwkv_gpt_forward.14} parent=0 // pred_check_branch
    %107 = sbr.rel (0) target = $region21
  $region20: #{rwkv_gpt_forward.14} parent=0 // pred_region
    _
  $region21: #{rwkv_gpt_forward.14} parent=0 // pred_fallthru
    _
  // Predicated region
  $region22: #{rwkv_gpt_forward.14} parent=0 // pred_check
    _
  $region23: #{rwkv_gpt_forward.14} parent=0 // pred_check_branch
    %109 = sbr.rel (0) target = $region25
  $region24: #{rwkv_gpt_forward.14} parent=0 // pred_region
    _
  $region25: #{rwkv_gpt_forward.14} parent=0 // pred_fallthru
    _

// kernel: rwkv_gpt_forward.13
$region0: #{rwkv_gpt_forward.13}
  #allocation0 [shape = 'u32[]', space=smem, size = 0x4, offset = 0x4, fixed_abs, tag = 'smem constant byte address 0x4 - core index']
  #allocation1 [shape = 'u32[144,128]{1,0:T(1,128)}', space=vmem, size = 0x12000, scoped, tag = 'internal scratch']
  #allocation2 [shape = 'f32[8,128]{1,0:T(8,128)}', space=vmem, size = 0x1000, scoped, tag = 'scratch operand']
  #allocation3 [shape = 'f32[8,128]{1,0:T(8,128)}', space=vmem, size = 0x1000, scoped, tag = 'scratch operand']
  #allocation4 [shape = 'f32[8,128]{1,0:T(8,128)}', space=vmem, size = 0x1000, scoped, tag = 'scratch operand']
  %s0 = inlined_call_operand.vmem [shape: f32[8,128], index: 0, kind: input, shape index: {}]
  %s1 = inlined_call_operand.vmem [shape: f32[8,128], index: 1, kind: input, shape index: {}]
  %s2 = inlined_call_operand.vmem [shape: f32[8,8,128], index: 2, kind: input, shape index: {}]
  %s3 = inlined_call_operand.vmem [shape: f32[8,8,128], index: 3, kind: input, shape index: {}]
  %s4 = inlined_call_operand.vmem [shape: f32[8,8,128], index: 4, kind: output, shape index: {}]
  %s5 = sld [smem:[#allocation0]]
  $region30: #{rwkv_gpt_forward.13} parent=0
    _
  %s7 = ssub.s32 1, %s5
  %s8 = scalar_select 0, %s7, %s5
  // Predicated region
  $region2: #{rwkv_gpt_forward.13} parent=0 // pred_check
    _
  $region3: #{rwkv_gpt_forward.13} parent=0 // pred_check_branch
    %10 = sbr.rel (0) target = $region5
  $region4: #{rwkv_gpt_forward.13} parent=0 // pred_region
    _
  $region5: #{rwkv_gpt_forward.13} parent=0 // pred_fallthru
    _
  // Predicated region
  $region6: #{rwkv_gpt_forward.13} parent=0 // pred_check
    _
  $region7: #{rwkv_gpt_forward.13} parent=0 // pred_check_branch
    %12 = sbr.rel (0) target = $region9
  $region8: #{rwkv_gpt_forward.13} parent=0 // pred_region
    _
  $region9: #{rwkv_gpt_forward.13} parent=0 // pred_fallthru
    _
  // Predicated region
  $region10: #{rwkv_gpt_forward.13} parent=0 // pred_check
    _
  $region11: #{rwkv_gpt_forward.13} parent=0 // pred_check_branch
    %14 = sbr.rel (0) target = $region13
  $region12: #{rwkv_gpt_forward.13} parent=0 // pred_region
    _
  $region13: #{rwkv_gpt_forward.13} parent=0 // pred_fallthru
    _
  // Predicated region
  $region14: #{rwkv_gpt_forward.13} parent=0 // pred_check
    _
  $region15: #{rwkv_gpt_forward.13} parent=0 // pred_check_branch
    %16 = sbr.rel (0) target = $region17
  $region16: #{rwkv_gpt_forward.13} parent=0 // pred_region
    _
  $region17: #{rwkv_gpt_forward.13} parent=0 // pred_fallthru
    _
  %p17 = scmp.eq.s32.totalorder 0, 0
  // Predicated region
  $region18: #{rwkv_gpt_forward.13} parent=0 // pred_check
    %p18 = pneg %p17
  $region19: #{rwkv_gpt_forward.13} parent=0 // pred_check_branch
    %20 = sbr.rel (%p18) target = $region21
  $region20: #{rwkv_gpt_forward.13} parent=0 // pred_region
    %21 = vst [vmem:[#allocation2] sm:$0xff] 0.0
    %22 = vst [vmem:[#allocation3] sm:$0xff] 0.0
    %23 = vst [vmem:[#allocation4] sm:$0xff] -1e+38
  $region21: #{rwkv_gpt_forward.13} parent=0 // pred_fallthru
    _
  %v24 = vld [vmem:[%s0] sm:$0xff]
  %v25 = vld [vmem:[%s1] sm:$0xff]
  %v26 = vld [vmem:[#allocation2] sm:$0xff]
  %v27 = vld [vmem:[#allocation3] sm:$0xff]
  %v28 = vld [vmem:[#allocation4] sm:$0xff]
  %v29 = vld [vmem:[%s2] sm:$0xff]
  %v30 = vld [vmem:[%s3] sm:$0xff]
  %v31 = vadd.f32 %v25, %v29
  %v32 = vmax.f32 %v28, %v31
  %v33 = vsub.f32 %v28, %v32
  %v34 = vmul.f32 %v33, 1.442695
  %v35 = vpow.pop %v34
  %v36 = vsub.f32 %v31, %v32
  %v37 = vmul.f32 %v36, 1.442695
  %v38 = vpow.pop %v37
  %v39 = vmul.f32 %v35, %v26
  %v40 = vmul.f32 %v38, %v30
  %v41 = vadd.f32 %v39, %v40
  %v42 = vmul.f32 %v35, %v27
  %v43 = vadd.f32 %v42, %v38
  %v44 = vrcp.pop %v43
  %v45 = vmul.f32 %v43, %v44
  %v46 = vsub.f32 2.0, %v45
  %v47 = vmul.f32 %v44, %v46
  %v48 = vmul.f32 %v41, %v47
  %49 = vst [vmem:[%s4] sm:$0xff] %v48
  %v50 = vadd.f32 %v28, %v24
  %v51 = vmax.f32 %v50, %v29
  %v52 = vsub.f32 %v50, %v51
  %v53 = vmul.f32 %v52, 1.442695
  %v54 = vpow.pop %v53
  %v55 = vsub.f32 %v29, %v51
  %v56 = vmul.f32 %v55, 1.442695
  %v57 = vpow.pop %v56
  %v58 = vmul.f32 %v54, %v26
  %v59 = vmul.f32 %v57, %v30
  %v60 = vadd.f32 %v58, %v59
  %v61 = vmul.f32 %v54, %v27
  %v62 = vadd.f32 %v61, %v57
  %s63 = scalar_lea.vmem %s2, 8
  %v64 = vld [vmem:[%s63] sm:$0xff]
  %s65 = scalar_lea.vmem %s3, 8
  %v66 = vld [vmem:[%s65] sm:$0xff]
  %v67 = vadd.f32 %v25, %v64
  %v68 = vmax.f32 %v51, %v67
  %v69 = vsub.f32 %v51, %v68
  %v70 = vmul.f32 %v69, 1.442695
  %v71 = vpow.pop %v70
  %v72 = vsub.f32 %v67, %v68
  %v73 = vmul.f32 %v72, 1.442695
  %v74 = vpow.pop %v73
  %v75 = vmul.f32 %v71, %v60
  %v76 = vmul.f32 %v74, %v66
  %v77 = vadd.f32 %v75, %v76
  %v78 = vmul.f32 %v71, %v62
  %v79 = vadd.f32 %v78, %v74
  %v80 = vrcp.pop %v79
  %v81 = vmul.f32 %v79, %v80
  %v82 = vsub.f32 2.0, %v81
  %v83 = vmul.f32 %v80, %v82
  %v84 = vmul.f32 %v77, %v83
  %s85 = scalar_lea.vmem %s4, 8
  %86 = vst [vmem:[%s85] sm:$0xff] %v84
  %v87 = vadd.f32 %v51, %v24
  %v88 = vmax.f32 %v87, %v64
  %v89 = vsub.f32 %v87, %v88
  %v90 = vmul.f32 %v89, 1.442695
  %v91 = vpow.pop %v90
  %v92 = vsub.f32 %v64, %v88
  %v93 = vmul.f32 %v92, 1.442695
  %v94 = vpow.pop %v93
  %v95 = vmul.f32 %v91, %v60
  %v96 = vmul.f32 %v94, %v66
  %v97 = vadd.f32 %v95, %v96
  %v98 = vmul.f32 %v91, %v62
  %v99 = vadd.f32 %v98, %v94
  %s100 = scalar_lea.vmem %s2, 16
  %v101 = vld [vmem:[%s100] sm:$0xff]
  %s102 = scalar_lea.vmem %s3, 16
  %v103 = vld [vmem:[%s102] sm:$0xff]
  %v104 = vadd.f32 %v25, %v101
  %v105 = vmax.f32 %v88, %v104
  %v106 = vsub.f32 %v88, %v105
  %v107 = vmul.f32 %v106, 1.442695
  %v108 = vpow.pop %v107
  %v109 = vsub.f32 %v104, %v105
  %v110 = vmul.f32 %v109, 1.442695
  %v111 = vpow.pop %v110
  %v112 = vmul.f32 %v108, %v97
  %v113 = vmul.f32 %v111, %v103
  %v114 = vadd.f32 %v112, %v113
  %v115 = vmul.f32 %v108, %v99
  %v116 = vadd.f32 %v115, %v111
  %v117 = vrcp.pop %v116
  %v118 = vmul.f32 %v116, %v117
  %v119 = vsub.f32 2.0, %v118
  %v120 = vmul.f32 %v117, %v119
  %v121 = vmul.f32 %v114, %v120
  %s122 = scalar_lea.vmem %s4, 16
  %123 = vst [vmem:[%s122] sm:$0xff] %v121
  %v124 = vadd.f32 %v88, %v24
  %v125 = vmax.f32 %v124, %v101
  %v126 = vsub.f32 %v124, %v125
  %v127 = vmul.f32 %v126, 1.442695
  %v128 = vpow.pop %v127
  %v129 = vsub.f32 %v101, %v125
  %v130 = vmul.f32 %v129, 1.442695
  %v131 = vpow.pop %v130
  %v132 = vmul.f32 %v128, %v97
  %v133 = vmul.f32 %v131, %v103
  %v134 = vadd.f32 %v132, %v133
  %v135 = vmul.f32 %v128, %v99
  %v136 = vadd.f32 %v135, %v131
  %s137 = scalar_lea.vmem %s2, 24
  %v138 = vld [vmem:[%s137] sm:$0xff]
  %s139 = scalar_lea.vmem %s3, 24
  %v140 = vld [vmem:[%s139] sm:$0xff]
  %v141 = vadd.f32 %v25, %v138
  %v142 = vmax.f32 %v125, %v141
  %v143 = vsub.f32 %v125, %v142
  %v144 = vmul.f32 %v143, 1.442695
  %v145 = vpow.pop %v144
  %v146 = vsub.f32 %v141, %v142
  %v147 = vmul.f32 %v146, 1.442695
  %v148 = vpow.pop %v147
  %v149 = vmul.f32 %v145, %v134
  %v150 = vmul.f32 %v148, %v140
  %v151 = vadd.f32 %v149, %v150
  %v152 = vmul.f32 %v145, %v136
  %v153 = vadd.f32 %v152, %v148
  %v154 = vrcp.pop %v153
  %v155 = vmul.f32 %v153, %v154
  %v156 = vsub.f32 2.0, %v155
  %v157 = vmul.f32 %v154, %v156
  %v158 = vmul.f32 %v151, %v157
  %s159 = scalar_lea.vmem %s4, 24
  %160 = vst [vmem:[%s159] sm:$0xff] %v158
  %v161 = vadd.f32 %v125, %v24
  %v162 = vmax.f32 %v161, %v138
  %v163 = vsub.f32 %v161, %v162
  %v164 = vmul.f32 %v163, 1.442695
  %v165 = vpow.pop %v164
  %v166 = vsub.f32 %v138, %v162
  %v167 = vmul.f32 %v166, 1.442695
  %v168 = vpow.pop %v167
  %v169 = vmul.f32 %v165, %v134
  %v170 = vmul.f32 %v168, %v140
  %v171 = vadd.f32 %v169, %v170
  %v172 = vmul.f32 %v165, %v136
  %v173 = vadd.f32 %v172, %v168
  %s174 = scalar_lea.vmem %s2, 32
  %v175 = vld [vmem:[%s174] sm:$0xff]
  %s176 = scalar_lea.vmem %s3, 32
  %v177 = vld [vmem:[%s176] sm:$0xff]
  %v178 = vadd.f32 %v25, %v175
  %v179 = vmax.f32 %v162, %v178
  %v180 = vsub.f32 %v162, %v179
  %v181 = vmul.f32 %v180, 1.442695
  %v182 = vpow.pop %v181
  %v183 = vsub.f32 %v178, %v179
  %v184 = vmul.f32 %v183, 1.442695
  %v185 = vpow.pop %v184
  %v186 = vmul.f32 %v182, %v171
  %v187 = vmul.f32 %v185, %v177
  %v188 = vadd.f32 %v186, %v187
  %v189 = vmul.f32 %v182, %v173
  %v190 = vadd.f32 %v189, %v185
  %v191 = vrcp.pop %v190
  %v192 = vmul.f32 %v190, %v191
  %v193 = vsub.f32 2.0, %v192
  %v194 = vmul.f32 %v191, %v193
  %v195 = vmul.f32 %v188, %v194
  %s196 = scalar_lea.vmem %s4, 32
  %197 = vst [vmem:[%s196] sm:$0xff] %v195
  %v198 = vadd.f32 %v162, %v24
  %v199 = vmax.f32 %v198, %v175
  %v200 = vsub.f32 %v198, %v199
  %v201 = vmul.f32 %v200, 1.442695
  %v202 = vpow.pop %v201
  %v203 = vsub.f32 %v175, %v199
  %v204 = vmul.f32 %v203, 1.442695
  %v205 = vpow.pop %v204
  %v206 = vmul.f32 %v202, %v171
  %v207 = vmul.f32 %v205, %v177
  %v208 = vadd.f32 %v206, %v207
  %v209 = vmul.f32 %v202, %v173
  %v210 = vadd.f32 %v209, %v205
  %s211 = scalar_lea.vmem %s2, 40
  %v212 = vld [vmem:[%s211] sm:$0xff]
  %s213 = scalar_lea.vmem %s3, 40
  %v214 = vld [vmem:[%s213] sm:$0xff]
  %v215 = vadd.f32 %v25, %v212
  %v216 = vmax.f32 %v199, %v215
  %v217 = vsub.f32 %v199, %v216
  %v218 = vmul.f32 %v217, 1.442695
  %v219 = vpow.pop %v218
  %v220 = vsub.f32 %v215, %v216
  %v221 = vmul.f32 %v220, 1.442695
  %v222 = vpow.pop %v221
  %v223 = vmul.f32 %v219, %v208
  %v224 = vmul.f32 %v222, %v214
  %v225 = vadd.f32 %v223, %v224
  %v226 = vmul.f32 %v219, %v210
  %v227 = vadd.f32 %v226, %v222
  %v228 = vrcp.pop %v227
  %v229 = vmul.f32 %v227, %v228
  %v230 = vsub.f32 2.0, %v229
  %v231 = vmul.f32 %v228, %v230
  %v232 = vmul.f32 %v225, %v231
  %s233 = scalar_lea.vmem %s4, 40
  %234 = vst [vmem:[%s233] sm:$0xff] %v232
  %v235 = vadd.f32 %v199, %v24
  %v236 = vmax.f32 %v235, %v212
  %v237 = vsub.f32 %v235, %v236
  %v238 = vmul.f32 %v237, 1.442695
  %v239 = vpow.pop %v238
  %v240 = vsub.f32 %v212, %v236
  %v241 = vmul.f32 %v240, 1.442695
  %v242 = vpow.pop %v241
  %v243 = vmul.f32 %v239, %v208
  %v244 = vmul.f32 %v242, %v214
  %v245 = vadd.f32 %v243, %v244
  %v246 = vmul.f32 %v239, %v210
  %v247 = vadd.f32 %v246, %v242
  %s248 = scalar_lea.vmem %s2, 48
  %v249 = vld [vmem:[%s248] sm:$0xff]
  %s250 = scalar_lea.vmem %s3, 48
  %v251 = vld [vmem:[%s250] sm:$0xff]
  %v252 = vadd.f32 %v25, %v249
  %v253 = vmax.f32 %v236, %v252
  %v254 = vsub.f32 %v236, %v253
  %v255 = vmul.f32 %v254, 1.442695
  %v256 = vpow.pop %v255
  %v257 = vsub.f32 %v252, %v253
  %v258 = vmul.f32 %v257, 1.442695
  %v259 = vpow.pop %v258
  %v260 = vmul.f32 %v256, %v245
  %v261 = vmul.f32 %v259, %v251
  %v262 = vadd.f32 %v260, %v261
  %v263 = vmul.f32 %v256, %v247
  %v264 = vadd.f32 %v263, %v259
  %v265 = vrcp.pop %v264
  %v266 = vmul.f32 %v264, %v265
  %v267 = vsub.f32 2.0, %v266
  %v268 = vmul.f32 %v265, %v267
  %v269 = vmul.f32 %v262, %v268
  %s270 = scalar_lea.vmem %s4, 48
  %271 = vst [vmem:[%s270] sm:$0xff] %v269
  %v272 = vadd.f32 %v236, %v24
  %v273 = vmax.f32 %v272, %v249
  %v274 = vsub.f32 %v272, %v273
  %v275 = vmul.f32 %v274, 1.442695
  %v276 = vpow.pop %v275
  %v277 = vsub.f32 %v249, %v273
  %v278 = vmul.f32 %v277, 1.442695
  %v279 = vpow.pop %v278
  %v280 = vmul.f32 %v276, %v245
  %v281 = vmul.f32 %v279, %v251
  %v282 = vadd.f32 %v280, %v281
  %v283 = vmul.f32 %v276, %v247
  %v284 = vadd.f32 %v283, %v279
  %s285 = scalar_lea.vmem %s2, 56
  %v286 = vld [vmem:[%s285] sm:$0xff]
  %s287 = scalar_lea.vmem %s3, 56
  %v288 = vld [vmem:[%s287] sm:$0xff]
  %v289 = vadd.f32 %v25, %v286
  %v290 = vmax.f32 %v273, %v289
  %v291 = vsub.f32 %v273, %v290
  %v292 = vmul.f32 %v291, 1.442695
  %v293 = vpow.pop %v292
  %v294 = vsub.f32 %v289, %v290
  %v295 = vmul.f32 %v294, 1.442695
  %v296 = vpow.pop %v295
  %v297 = vmul.f32 %v293, %v282
  %v298 = vmul.f32 %v296, %v288
  %v299 = vadd.f32 %v297, %v298
  %v300 = vmul.f32 %v293, %v284
  %v301 = vadd.f32 %v300, %v296
  %v302 = vrcp.pop %v301
  %v303 = vmul.f32 %v301, %v302
  %v304 = vsub.f32 2.0, %v303
  %v305 = vmul.f32 %v302, %v304
  %v306 = vmul.f32 %v299, %v305
  %s307 = scalar_lea.vmem %s4, 56
  %308 = vst [vmem:[%s307] sm:$0xff] %v306
  %v309 = vadd.f32 %v273, %v24
  %v310 = vmax.f32 %v309, %v286
  %v311 = vsub.f32 %v309, %v310
  %v312 = vmul.f32 %v311, 1.442695
  %v313 = vpow.pop %v312
  %v314 = vsub.f32 %v286, %v310
  %v315 = vmul.f32 %v314, 1.442695
  %v316 = vpow.pop %v315
  %v317 = vmul.f32 %v313, %v282
  %v318 = vmul.f32 %v316, %v288
  %v319 = vadd.f32 %v317, %v318
  %v320 = vmul.f32 %v313, %v284
  %v321 = vadd.f32 %v320, %v316
  %322 = vst [vmem:[#allocation2] sm:$0xff] %v319
  %323 = vst [vmem:[#allocation3] sm:$0xff] %v321
  %324 = vst [vmem:[#allocation4] sm:$0xff] %v310
  // Predicated region
  $region22: #{rwkv_gpt_forward.13} parent=0 // pred_check
    _
  $region23: #{rwkv_gpt_forward.13} parent=0 // pred_check_branch
    %326 = sbr.rel (0) target = $region25
  $region24: #{rwkv_gpt_forward.13} parent=0 // pred_region
    _
  $region25: #{rwkv_gpt_forward.13} parent=0 // pred_fallthru
    _
  // Predicated region
  $region26: #{rwkv_gpt_forward.13} parent=0 // pred_check
    _
  $region27: #{rwkv_gpt_forward.13} parent=0 // pred_check_branch
    %328 = sbr.rel (0) target = $region29
  $region28: #{rwkv_gpt_forward.13} parent=0 // pred_region
    _
  $region29: #{rwkv_gpt_forward.13} parent=0 // pred_fallthru
    _

// kernel: rwkv_gpt_forward.15
$region0: #{rwkv_gpt_forward.15}
  #allocation0 [shape = 'u32[]', space=smem, size = 0x4, offset = 0x4, fixed_abs, tag = 'smem constant byte address 0x4 - core index']
  #allocation1 [shape = 'u32[144,128]{1,0:T(1,128)}', space=vmem, size = 0x12000, scoped, tag = 'internal scratch']
  %s0 = inlined_call_operand.vmem [shape: f32[16,32], index: 0, kind: input, shape index: {}]
  %s1 = inlined_call_operand.vmem [shape: f32[16,32], index: 1, kind: input, shape index: {}]
  %s2 = inlined_call_operand.vmem [shape: f32[16,1], index: 2, kind: input, shape index: {}]
  %s3 = inlined_call_operand.vmem [shape: f32[1,32], index: 3, kind: input, shape index: {}]
  %s4 = inlined_call_operand.vmem [shape: f32[1,32], index: 4, kind: input, shape index: {}]
  %s5 = inlined_call_operand.vmem [shape: f32[1,32], index: 5, kind: input, shape index: {}]
  %s6 = inlined_call_operand.vmem [shape: f32[1,32], index: 6, kind: input, shape index: {}]
  %s7 = inlined_call_operand.vmem [shape: bf16[32,128], index: 7, kind: input, shape index: {}]
  %s8 = inlined_call_operand.vmem [shape: bf16[128,32], index: 8, kind: input, shape index: {}]
  %s9 = inlined_call_operand.vmem [shape: bf16[32,32], index: 9, kind: input, shape index: {}]
  %s10 = inlined_call_operand.vmem [shape: f32[16,32], index: 10, kind: output, shape index: {}]
  %s11 = sld [smem:[#allocation0]]
  $region50: #{rwkv_gpt_forward.15} parent=0
    _
  %s13 = ssub.s32 1, %s11
  %s14 = scalar_select 0, %s13, %s11
  // Predicated region
  $region2: #{rwkv_gpt_forward.15} parent=0 // pred_check
    _
  $region3: #{rwkv_gpt_forward.15} parent=0 // pred_check_branch
    %16 = sbr.rel (0) target = $region5
  $region4: #{rwkv_gpt_forward.15} parent=0 // pred_region
    _
  $region5: #{rwkv_gpt_forward.15} parent=0 // pred_fallthru
    _
  // Predicated region
  $region6: #{rwkv_gpt_forward.15} parent=0 // pred_check
    _
  $region7: #{rwkv_gpt_forward.15} parent=0 // pred_check_branch
    %18 = sbr.rel (0) target = $region9
  $region8: #{rwkv_gpt_forward.15} parent=0 // pred_region
    _
  $region9: #{rwkv_gpt_forward.15} parent=0 // pred_fallthru
    _
  // Predicated region
  $region10: #{rwkv_gpt_forward.15} parent=0 // pred_check
    _
  $region11: #{rwkv_gpt_forward.15} parent=0 // pred_check_branch
    %20 = sbr.rel (0) target = $region13
  $region12: #{rwkv_gpt_forward.15} parent=0 // pred_region
    _
  $region13: #{rwkv_gpt_forward.15} parent=0 // pred_fallthru
    _
  // Predicated region
  $region14: #{rwkv_gpt_forward.15} parent=0 // pred_check
    _
  $region15: #{rwkv_gpt_forward.15} parent=0 // pred_check_branch
    %22 = sbr.rel (0) target = $region17
  $region16: #{rwkv_gpt_forward.15} parent=0 // pred_region
    _
  $region17: #{rwkv_gpt_forward.15} parent=0 // pred_fallthru
    _
  // Predicated region
  $region18: #{rwkv_gpt_forward.15} parent=0 // pred_check
    _
  $region19: #{rwkv_gpt_forward.15} parent=0 // pred_check_branch
    %24 = sbr.rel (0) target = $region21
  $region20: #{rwkv_gpt_forward.15} parent=0 // pred_region
    _
  $region21: #{rwkv_gpt_forward.15} parent=0 // pred_fallthru
    _
  // Predicated region
  $region22: #{rwkv_gpt_forward.15} parent=0 // pred_check
    _
  $region23: #{rwkv_gpt_forward.15} parent=0 // pred_check_branch
    %26 = sbr.rel (0) target = $region25
  $region24: #{rwkv_gpt_forward.15} parent=0 // pred_region
    _
  $region25: #{rwkv_gpt_forward.15} parent=0 // pred_fallthru
    _
  // Predicated region
  $region26: #{rwkv_gpt_forward.15} parent=0 // pred_check
    _
  $region27: #{rwkv_gpt_forward.15} parent=0 // pred_check_branch
    %28 = sbr.rel (0) target = $region29
  $region28: #{rwkv_gpt_forward.15} parent=0 // pred_region
    _
  $region29: #{rwkv_gpt_forward.15} parent=0 // pred_fallthru
    _
  // Predicated region
  $region30: #{rwkv_gpt_forward.15} parent=0 // pred_check
    _
  $region31: #{rwkv_gpt_forward.15} parent=0 // pred_check_branch
    %30 = sbr.rel (0) target = $region33
  $region32: #{rwkv_gpt_forward.15} parent=0 // pred_region
    _
  $region33: #{rwkv_gpt_forward.15} parent=0 // pred_fallthru
    _
  // Predicated region
  $region34: #{rwkv_gpt_forward.15} parent=0 // pred_check
    _
  $region35: #{rwkv_gpt_forward.15} parent=0 // pred_check_branch
    %32 = sbr.rel (0) target = $region37
  $region36: #{rwkv_gpt_forward.15} parent=0 // pred_region
    _
  $region37: #{rwkv_gpt_forward.15} parent=0 // pred_fallthru
    _
  // Predicated region
  $region38: #{rwkv_gpt_forward.15} parent=0 // pred_check
    _
  $region39: #{rwkv_gpt_forward.15} parent=0 // pred_check_branch
    %34 = sbr.rel (0) target = $region41
  $region40: #{rwkv_gpt_forward.15} parent=0 // pred_region
    _
  $region41: #{rwkv_gpt_forward.15} parent=0 // pred_fallthru
    _
  %v36 = vld [vmem:[%s3] sm:$0x1]
  %v37 = vld [vmem:[%s4] sm:$0x1]
  %v38 = vld [vmem:[%s0] sm:$0xff]
  %v39 = vld [vmem:[%s0 + $0x8] sm:$0xff]
  %vm40 = vcmask 261120
  %v41 = vsel %vm40, %v38, 0.0
  %42 = vadd.xlane.f32.xlu0 %v41
  %v43 = vpop.xlane.xlu0 %42
  %v44 = vsel %vm40, %v39, 0.0
  %45 = vadd.xlane.f32.xlu0 %v44
  %v46 = vpop.xlane.xlu0 %45
  %v47 = vrcp.pop 32.0
  %v48 = vmul.f32 %v43, %v47
  %v49 = vmul.f32 %v46, %v47
  %v50 = vsub.f32 %v38, %v48
  %v51 = vsub.f32 %v39, %v49
  %v52 = vmul.f32 %v50, %v50
  %v53 = vmul.f32 %v51, %v51
  %v54 = vsel %vm40, %v52, 0.0
  %55 = vadd.xlane.f32.xlu0 %v54
  %v56 = vpop.xlane.xlu0 %55
  %v57 = vsel %vm40, %v53, 0.0
  %58 = vadd.xlane.f32.xlu0 %v57
  %v59 = vpop.xlane.xlu0 %58
  %v60 = vmul.f32 %v56, %v47
  %v61 = vmul.f32 %v59, %v47
  %v62 = vadd.f32 %v60, 1e-05
  %v63 = vadd.f32 %v61, 1e-05
  %v64 = vrsqrt.pop %v62
  %v65 = vrsqrt.pop %v63
  %v66 = vmul.f32 %v50, %v64
  %v67 = vmul.f32 %v51, %v65
  %v69 = vlaneseq
  %v70 = vshrl.u32 %v69, 7
  %v71 = vsub.s32 0, %v70
  %v72 = vrot.slane %v36, %v71
  %v74 = vmul.f32 %v66, %v72
  %v75 = vmul.f32 %v67, %v72
  %v77 = vlaneseq
  %v78 = vshrl.u32 %v77, 7
  %v79 = vsub.s32 0, %v78
  %v80 = vrot.slane %v37, %v79
  %v82 = vadd.f32 %v74, %v80
  %v83 = vadd.f32 %v75, %v80
  %v84 = vld [vmem:[%s1] sm:$0xff]
  %v85 = vld [vmem:[%s1 + $0x8] sm:$0xff]
  %v86 = vsel %vm40, %v84, 0.0
  %87 = vadd.xlane.f32.xlu0 %v86
  %v88 = vpop.xlane.xlu0 %87
  %v89 = vsel %vm40, %v85, 0.0
  %90 = vadd.xlane.f32.xlu0 %v89
  %v91 = vpop.xlane.xlu0 %90
  %v92 = vmul.f32 %v88, %v47
  %v93 = vmul.f32 %v91, %v47
  %v94 = vsub.f32 %v84, %v92
  %v95 = vsub.f32 %v85, %v93
  %v96 = vmul.f32 %v94, %v94
  %v97 = vmul.f32 %v95, %v95
  %v98 = vsel %vm40, %v96, 0.0
  %99 = vadd.xlane.f32.xlu0 %v98
  %v100 = vpop.xlane.xlu0 %99
  %v101 = vsel %vm40, %v97, 0.0
  %102 = vadd.xlane.f32.xlu0 %v101
  %v103 = vpop.xlane.xlu0 %102
  %v104 = vmul.f32 %v100, %v47
  %v105 = vmul.f32 %v103, %v47
  %v106 = vadd.f32 %v104, 1e-05
  %v107 = vadd.f32 %v105, 1e-05
  %v108 = vrsqrt.pop %v106
  %v109 = vrsqrt.pop %v107
  %v110 = vmul.f32 %v94, %v108
  %v111 = vmul.f32 %v95, %v109
  %v112 = vmul.f32 %v110, %v72
  %v113 = vmul.f32 %v111, %v72
  %v114 = vadd.f32 %v112, %v80
  %v115 = vadd.f32 %v113, %v80
  %v116 = vld [vmem:[%s2] sm:$0xff]
  %v117 = vld [vmem:[%s2 + $0x8] sm:$0xff]
  %119 = vset.pattern.permute.xlu0 0
  %120 = vperm.xlu0 %119, %v116
  %v121 = vpop.permute.xlu0 %120
  %124 = vset.pattern.permute.xlu0 0
  %125 = vperm.xlu0 %124, %v117
  %v126 = vpop.permute.xlu0 %125
  %v128 = vmul.f32 %v114, %v121
  %v129 = vmul.f32 %v115, %v126
  %v130 = vld [vmem:[%s5] sm:$0x1]
  %v131 = vld [vmem:[%s6] sm:$0x1]
  %v133 = vlaneseq
  %v134 = vshrl.u32 %v133, 7
  %v135 = vsub.s32 0, %v134
  %v136 = vrot.slane %v130, %v135
  %v138 = vmul.f32 %v82, %v136
  %v139 = vmul.f32 %v83, %v136
  %v140 = vsub.f32 1.0, %v130
  %v142 = vlaneseq
  %v143 = vshrl.u32 %v142, 7
  %v144 = vsub.s32 0, %v143
  %v145 = vrot.slane %v140, %v144
  %v147 = vmul.f32 %v128, %v145
  %v148 = vmul.f32 %v129, %v145
  %v149 = vadd.f32 %v138, %v147
  %v150 = vadd.f32 %v139, %v148
  %v151 = vpack.c.bf16 %v150, %v149
  %v153 = vlaneseq
  %v154 = vshrl.u32 %v153, 7
  %v155 = vsub.s32 0, %v154
  %v156 = vrot.slane %v131, %v155
  %v158 = vmul.f32 %v82, %v156
  %v159 = vmul.f32 %v83, %v156
  %v160 = vsub.f32 1.0, %v131
  %v162 = vlaneseq
  %v163 = vshrl.u32 %v162, 7
  %v164 = vsub.s32 0, %v163
  %v165 = vrot.slane %v160, %v164
  %v167 = vmul.f32 %v128, %v165
  %v168 = vmul.f32 %v129, %v165
  %v169 = vadd.f32 %v158, %v167
  %v170 = vadd.f32 %v159, %v168
  %v171 = vpack.c.bf16 %v170, %v169
  %v172 = vld [vmem:[%s7] sm:$0xf]
  %v173 = vld [vmem:[%s7 + $0x4] sm:$0xf]
  %v174 = vld [vmem:[%s7 + $0x8] sm:$0xf]
  %v175 = vld [vmem:[%s7 + $0xc] sm:$0xf]
  %v180 = vunpack.c.l.b16 %v172
  %v181 = vunpack.c.l.b16 %v173
  %v182 = vunpack.c.l.b16 %v174
  %v183 = vunpack.c.l.b16 %v175
  %v184 = vpack.c.b16 %v181, %v180
  %v185 = vpack.c.b16 %v183, %v182
  %v189 = vsel %vm40, %v151, 0
  %191 = vmatprep.subr.bf16.mxu0 0
  %192 = vmatpush1.bf16.msra.mxu0 0
  %193 = vmatprep.subr.bf16.mxu0 0
  %194 = vmatpush1.bf16.msra.mxu0 0
  %195 = vmatprep.subr.bf16.mxu0 0
  %196 = vmatpush1.bf16.msra.mxu0 0
  %197 = vmatprep.subr.bf16.mxu0 0
  %198 = vmatpush1.bf16.msra.mxu0 0
  %199 = vmatprep.subr.bf16.mxu0 0
  %200 = vmatpush1.bf16.msra.mxu0 0
  %201 = vmatprep.subr.bf16.mxu0 0
  %202 = vmatpush1.bf16.msra.mxu0 0
  %203 = vmatprep.subr.bf16.mxu0 0
  %204 = vmatpush1.bf16.msra.mxu0 %v185
  %205 = vmatprep.subr.bf16.mxu0 0
  %206 = vmatpush1.bf16.msra.mxu0 %v184
  %207 = vmatprep.subr.bf16.mxu0 0
  %208 = vmatpush2.bf16.msra.mxu0 0
  %209 = vmatprep.subr.bf16.mxu0 0
  %210 = vmatpush2.bf16.msra.mxu0 0
  %211 = vmatprep.subr.bf16.mxu0 0
  %212 = vmatpush2.bf16.msra.mxu0 0
  %213 = vmatprep.subr.bf16.mxu0 0
  %214 = vmatpush2.bf16.msra.mxu0 0
  %215 = vmatprep.subr.bf16.mxu0 0
  %216 = vmatpush2.bf16.msra.mxu0 0
  %217 = vmatprep.subr.bf16.mxu0 0
  %218 = vmatpush2.bf16.msra.mxu0 0
  %219 = vmatprep.subr.bf16.mxu0 0
  %220 = vmatpush2.bf16.msra.mxu0 0
  %221 = vmatprep.subr.bf16.mxu0 0
  %222 = vmatpush2.bf16.msra.mxu0 0
  %223 = vmatprep.mubr.bf16.mxu0 0
  %224 = vmatmul.mubr.bf16.gmra.mxu0 %v189
  %v225 = vpop.f32.mrf.mxu0
  %v226 = vadd.f32 0.0, %v225
  %v227 = vpop.f32.mrf.mxu0
  %v228 = vpop.f32.mrf.mxu0
  %v229 = vadd.f32 0.0, %v228
  %v230 = vpop.f32.mrf.mxu0
  %231 = vdwg.mxu0
  %v232 = vmax.f32 %v226, 0.0
  %v233 = vmax.f32 %v229, 0.0
  %v234 = vmul.f32 %v232, %v232
  %v235 = vmul.f32 %v233, %v233
  %v236 = vpack.c.bf16 %v235, %v234
  %v237 = vld [vmem:[%s8] sm:$0xf]
  %v238 = vld [vmem:[%s8 + $0x4] sm:$0xf]
  %v239 = vld [vmem:[%s8 + $0x8] sm:$0xf]
  %v240 = vld [vmem:[%s8 + $0xc] sm:$0xf]
  %v241 = vld [vmem:[%s8 + $0x10] sm:$0xf]
  %v242 = vld [vmem:[%s8 + $0x14] sm:$0xf]
  %v243 = vld [vmem:[%s8 + $0x18] sm:$0xf]
  %v244 = vld [vmem:[%s8 + $0x1c] sm:$0xf]
  %v245 = vld [vmem:[%s8 + $0x20] sm:$0xf]
  %v246 = vld [vmem:[%s8 + $0x24] sm:$0xf]
  %v247 = vld [vmem:[%s8 + $0x28] sm:$0xf]
  %v248 = vld [vmem:[%s8 + $0x2c] sm:$0xf]
  %v249 = vld [vmem:[%s8 + $0x30] sm:$0xf]
  %v250 = vld [vmem:[%s8 + $0x34] sm:$0xf]
  %v251 = vld [vmem:[%s8 + $0x38] sm:$0xf]
  %v252 = vld [vmem:[%s8 + $0x3c] sm:$0xf]
  %v269 = vunpack.c.l.b16 %v237
  %v270 = vunpack.c.l.b16 %v238
  %v271 = vunpack.c.l.b16 %v239
  %v272 = vunpack.c.l.b16 %v240
  %v273 = vunpack.c.l.b16 %v241
  %v274 = vunpack.c.l.b16 %v242
  %v275 = vunpack.c.l.b16 %v243
  %v276 = vunpack.c.l.b16 %v244
  %v277 = vunpack.c.l.b16 %v245
  %v278 = vunpack.c.l.b16 %v246
  %v279 = vunpack.c.l.b16 %v247
  %v280 = vunpack.c.l.b16 %v248
  %v281 = vunpack.c.l.b16 %v249
  %v282 = vunpack.c.l.b16 %v250
  %v283 = vunpack.c.l.b16 %v251
  %v284 = vunpack.c.l.b16 %v252
  %v285 = vpack.c.b16 %v270, %v269
  %v286 = vpack.c.b16 %v272, %v271
  %v287 = vpack.c.b16 %v274, %v273
  %v288 = vpack.c.b16 %v276, %v275
  %v289 = vpack.c.b16 %v278, %v277
  %v290 = vpack.c.b16 %v280, %v279
  %v291 = vpack.c.b16 %v282, %v281
  %v292 = vpack.c.b16 %v284, %v283
  %301 = vmatprep.subr.bf16.mxu0 0
  %302 = vmatpush1.bf16.msra.mxu0 %v292
  %303 = vmatprep.subr.bf16.mxu0 0
  %304 = vmatpush1.bf16.msra.mxu0 %v291
  %305 = vmatprep.subr.bf16.mxu0 0
  %306 = vmatpush1.bf16.msra.mxu0 %v290
  %307 = vmatprep.subr.bf16.mxu0 0
  %308 = vmatpush1.bf16.msra.mxu0 %v289
  %309 = vmatprep.subr.bf16.mxu0 0
  %310 = vmatpush1.bf16.msra.mxu0 %v288
  %311 = vmatprep.subr.bf16.mxu0 0
  %312 = vmatpush1.bf16.msra.mxu0 %v287
  %313 = vmatprep.subr.bf16.mxu0 0
  %314 = vmatpush1.bf16.msra.mxu0 %v286
  %315 = vmatprep.subr.bf16.mxu0 0
  %316 = vmatpush1.bf16.msra.mxu0 %v285
  %317 = vmatprep.subr.bf16.mxu0 0
  %318 = vmatpush2.bf16.msra.mxu0 0
  %319 = vmatprep.subr.bf16.mxu0 0
  %320 = vmatpush2.bf16.msra.mxu0 0
  %321 = vmatprep.subr.bf16.mxu0 0
  %322 = vmatpush2.bf16.msra.mxu0 0
  %323 = vmatprep.subr.bf16.mxu0 0
  %324 = vmatpush2.bf16.msra.mxu0 0
  %325 = vmatprep.subr.bf16.mxu0 0
  %326 = vmatpush2.bf16.msra.mxu0 0
  %327 = vmatprep.subr.bf16.mxu0 0
  %328 = vmatpush2.bf16.msra.mxu0 0
  %329 = vmatprep.subr.bf16.mxu0 0
  %330 = vmatpush2.bf16.msra.mxu0 0
  %331 = vmatprep.subr.bf16.mxu0 0
  %332 = vmatpush2.bf16.msra.mxu0 0
  %333 = vmatprep.mubr.bf16.mxu0 0
  %334 = vmatmul.mubr.bf16.gmra.mxu0 %v236
  %v335 = vpop.f32.mrf.mxu0
  %v336 = vadd.f32 0.0, %v335
  %v337 = vpop.f32.mrf.mxu0
  %v338 = vpop.f32.mrf.mxu0
  %v339 = vadd.f32 0.0, %v338
  %v340 = vpop.f32.mrf.mxu0
  %341 = vdwg.mxu0
  %v342 = vld [vmem:[%s9] sm:$0xf]
  %v343 = vld [vmem:[%s9 + $0x4] sm:$0xf]
  %v344 = vld [vmem:[%s9 + $0x8] sm:$0xf]
  %v345 = vld [vmem:[%s9 + $0xc] sm:$0xf]
  %v350 = vunpack.c.l.b16 %v342
  %v351 = vunpack.c.l.b16 %v343
  %v352 = vunpack.c.l.b16 %v344
  %v353 = vunpack.c.l.b16 %v345
  %v354 = vpack.c.b16 %v351, %v350
  %v355 = vpack.c.b16 %v353, %v352
  %v359 = vsel %vm40, %v171, 0
  %361 = vmatprep.subr.bf16.mxu0 0
  %362 = vmatpush1.bf16.msra.mxu0 0
  %363 = vmatprep.subr.bf16.mxu0 0
  %364 = vmatpush1.bf16.msra.mxu0 0
  %365 = vmatprep.subr.bf16.mxu0 0
  %366 = vmatpush1.bf16.msra.mxu0 0
  %367 = vmatprep.subr.bf16.mxu0 0
  %368 = vmatpush1.bf16.msra.mxu0 0
  %369 = vmatprep.subr.bf16.mxu0 0
  %370 = vmatpush1.bf16.msra.mxu0 0
  %371 = vmatprep.subr.bf16.mxu0 0
  %372 = vmatpush1.bf16.msra.mxu0 0
  %373 = vmatprep.subr.bf16.mxu0 0
  %374 = vmatpush1.bf16.msra.mxu0 %v355
  %375 = vmatprep.subr.bf16.mxu0 0
  %376 = vmatpush1.bf16.msra.mxu0 %v354
  %377 = vmatprep.subr.bf16.mxu0 0
  %378 = vmatpush2.bf16.msra.mxu0 0
  %379 = vmatprep.subr.bf16.mxu0 0
  %380 = vmatpush2.bf16.msra.mxu0 0
  %381 = vmatprep.subr.bf16.mxu0 0
  %382 = vmatpush2.bf16.msra.mxu0 0
  %383 = vmatprep.subr.bf16.mxu0 0
  %384 = vmatpush2.bf16.msra.mxu0 0
  %385 = vmatprep.subr.bf16.mxu0 0
  %386 = vmatpush2.bf16.msra.mxu0 0
  %387 = vmatprep.subr.bf16.mxu0 0
  %388 = vmatpush2.bf16.msra.mxu0 0
  %389 = vmatprep.subr.bf16.mxu0 0
  %390 = vmatpush2.bf16.msra.mxu0 0
  %391 = vmatprep.subr.bf16.mxu0 0
  %392 = vmatpush2.bf16.msra.mxu0 0
  %393 = vmatprep.mubr.bf16.mxu0 0
  %394 = vmatmul.mubr.bf16.gmra.mxu0 %v359
  %v395 = vpop.f32.mrf.mxu0
  %v396 = vadd.f32 0.0, %v395
  %v397 = vpop.f32.mrf.mxu0
  %v398 = vpop.f32.mrf.mxu0
  %v399 = vadd.f32 0.0, %v398
  %v400 = vpop.f32.mrf.mxu0
  %401 = vdwg.mxu0
  %v402 = vxor.u32 %v396, 2147483648
  %v403 = vxor.u32 %v399, 2147483648
  %v404 = vmul.f32 %v402, 1.442695
  %v405 = vpow.pop %v404
  %v406 = vmul.f32 %v403, 1.442695
  %v407 = vpow.pop %v406
  %v408 = vadd.f32 %v405, 1.0
  %v409 = vadd.f32 %v407, 1.0
  %v410 = vrcp.pop %v408
  %v411 = vmul.f32 1.0, %v410
  %v412 = vrcp.pop %v409
  %v413 = vmul.f32 1.0, %v412
  %v414 = vmul.f32 %v411, %v336
  %v415 = vmul.f32 %v413, %v339
  %v416 = vadd.f32 %v38, %v414
  %v417 = vadd.f32 %v39, %v415
  %418 = vst.msk [vmem:[%s10] sm:$0xff] %vm40, %v416
  %419 = vst.msk [vmem:[%s10 + $0x8] sm:$0xff] %vm40, %v417
  // Predicated region
  $region42: #{rwkv_gpt_forward.15} parent=0 // pred_check
    _
  $region43: #{rwkv_gpt_forward.15} parent=0 // pred_check_branch
    %421 = sbr.rel (0) target = $region45
  $region44: #{rwkv_gpt_forward.15} parent=0 // pred_region
    _
  $region45: #{rwkv_gpt_forward.15} parent=0 // pred_fallthru
    _
  // Predicated region
  $region46: #{rwkv_gpt_forward.15} parent=0 // pred_check
    _
  $region47: #{rwkv_gpt_forward.15} parent=0 // pred_check_branch
    %423 = sbr.rel (0) target = $region49
  $region48: #{rwkv_gpt_forward.15} parent=0 // pred_region
    _
  $region49: #{rwkv_gpt_forward.15} parent=0 // pred_fallthru
    _

// kernel: rwkv_gpt_forward.20
$region0: #{rwkv_gpt_forward.20}
  #allocation0 [shape = 'u32[]', space=smem, size = 0x4, offset = 0x4, fixed_abs, tag = 'smem constant byte address 0x4 - core index']
  #allocation1 [shape = 'u32[144,128]{1,0:T(1,128)}', space=vmem, size = 0x12000, scoped, tag = 'internal scratch']
  %s0 = inlined_call_operand.vmem [shape: f32[16,32], index: 0, kind: input, shape index: {}]
  %s1 = inlined_call_operand.vmem [shape: f32[1,32], index: 1, kind: input, shape index: {}]
  %s2 = inlined_call_operand.vmem [shape: f32[1,32], index: 2, kind: input, shape index: {}]
  %s3 = inlined_call_operand.vmem [shape: bf16[16,32], index: 3, kind: output, shape index: {}]
  %s4 = sld [smem:[#allocation0]]
  $region22: #{rwkv_gpt_forward.20} parent=0
    _
  %s6 = ssub.s32 1, %s4
  %s7 = scalar_select 0, %s6, %s4
  // Predicated region
  $region2: #{rwkv_gpt_forward.20} parent=0 // pred_check
    _
  $region3: #{rwkv_gpt_forward.20} parent=0 // pred_check_branch
    %9 = sbr.rel (0) target = $region5
  $region4: #{rwkv_gpt_forward.20} parent=0 // pred_region
    _
  $region5: #{rwkv_gpt_forward.20} parent=0 // pred_fallthru
    _
  // Predicated region
  $region6: #{rwkv_gpt_forward.20} parent=0 // pred_check
    _
  $region7: #{rwkv_gpt_forward.20} parent=0 // pred_check_branch
    %11 = sbr.rel (0) target = $region9
  $region8: #{rwkv_gpt_forward.20} parent=0 // pred_region
    _
  $region9: #{rwkv_gpt_forward.20} parent=0 // pred_fallthru
    _
  // Predicated region
  $region10: #{rwkv_gpt_forward.20} parent=0 // pred_check
    _
  $region11: #{rwkv_gpt_forward.20} parent=0 // pred_check_branch
    %13 = sbr.rel (0) target = $region13
  $region12: #{rwkv_gpt_forward.20} parent=0 // pred_region
    _
  $region13: #{rwkv_gpt_forward.20} parent=0 // pred_fallthru
    _
  %v14 = vld [vmem:[%s0] sm:$0xff]
  %v15 = vld [vmem:[%s0 + $0x8] sm:$0xff]
  %v16 = vld [vmem:[%s1] sm:$0x1]
  %v17 = vld [vmem:[%s2] sm:$0x1]
  %vm18 = vcmask 261120
  %v19 = vsel %vm18, %v14, 0.0
  %20 = vadd.xlane.f32.xlu0 %v19
  %v21 = vpop.xlane.xlu0 %20
  %v22 = vsel %vm18, %v15, 0.0
  %23 = vadd.xlane.f32.xlu0 %v22
  %v24 = vpop.xlane.xlu0 %23
  %v25 = vrcp.pop 32.0
  %v26 = vmul.f32 %v21, %v25
  %v27 = vmul.f32 %v24, %v25
  %v28 = vsub.f32 %v14, %v26
  %v29 = vsub.f32 %v15, %v27
  %v30 = vmul.f32 %v28, %v28
  %v31 = vmul.f32 %v29, %v29
  %v32 = vsel %vm18, %v30, 0.0
  %33 = vadd.xlane.f32.xlu0 %v32
  %v34 = vpop.xlane.xlu0 %33
  %v35 = vsel %vm18, %v31, 0.0
  %36 = vadd.xlane.f32.xlu0 %v35
  %v37 = vpop.xlane.xlu0 %36
  %v38 = vmul.f32 %v34, %v25
  %v39 = vmul.f32 %v37, %v25
  %v40 = vadd.f32 %v38, 1e-05
  %v41 = vadd.f32 %v39, 1e-05
  %v42 = vrsqrt.pop %v40
  %v43 = vrsqrt.pop %v41
  %v44 = vmul.f32 %v28, %v42
  %v45 = vmul.f32 %v29, %v43
  %v47 = vlaneseq
  %v48 = vshrl.u32 %v47, 7
  %v49 = vsub.s32 0, %v48
  %v50 = vrot.slane %v16, %v49
  %v52 = vmul.f32 %v44, %v50
  %v53 = vmul.f32 %v45, %v50
  %v55 = vlaneseq
  %v56 = vshrl.u32 %v55, 7
  %v57 = vsub.s32 0, %v56
  %v58 = vrot.slane %v17, %v57
  %v60 = vadd.f32 %v52, %v58
  %v61 = vadd.f32 %v53, %v58
  %v62 = vpack.c.bf16 %v61, %v60
  %v64 = vunpack.c.l.b16 %v62
  %v65 = vunpack.c.h.b16 %v62
  %v66 = vpack.c.b16 %v64, %v64
  %v67 = vpack.c.b16 %v65, %v65
  %vm70 = vcmask 257024
  %71 = vst.msk [vmem:[%s3] sm:$0xf] %vm70, %v66
  %72 = vst.msk [vmem:[%s3 + $0x4] sm:$0xf] %vm70, %v67
  // Predicated region
  $region14: #{rwkv_gpt_forward.20} parent=0 // pred_check
    _
  $region15: #{rwkv_gpt_forward.20} parent=0 // pred_check_branch
    %74 = sbr.rel (0) target = $region17
  $region16: #{rwkv_gpt_forward.20} parent=0 // pred_region
    _
  $region17: #{rwkv_gpt_forward.20} parent=0 // pred_fallthru
    _
  // Predicated region
  $region18: #{rwkv_gpt_forward.20} parent=0 // pred_check
    _
  $region19: #{rwkv_gpt_forward.20} parent=0 // pred_check_branch
    %76 = sbr.rel (0) target = $region21
  $region20: #{rwkv_gpt_forward.20} parent=0 // pred_region
    _
  $region21: #{rwkv_gpt_forward.20} parent=0 // pred_fallthru
    _

// kernel: rwkv_gpt_forward.21
$region0: #{rwkv_gpt_forward.21}
  #allocation0 [shape = 'u32[]', space=smem, size = 0x4, offset = 0x4, fixed_abs, tag = 'smem constant byte address 0x4 - core index']
  #allocation1 [shape = 'u32[144,128]{1,0:T(1,128)}', space=vmem, size = 0x12000, scoped, tag = 'internal scratch']
  %s0 = inlined_call_operand.vmem [shape: bf16[16,128], index: 0, kind: input, shape index: {}]
  %s1 = inlined_call_operand.vmem [shape: bf16[128,512], index: 1, kind: input, shape index: {}]
  %s2 = inlined_call_operand.vmem [shape: f32[16,512], index: 2, kind: output, shape index: {}]
  %s3 = sld [smem:[#allocation0]]
  $region18: #{rwkv_gpt_forward.21} parent=0
    _
  %s5 = ssub.s32 1, %s3
  %s6 = scalar_select 0, %s5, %s3
  // Predicated region
  $region2: #{rwkv_gpt_forward.21} parent=0 // pred_check
    _
  $region3: #{rwkv_gpt_forward.21} parent=0 // pred_check_branch
    %8 = sbr.rel (0) target = $region5
  $region4: #{rwkv_gpt_forward.21} parent=0 // pred_region
    _
  $region5: #{rwkv_gpt_forward.21} parent=0 // pred_fallthru
    _
  // Predicated region
  $region6: #{rwkv_gpt_forward.21} parent=0 // pred_check
    _
  $region7: #{rwkv_gpt_forward.21} parent=0 // pred_check_branch
    %10 = sbr.rel (0) target = $region9
  $region8: #{rwkv_gpt_forward.21} parent=0 // pred_region
    _
  $region9: #{rwkv_gpt_forward.21} parent=0 // pred_fallthru
    _
  %v12 = vld [vmem:[%s0] sm:$0xf]
  %v13 = vld [vmem:[%s0 + $0x4] sm:$0xf]
  %v14 = vld [vmem:[%s1] sm:$0xff]
  %v15 = vld [vmem:[%s1 + $0x8] sm:$0xff]
  %v16 = vld [vmem:[%s1 + $0x10] sm:$0xff]
  %v17 = vld [vmem:[%s1 + $0x18] sm:$0xff]
  %v18 = vld [vmem:[%s1 + $0x20] sm:$0xff]
  %v19 = vld [vmem:[%s1 + $0x28] sm:$0xff]
  %v20 = vld [vmem:[%s1 + $0x30] sm:$0xff]
  %v21 = vld [vmem:[%s1 + $0x38] sm:$0xff]
  %v22 = vld [vmem:[%s1 + $0x40] sm:$0xff]
  %v23 = vld [vmem:[%s1 + $0x48] sm:$0xff]
  %v24 = vld [vmem:[%s1 + $0x50] sm:$0xff]
  %v25 = vld [vmem:[%s1 + $0x58] sm:$0xff]
  %v26 = vld [vmem:[%s1 + $0x60] sm:$0xff]
  %v27 = vld [vmem:[%s1 + $0x68] sm:$0xff]
  %v28 = vld [vmem:[%s1 + $0x70] sm:$0xff]
  %v29 = vld [vmem:[%s1 + $0x78] sm:$0xff]
  %v30 = vld [vmem:[%s1 + $0x80] sm:$0xff]
  %v31 = vld [vmem:[%s1 + $0x88] sm:$0xff]
  %v32 = vld [vmem:[%s1 + $0x90] sm:$0xff]
  %v33 = vld [vmem:[%s1 + $0x98] sm:$0xff]
  %v34 = vld [vmem:[%s1 + $0xa0] sm:$0xff]
  %v35 = vld [vmem:[%s1 + $0xa8] sm:$0xff]
  %v36 = vld [vmem:[%s1 + $0xb0] sm:$0xff]
  %v37 = vld [vmem:[%s1 + $0xb8] sm:$0xff]
  %v38 = vld [vmem:[%s1 + $0xc0] sm:$0xff]
  %v39 = vld [vmem:[%s1 + $0xc8] sm:$0xff]
  %v40 = vld [vmem:[%s1 + $0xd0] sm:$0xff]
  %v41 = vld [vmem:[%s1 + $0xd8] sm:$0xff]
  %v42 = vld [vmem:[%s1 + $0xe0] sm:$0xff]
  %v43 = vld [vmem:[%s1 + $0xe8] sm:$0xff]
  %v44 = vld [vmem:[%s1 + $0xf0] sm:$0xff]
  %v45 = vld [vmem:[%s1 + $0xf8] sm:$0xff]
  %v48 = vunpack.c.l.b16 %v12
  %v49 = vunpack.c.l.b16 %v13
  %v50 = vpack.c.b16 %v49, %v48
  %v84 = vunpack.c.l.b16 %v14
  %v85 = vunpack.c.h.b16 %v14
  %v86 = vunpack.c.l.b16 %v15
  %v87 = vunpack.c.h.b16 %v15
  %v88 = vunpack.c.l.b16 %v16
  %v89 = vunpack.c.h.b16 %v16
  %v90 = vunpack.c.l.b16 %v17
  %v91 = vunpack.c.h.b16 %v17
  %v92 = vunpack.c.l.b16 %v18
  %v93 = vunpack.c.h.b16 %v18
  %v94 = vunpack.c.l.b16 %v19
  %v95 = vunpack.c.h.b16 %v19
  %v96 = vunpack.c.l.b16 %v20
  %v97 = vunpack.c.h.b16 %v20
  %v98 = vunpack.c.l.b16 %v21
  %v99 = vunpack.c.h.b16 %v21
  %v100 = vunpack.c.l.b16 %v22
  %v101 = vunpack.c.h.b16 %v22
  %v102 = vunpack.c.l.b16 %v23
  %v103 = vunpack.c.h.b16 %v23
  %v104 = vunpack.c.l.b16 %v24
  %v105 = vunpack.c.h.b16 %v24
  %v106 = vunpack.c.l.b16 %v25
  %v107 = vunpack.c.h.b16 %v25
  %v108 = vunpack.c.l.b16 %v26
  %v109 = vunpack.c.h.b16 %v26
  %v110 = vunpack.c.l.b16 %v27
  %v111 = vunpack.c.h.b16 %v27
  %v112 = vunpack.c.l.b16 %v28
  %v113 = vunpack.c.h.b16 %v28
  %v114 = vunpack.c.l.b16 %v29
  %v115 = vunpack.c.h.b16 %v29
  %v116 = vunpack.c.l.b16 %v30
  %v117 = vunpack.c.h.b16 %v30
  %v118 = vunpack.c.l.b16 %v31
  %v119 = vunpack.c.h.b16 %v31
  %v120 = vunpack.c.l.b16 %v32
  %v121 = vunpack.c.h.b16 %v32
  %v122 = vunpack.c.l.b16 %v33
  %v123 = vunpack.c.h.b16 %v33
  %v124 = vunpack.c.l.b16 %v34
  %v125 = vunpack.c.h.b16 %v34
  %v126 = vunpack.c.l.b16 %v35
  %v127 = vunpack.c.h.b16 %v35
  %v128 = vunpack.c.l.b16 %v36
  %v129 = vunpack.c.h.b16 %v36
  %v130 = vunpack.c.l.b16 %v37
  %v131 = vunpack.c.h.b16 %v37
  %v132 = vunpack.c.l.b16 %v38
  %v133 = vunpack.c.h.b16 %v38
  %v134 = vunpack.c.l.b16 %v39
  %v135 = vunpack.c.h.b16 %v39
  %v136 = vunpack.c.l.b16 %v40
  %v137 = vunpack.c.h.b16 %v40
  %v138 = vunpack.c.l.b16 %v41
  %v139 = vunpack.c.h.b16 %v41
  %v140 = vunpack.c.l.b16 %v42
  %v141 = vunpack.c.h.b16 %v42
  %v142 = vunpack.c.l.b16 %v43
  %v143 = vunpack.c.h.b16 %v43
  %v144 = vunpack.c.l.b16 %v44
  %v145 = vunpack.c.h.b16 %v44
  %v146 = vunpack.c.l.b16 %v45
  %v147 = vunpack.c.h.b16 %v45
  %v148 = vpack.c.b16 %v88, %v84
  %v149 = vpack.c.b16 %v89, %v85
  %v150 = vpack.c.b16 %v90, %v86
  %v151 = vpack.c.b16 %v91, %v87
  %v152 = vpack.c.b16 %v96, %v92
  %v153 = vpack.c.b16 %v97, %v93
  %v154 = vpack.c.b16 %v98, %v94
  %v155 = vpack.c.b16 %v99, %v95
  %v156 = vpack.c.b16 %v104, %v100
  %v157 = vpack.c.b16 %v105, %v101
  %v158 = vpack.c.b16 %v106, %v102
  %v159 = vpack.c.b16 %v107, %v103
  %v160 = vpack.c.b16 %v112, %v108
  %v161 = vpack.c.b16 %v113, %v109
  %v162 = vpack.c.b16 %v114, %v110
  %v163 = vpack.c.b16 %v115, %v111
  %v164 = vpack.c.b16 %v120, %v116
  %v165 = vpack.c.b16 %v121, %v117
  %v166 = vpack.c.b16 %v122, %v118
  %v167 = vpack.c.b16 %v123, %v119
  %v168 = vpack.c.b16 %v128, %v124
  %v169 = vpack.c.b16 %v129, %v125
  %v170 = vpack.c.b16 %v130, %v126
  %v171 = vpack.c.b16 %v131, %v127
  %v172 = vpack.c.b16 %v136, %v132
  %v173 = vpack.c.b16 %v137, %v133
  %v174 = vpack.c.b16 %v138, %v134
  %v175 = vpack.c.b16 %v139, %v135
  %v176 = vpack.c.b16 %v144, %v140
  %v177 = vpack.c.b16 %v145, %v141
  %v178 = vpack.c.b16 %v146, %v142
  %v179 = vpack.c.b16 %v147, %v143
  %212 = vmatprep.subr.bf16.mxu0 %v177
  %213 = vmatpush1.bf16.msra.mxu0 %v176
  %214 = vmatprep.subr.bf16.mxu0 %v173
  %215 = vmatpush1.bf16.msra.mxu0 %v172
  %216 = vmatprep.subr.bf16.mxu0 %v169
  %217 = vmatpush1.bf16.msra.mxu0 %v168
  %218 = vmatprep.subr.bf16.mxu0 %v165
  %219 = vmatpush1.bf16.msra.mxu0 %v164
  %220 = vmatprep.subr.bf16.mxu0 %v161
  %221 = vmatpush1.bf16.msra.mxu0 %v160
  %222 = vmatprep.subr.bf16.mxu0 %v157
  %223 = vmatpush1.bf16.msra.mxu0 %v156
  %224 = vmatprep.subr.bf16.mxu0 %v153
  %225 = vmatpush1.bf16.msra.mxu0 %v152
  %226 = vmatprep.subr.bf16.mxu0 %v149
  %227 = vmatpush1.bf16.msra.mxu0 %v148
  %228 = vmatprep.subr.bf16.mxu0 0
  %229 = vmatpush2.bf16.msra.mxu0 0
  %230 = vmatprep.subr.bf16.mxu0 0
  %231 = vmatpush2.bf16.msra.mxu0 0
  %232 = vmatprep.subr.bf16.mxu0 0
  %233 = vmatpush2.bf16.msra.mxu0 0
  %234 = vmatprep.subr.bf16.mxu0 0
  %235 = vmatpush2.bf16.msra.mxu0 0
  %236 = vmatprep.subr.bf16.mxu0 0
  %237 = vmatpush2.bf16.msra.mxu0 0
  %238 = vmatprep.subr.bf16.mxu0 0
  %239 = vmatpush2.bf16.msra.mxu0 0
  %240 = vmatprep.subr.bf16.mxu0 0
  %241 = vmatpush2.bf16.msra.mxu0 0
  %242 = vmatprep.subr.bf16.mxu0 0
  %243 = vmatpush2.bf16.msra.mxu0 0
  %244 = vmatprep.mubr.bf16.mxu0 0
  %245 = vmatmul.mubr.bf16.gmra.mxu0 %v50
  %v246 = vpop.f32.mrf.mxu0
  %v247 = vadd.f32 0.0, %v246
  %v248 = vpop.f32.mrf.mxu0
  %v249 = vadd.f32 0.0, %v248
  %v250 = vpop.f32.mrf.mxu0
  %v251 = vadd.f32 0.0, %v250
  %v252 = vpop.f32.mrf.mxu0
  %v253 = vadd.f32 0.0, %v252
  %254 = vdwg.mxu0
  %255 = vmatprep.subr.bf16.mxu0 %v179
  %256 = vmatpush1.bf16.msra.mxu0 %v178
  %257 = vmatprep.subr.bf16.mxu0 %v175
  %258 = vmatpush1.bf16.msra.mxu0 %v174
  %259 = vmatprep.subr.bf16.mxu0 %v171
  %260 = vmatpush1.bf16.msra.mxu0 %v170
  %261 = vmatprep.subr.bf16.mxu0 %v167
  %262 = vmatpush1.bf16.msra.mxu0 %v166
  %263 = vmatprep.subr.bf16.mxu0 %v163
  %264 = vmatpush1.bf16.msra.mxu0 %v162
  %265 = vmatprep.subr.bf16.mxu0 %v159
  %266 = vmatpush1.bf16.msra.mxu0 %v158
  %267 = vmatprep.subr.bf16.mxu0 %v155
  %268 = vmatpush1.bf16.msra.mxu0 %v154
  %269 = vmatprep.subr.bf16.mxu0 %v151
  %270 = vmatpush1.bf16.msra.mxu0 %v150
  %271 = vmatprep.subr.bf16.mxu0 0
  %272 = vmatpush2.bf16.msra.mxu0 0
  %273 = vmatprep.subr.bf16.mxu0 0
  %274 = vmatpush2.bf16.msra.mxu0 0
  %275 = vmatprep.subr.bf16.mxu0 0
  %276 = vmatpush2.bf16.msra.mxu0 0
  %277 = vmatprep.subr.bf16.mxu0 0
  %278 = vmatpush2.bf16.msra.mxu0 0
  %279 = vmatprep.subr.bf16.mxu0 0
  %280 = vmatpush2.bf16.msra.mxu0 0
  %281 = vmatprep.subr.bf16.mxu0 0
  %282 = vmatpush2.bf16.msra.mxu0 0
  %283 = vmatprep.subr.bf16.mxu0 0
  %284 = vmatpush2.bf16.msra.mxu0 0
  %285 = vmatprep.subr.bf16.mxu0 0
  %286 = vmatpush2.bf16.msra.mxu0 0
  %287 = vmatprep.mubr.bf16.mxu0 0
  %288 = vmatmul.mubr.bf16.gmra.mxu0 %v50
  %v289 = vpop.f32.mrf.mxu0
  %v290 = vadd.f32 0.0, %v289
  %v291 = vpop.f32.mrf.mxu0
  %v292 = vadd.f32 0.0, %v291
  %v293 = vpop.f32.mrf.mxu0
  %v294 = vadd.f32 0.0, %v293
  %v295 = vpop.f32.mrf.mxu0
  %v296 = vadd.f32 0.0, %v295
  %297 = vdwg.mxu0
  %298 = vst [vmem:[%s2] sm:$0xff] %v247
  %299 = vst [vmem:[%s2 + $0x8] sm:$0xff] %v249
  %300 = vst [vmem:[%s2 + $0x10] sm:$0xff] %v290
  %301 = vst [vmem:[%s2 + $0x18] sm:$0xff] %v292
  %302 = vst [vmem:[%s2 + $0x20] sm:$0xff] %v251
  %303 = vst [vmem:[%s2 + $0x28] sm:$0xff] %v253
  %304 = vst [vmem:[%s2 + $0x30] sm:$0xff] %v294
  %305 = vst [vmem:[%s2 + $0x38] sm:$0xff] %v296
  // Predicated region
  $region10: #{rwkv_gpt_forward.21} parent=0 // pred_check
    _
  $region11: #{rwkv_gpt_forward.21} parent=0 // pred_check_branch
    %307 = sbr.rel (0) target = $region13
  $region12: #{rwkv_gpt_forward.21} parent=0 // pred_region
    _
  $region13: #{rwkv_gpt_forward.21} parent=0 // pred_fallthru
    _
  // Predicated region
  $region14: #{rwkv_gpt_forward.21} parent=0 // pred_check
    _
  $region15: #{rwkv_gpt_forward.21} parent=0 // pred_check_branch
    %309 = sbr.rel (0) target = $region17
  $region16: #{rwkv_gpt_forward.21} parent=0 // pred_region
    _
  $region17: #{rwkv_gpt_forward.21} parent=0 // pred_fallthru
    _

</llo_original>
